<compile_context>
chip_gen: v7x
topology: tpu7x:2x2x1
jax: 0.10.0
libtpu: 0.0.40
codegen_flags: <defaults>
</compile_context>

<pallas_src>
import functools

import jax
import jax.numpy as jnp
from jax import lax
from jax.experimental import pallas as pl
from jax.experimental.pallas import tpu as pltpu


# ---------------------------------------------------------------------------
# Fused kernel: 3x3 conv (stride 1, pad 1) + bias + 2x2/2 max-pool + ReLU
# ---------------------------------------------------------------------------
def _conv3x3_pool_relu_kernel(x_ref, w_ref, b_ref, o_ref, pad_ref, *,
                              rows_per_iter, fuse_taps, lane_dense):
    """One grid step = one batch image x one tile of pooled output rows.

    x_ref   : (1, H, W, Cin)    unpadded image in the compute dtype (bf16);
                                block index is constant along the row-tile grid
                                axis -> DMAed from HBM once per batch element.
    w_ref   : (9*Cin, Cout)     conv weights flattened (dh, dw, cin)-major.
    b_ref   : (1, Cout)         f32 bias.
    o_ref   : (1, TP, WO*Cout)  [lane_dense] or (1, TP, WO, Cout).
    pad_ref : (H+2, W+2, Cin)   f32 scratch holding the zero-padded image.
    """
    h, w, cin = x_ref.shape[1], x_ref.shape[2], x_ref.shape[3]
    cout = w_ref.shape[1]
    tp = o_ref.shape[1]
    wo = (o_ref.shape[2] // cout) if lane_dense else o_ref.shape[2]
    wc = w                                   # conv output width (pad=1, stride=1)
    rpi = rows_per_iter
    assert wc == 2 * wo and tp % rpi == 0

    # Build the zero-padded image in VMEM once per batch element.  The row-tile
    # grid axis is "arbitrary" (sequential, never megacore-sharded), so
    # program_id(1) == 0 is the first visit of this image and pad_ref persists
    # for the remaining row tiles.
    @pl.when(pl.program_id(1) == 0)
    def _():
        pad_ref[...] = jnp.zeros(pad_ref.shape, pad_ref.dtype)
        pad_ref[pl.ds(1, h), pl.ds(1, w), :] = x_ref[0].astype(pad_ref.dtype)

    row_base = 2 * tp * pl.program_id(1)     # first conv-output row of this tile
    w_flat = w_ref[...]                      # loop-invariant loads, hoisted
    bias = b_ref[...]
    cdt = w_flat.dtype                       # MXU compute dtype (bf16)

    def step(it, carry):
        p0 = it * rpi                        # first pooled row of this chunk
        r0 = row_base + 2 * p0               # first padded input row needed
        # 2*rpi conv rows need 2*rpi + 2 padded input rows.
        xrows = pad_ref[pl.ds(r0, 2 * rpi + 2), :, :]   # (2*rpi+2, W+2, Cin) f32
        nrows = 2 * rpi * wc

        if fuse_taps:
            # Deep-K im2col: one MXU matmul per chunk instead of 9 shallow-K
            # dots (fewer result-FIFO pops + VALU accumulate passes).
            taps = [xrows[dh:dh + 2 * rpi, dw:dw + wc, :]
                    .reshape(nrows, cin).astype(cdt)
                    for dh in range(3) for dw in range(3)]
            patch = jnp.concatenate(taps, axis=-1)       # (2*rpi*W, 9*Cin)
            conv = jnp.dot(patch, w_flat, preferred_element_type=jnp.float32)
        else:
            # Shallow path (tiny Cin): stream the 9 taps straight into the MXU,
            # no 9x im2col store amplification (binds the vst slot on v5e).
            conv = jnp.zeros((nrows, cout), jnp.float32)
            for dh in range(3):
                for dw in range(3):
                    t = (xrows[dh:dh + 2 * rpi, dw:dw + wc, :]
                         .reshape(nrows, cin).astype(cdt))
                    wk = w_flat[(dh * 3 + dw) * cin:(dh * 3 + dw + 1) * cin, :]
                    conv = conv + jnp.dot(t, wk,
                                          preferred_element_type=jnp.float32)

        # 2x2 max-pool (rows then columns) + bias + ReLU.  Per-channel bias
        # after the max is exact; ReLU after the pool matches forward().
        conv = conv.reshape(rpi, 2, wc, cout).max(axis=1)       # (rpi, W,  Cout)
        pooled = conv.reshape(rpi, wo, 2, cout).max(axis=2)     # (rpi, WO, Cout)
        pooled = jnp.maximum(pooled + bias, 0.0)
        if lane_dense:
            o_ref[0, pl.ds(p0, rpi)] = (
                pooled.reshape(rpi, wo * cout).astype(o_ref.dtype))
        else:
            o_ref[0, pl.ds(p0, rpi)] = pooled.astype(o_ref.dtype)
        return carry

    # Static, small trip count -> unroll so tap slicing / pooling VPU work can
    # overlap the MXU dots across chunks.
    lax.fori_loop(0, tp // rpi, step, 0, unroll=True)


# ---------------------------------------------------------------------------
# Tile / VMEM-budget selection helpers (generation-aware)
# ---------------------------------------------------------------------------
def _round_up(x, m):
    return ((x + m - 1) // m) * m


def _vmem_block_bytes(shape, itemsize):
    """Rough VMEM footprint: minor dim padded to 128 lanes, 2nd-minor to 8."""
    if len(shape) < 2:
        return _round_up(int(shape[0]) if shape else 1, 128) * itemsize
    lead = 1
    for d in shape[:-2]:
        lead *= int(d)
    return (lead * _round_up(int(shape[-2]), 8)
            * _round_up(int(shape[-1]), 128) * itemsize)


def _tpu_vmem_capacity():
    """Physical per-TensorCore VMEM; conservative (v7x, 64 MiB) fallback."""
    try:
        return int(pltpu.get_tpu_info().vmem_capacity_bytes)
    except Exception:
        return 64 * 1024 * 1024


def _out_tile_budget(vmem_capacity):
    # v5e/v6e (128 MiB): large tiles amortize the ~0.35 us/grid-step overhead
    # and push toward the HBM roofline; v7x (64 MiB) stays conservative.
    return (6 << 20) if vmem_capacity >= (96 << 20) else (2 << 20)


def _inner_chunk_budget(vmem_capacity):
    return (1 << 20) if vmem_capacity >= (96 << 20) else (512 << 10)


def _pick_pooled_row_tile(ho, wo, cout, budget):
    """Largest divisor of HO whose output tile fits the per-buffer budget."""
    best = 1
    for tp in range(1, ho + 1):
        if ho % tp == 0 and tp * wo * cout * 4 <= budget:
            best = tp
    return best


def _pick_inner_rows(tp, w, cin, cout, budget):
    """Pooled rows per inner dot so the live patch/accumulator stays small."""
    best = 1
    for rpi in range(1, tp + 1):
        if tp % rpi == 0 and 2 * rpi * w * max(cout, 9 * cin) * 4 <= budget:
            best = rpi
    return best


# ---------------------------------------------------------------------------
# Wrapper: fused Conv2d(3x3, stride 1, pad 1) + MaxPool2d(2,2) + ReLU  (NHWC)
# ---------------------------------------------------------------------------
def conv3x3_pool_relu(x_nhwc, w_hwio, b, *, compute_dtype=jnp.bfloat16):
    """MXU operands in `compute_dtype` (bf16 default); f32 accumulate/output."""
    n, h, w, cin = x_nhwc.shape
    kh, kw, wcin, cout = w_hwio.shape
    # TODO(synk): only kernels=3 (the VGG configuration) is implemented.
    assert (kh, kw) == (3, 3) and wcin == cin
    # TODO(synk): PyTorch MaxPool2d(2,2) silently floors odd spatial dims; only
    # the even case is implemented here.
    assert h % 2 == 0 and w % 2 == 0, "MaxPool2d(2,2) needs even spatial dims"
    ho, wo = h // 2, w // 2

    # Wrapper-side work is dtype-only (fuses with the caller's transpose under
    # jit); the zero-padding happens inside the kernel.
    x = x_nhwc.astype(compute_dtype)
    w_flat = w_hwio.reshape(9 * cin, cout).astype(compute_dtype)  # (dh,dw,cin)-major
    b2 = b.reshape(1, cout).astype(jnp.float32)
    cbytes = jnp.dtype(compute_dtype).itemsize

    cap = _tpu_vmem_capacity()
    tp = _pick_pooled_row_tile(ho, wo, cout, _out_tile_budget(cap))
    rpi = _pick_inner_rows(tp, w, cin, cout, _inner_chunk_budget(cap))

    # Lane-dense store path: (1, tp, WO*Cout) blocks when Cout < 128 so the
    # output minor dim is a multiple of 128 (unmasked stores, dense writeback).
    lane_dense = (cout < 128 and (wo * cout) % 128 == 0
                  and (tp % 8 == 0 or tp == ho))
    # Deep-K im2col only when K = 9*Cin is MXU-worthy; for tiny Cin the patch
    # build's 9x store amplification binds before the MXU does (esp. v5e).
    # TODO(synk): on v7x the MRB makes the shallow path cheaper still; pick per
    # generation once benchmarked on hardware.
    fuse_taps = cin >= 8

    out_block = (1, tp, wo * cout) if lane_dense else (1, tp, wo, cout)
    chunk_rows = 2 * rpi * w
    need = (
        2 * _vmem_block_bytes((1, h, w, cin), cbytes)        # double-buffered image
        + _vmem_block_bytes((h + 2, w + 2, cin), 4)          # padded halo scratch
        + 2 * _vmem_block_bytes((9 * cin, cout), cbytes)     # weights
        + 2 * _vmem_block_bytes((1, cout), 4)                # bias
        + 2 * _vmem_block_bytes(out_block, 4)                # double-buffered out tile
        + _vmem_block_bytes((2 * rpi + 2, w + 2, cin), 4)    # xrows slice
        + 9 * _vmem_block_bytes((chunk_rows, cin), cbytes)   # taps / im2col patch
        + 3 * _vmem_block_bytes((chunk_rows, cout), 4)       # conv acc + pool temps
    )
    vmem_cap = (3 * cap) // 4                                # never exceed physical
    if need > vmem_cap:
        # TODO(synk): very large images need a row-tiled halo path (pl.ANY input
        # + pltpu.make_async_copy of 2*tp+2 rows per step) instead of holding
        # the whole image resident in VMEM.
        raise ValueError(
            f"conv3x3_pool_relu footprint {need / 2**20:.1f} MiB exceeds the "
            f"{vmem_cap / 2**20:.1f} MiB VMEM budget on this TPU generation.")
    vmem_limit = int(min(vmem_cap, max(32 << 20, need + (8 << 20))))

    out_shape = (jax.ShapeDtypeStruct((n, ho, wo * cout), jnp.float32)
                 if lane_dense else
                 jax.ShapeDtypeStruct((n, ho, wo, cout), jnp.float32))
    out_spec = (pl.BlockSpec((1, tp, wo * cout), lambda bb, i: (bb, i, 0))
                if lane_dense else
                pl.BlockSpec((1, tp, wo, cout), lambda bb, i: (bb, i, 0, 0)))

    grid_spec = pltpu.PrefetchScalarGridSpec(
        num_scalar_prefetch=0,
        # Batch axis "parallel" (megacore shards whole images -> no duplicated
        # per-image DMA); row-tile axis "arbitrary" (sequential) so the halo
        # scratch built at i == 0 is valid for every later tile of the image.
        grid=(n, ho // tp),
        in_specs=[
            # Whole unpadded image; block index constant along the row-tile
            # axis -> fetched once per batch element, reused by every tile.
            pl.BlockSpec((1, h, w, cin), lambda bb, i: (bb, 0, 0, 0)),
            # Invariant weights / bias: same block every step -> fetched once.
            pl.BlockSpec((9 * cin, cout), lambda bb, i: (0, 0)),
            pl.BlockSpec((1, cout), lambda bb, i: (0, 0)),
        ],
        out_specs=out_spec,
        scratch_shapes=[pltpu.VMEM((h + 2, w + 2, cin), jnp.float32)],
    )

    out = pl.pallas_call(
        functools.partial(_conv3x3_pool_relu_kernel, rows_per_iter=rpi,
                          fuse_taps=fuse_taps, lane_dense=lane_dense),
        out_shape=out_shape,
        grid_spec=grid_spec,
        compiler_params=pltpu.CompilerParams(
            dimension_semantics=("parallel", "arbitrary"),
            vmem_limit_bytes=vmem_limit),
    )(x, w_flat, b2)

    if lane_dense:
        out = out.reshape(n, ho, wo, cout)   # row-major-compatible: free
    return out


# ---------------------------------------------------------------------------
# Module-level forward (matches VGGnet1ConvLayer.forward) + synthetic params
# ---------------------------------------------------------------------------
def init_vggnet1_params(key, in_size, out_size):
    """Deterministic synthetic Conv2d(in, out, 3) parameters in HWIO layout.

    (To port real PyTorch weights: w_hwio = torch_w.permute(2, 3, 1, 0).)
    """
    kw, kb = jax.random.split(key)
    w = jax.random.normal(kw, (3, 3, in_size, out_size), jnp.float32)
    w = w / jnp.sqrt(9.0 * in_size)
    b = 0.01 * jax.random.normal(kb, (out_size,), jnp.float32)
    return {"w": w, "b": b}


def vggnet1_conv_layer_forward(params, x_nchw):
    """forward(): x = conv(x); x = pool(x); x = relu(x)  (NCHW in / NCHW out).

    self.batchNorm is constructed in __init__ but never applied in forward()
    -> intentionally omitted.
    NOTE: for stacked VGG blocks, keep activations NHWC (and bf16) between
    layers and call conv3x3_pool_relu directly; the NCHW<->NHWC transposes here
    only exist to match the PyTorch module's interface (the bf16 cast fuses
    into the input transpose under jit).
    """
    x = jnp.transpose(x_nchw, (0, 2, 3, 1))                 # NCHW -> NHWC
    y = conv3x3_pool_relu(x, params["w"], params["b"])      # fused conv+pool+relu
    return jnp.transpose(y, (0, 3, 1, 2))                   # NHWC -> NCHW


if __name__ == "__main__":
    batch, in_size, out_size, spatial = 2, 4, 32, 16
    key = jax.random.PRNGKey(0)
    pkey, xkey = jax.random.split(key)
    params = init_vggnet1_params(pkey, in_size, out_size)
    x = jax.random.normal(xkey, (batch, in_size, spatial, spatial), jnp.float32)

    fwd = jax.jit(vggnet1_conv_layer_forward)
    out = jax.block_until_ready(fwd(params, x))
    assert out.shape == (batch, out_size, spatial // 2, spatial // 2)
    assert bool(jnp.all(jnp.isfinite(out)))

    # Independent reference: XLA conv (f32) + reshape max-pool + ReLU.
    x_nhwc = jnp.transpose(x, (0, 2, 3, 1))
    ref = lax.conv_general_dilated(
        x_nhwc, params["w"], window_strides=(1, 1), padding=((1, 1), (1, 1)),
        dimension_numbers=("NHWC", "HWIO", "NHWC"))
    ref = ref + params["b"]
    ref = ref.reshape(batch, spatial // 2, 2, spatial // 2, 2, out_size)
    ref = ref.max(axis=(2, 4))
    ref = jnp.maximum(ref, 0.0)
    ref = jnp.transpose(ref, (0, 3, 1, 2))
    max_err = float(jnp.max(jnp.abs(out - ref)))
    assert max_err < 5e-2, f"mismatch vs XLA reference: max abs err {max_err}"
    print("KERNEL_OK")
</pallas_src>

<mosaic_0001>
module attributes {stable_mosaic.version = 11 : i64} {
  func.func @_conv3x3_pool_relu_kernel(%arg0: i32, %arg1: i32, %arg2: memref<1x16x16x4xbf16, #tpu.memory_space<vmem>>, %arg3: memref<36x32xbf16, #tpu.memory_space<vmem>>, %arg4: memref<1x32xf32, #tpu.memory_space<vmem>>, %arg5: memref<1x8x256xf32, #tpu.memory_space<vmem>>, %arg6: memref<18x18x4xf32, #tpu.memory_space<vmem>>) attributes {dimension_semantics = [#tpu.dimension_semantics<parallel>, #tpu.dimension_semantics<arbitrary>], iteration_bounds = array<i64: 2, 1>, scalar_prefetch = 0 : i64, scratch_operands = 1 : i64, tpu.core_type = #tpu.core_type<tc>, window_params = [{transform_indices = @transform_0, window_bounds = array<i64: 1, 16, 16, 4>}, {pipeline_mode = #tpu.pipeline_mode<synchronous>, transform_indices = @transform_1, window_bounds = array<i64: 36, 32>}, {pipeline_mode = #tpu.pipeline_mode<synchronous>, transform_indices = @transform_2, window_bounds = array<i64: 1, 32>}, {transform_indices = @transform_3, window_bounds = array<i64: 1, 8, 256>}]} {
    %c0_i32 = arith.constant 0 : i32
    %0 = arith.cmpi eq, %arg1, %c0_i32 : i32
    %1 = arith.extui %0 : i1 to i32
    %c0_i32_0 = arith.constant 0 : i32
    %2 = arith.cmpi ne, %1, %c0_i32_0 : i32
    scf.if %2 {
      %cst_21 = arith.constant 0.000000e+00 : f32
      %80 = vector.broadcast %cst_21 : f32 to vector<18x18x4xf32>
      %c0_22 = arith.constant 0 : index
      %c0_23 = arith.constant 0 : index
      %c0_24 = arith.constant 0 : index
      %81 = vector.load %arg6[%c0_22, %c0_23, %c0_24] : memref<18x18x4xf32, #tpu.memory_space<vmem>>, vector<18x18x4xf32>
      tpu.vector_store %arg6[%c0_22, %c0_23, %c0_24], %80 {strides = array<i32>} : memref<18x18x4xf32, #tpu.memory_space<vmem>>, vector<18x18x4xf32>,
      %c0_25 = arith.constant 0 : index
      %c0_26 = arith.constant 0 : index
      %c0_27 = arith.constant 0 : index
      %c0_28 = arith.constant 0 : index
      %82 = vector.load %arg2[%c0_25, %c0_26, %c0_27, %c0_28] : memref<1x16x16x4xbf16, #tpu.memory_space<vmem>>, vector<1x16x16x4xbf16>
      %83 = vector.shape_cast %82 : vector<1x16x16x4xbf16> to vector<16x16x4xbf16>
      %84 = arith.extf %83 : vector<16x16x4xbf16> to vector<16x16x4xf32>
      %c1 = arith.constant 1 : index
      %c1_29 = arith.constant 1 : index
      %c0_30 = arith.constant 0 : index
      %85 = vector.load %arg6[%c1, %c1_29, %c0_30] : memref<18x18x4xf32, #tpu.memory_space<vmem>>, vector<16x16x4xf32>
      tpu.vector_store %arg6[%c1, %c1_29, %c0_30], %84 {strides = array<i32>} : memref<18x18x4xf32, #tpu.memory_space<vmem>>, vector<16x16x4xf32>,
    } else {
    }
    %c16_i32 = arith.constant 16 : i32
    %3 = arith.muli %c16_i32, %arg1 : i32
    %c0 = arith.constant 0 : index
    %c0_1 = arith.constant 0 : index
    %4 = vector.load %arg3[%c0, %c0_1] : memref<36x32xbf16, #tpu.memory_space<vmem>>, vector<36x32xbf16>
    %c0_2 = arith.constant 0 : index
    %c0_3 = arith.constant 0 : index
    %5 = vector.load %arg4[%c0_2, %c0_3] : memref<1x32xf32, #tpu.memory_space<vmem>>, vector<1x32xf32>
    %c0_i32_4 = arith.constant 0 : i32
    %c8_i32 = arith.constant 8 : i32
    %6 = arith.muli %c0_i32_4, %c8_i32 : i32
    %c2_i32 = arith.constant 2 : i32
    %7 = arith.muli %c2_i32, %6 : i32
    %8 = arith.addi %3, %7 : i32
    %9 = arith.index_cast %8 : i32 to index
    %c0_5 = arith.constant 0 : index
    %c0_6 = arith.constant 0 : index
    %10 = vector.load %arg6[%9, %c0_5, %c0_6] : memref<18x18x4xf32, #tpu.memory_space<vmem>>, vector<18x18x4xf32>
    %cst = arith.constant 0.000000e+00 : f32
    %11 = vector.broadcast %cst : f32 to vector<256x32xf32>
    %12 = vector.extract_strided_slice %10 {offsets = [0, 0, 0], sizes = [16, 16, 4], strides = [1, 1, 1]} : vector<18x18x4xf32> to vector<16x16x4xf32>
    %13 = vector.shape_cast %12 : vector<16x16x4xf32> to vector<256x4xf32>
    %14 = arith.truncf %13 : vector<256x4xf32> to vector<256x4xbf16>
    %15 = vector.extract_strided_slice %4 {offsets = [0, 0], sizes = [4, 32], strides = [1, 1]} : vector<36x32xbf16> to vector<4x32xbf16>
    %cst_7 = arith.constant dense<0.000000e+00> : vector<256x32xf32>
    %16 = tpu.matmul %14, %15, %cst_7 {dimension_numbers = #tpu.dot_dimension_numbers<[1], [0], [0], [1], [0, 0, 1, 1], [], []>} : vector<256x4xbf16>, vector<4x32xbf16>, vector<256x32xf32> -> vector<256x32xf32>
    %17 = arith.addf %11, %16 : vector<256x32xf32>
    %18 = vector.extract_strided_slice %10 {offsets = [0, 1, 0], sizes = [16, 16, 4], strides = [1, 1, 1]} : vector<18x18x4xf32> to vector<16x16x4xf32>
    %19 = vector.shape_cast %18 : vector<16x16x4xf32> to vector<256x4xf32>
    %20 = arith.truncf %19 : vector<256x4xf32> to vector<256x4xbf16>
    %21 = vector.extract_strided_slice %4 {offsets = [4, 0], sizes = [4, 32], strides = [1, 1]} : vector<36x32xbf16> to vector<4x32xbf16>
    %cst_8 = arith.constant dense<0.000000e+00> : vector<256x32xf32>
    %22 = tpu.matmul %20, %21, %cst_8 {dimension_numbers = #tpu.dot_dimension_numbers<[1], [0], [0], [1], [0, 0, 1, 1], [], []>} : vector<256x4xbf16>, vector<4x32xbf16>, vector<256x32xf32> -> vector<256x32xf32>
    %23 = arith.addf %17, %22 : vector<256x32xf32>
    %24 = vector.extract_strided_slice %10 {offsets = [0, 2, 0], sizes = [16, 16, 4], strides = [1, 1, 1]} : vector<18x18x4xf32> to vector<16x16x4xf32>
    %25 = vector.shape_cast %24 : vector<16x16x4xf32> to vector<256x4xf32>
    %26 = arith.truncf %25 : vector<256x4xf32> to vector<256x4xbf16>
    %27 = vector.extract_strided_slice %4 {offsets = [8, 0], sizes = [4, 32], strides = [1, 1]} : vector<36x32xbf16> to vector<4x32xbf16>
    %cst_9 = arith.constant dense<0.000000e+00> : vector<256x32xf32>
    %28 = tpu.matmul %26, %27, %cst_9 {dimension_numbers = #tpu.dot_dimension_numbers<[1], [0], [0], [1], [0, 0, 1, 1], [], []>} : vector<256x4xbf16>, vector<4x32xbf16>, vector<256x32xf32> -> vector<256x32xf32>
    %29 = arith.addf %23, %28 : vector<256x32xf32>
    %30 = vector.extract_strided_slice %10 {offsets = [1, 0, 0], sizes = [16, 16, 4], strides = [1, 1, 1]} : vector<18x18x4xf32> to vector<16x16x4xf32>
    %31 = vector.shape_cast %30 : vector<16x16x4xf32> to vector<256x4xf32>
    %32 = arith.truncf %31 : vector<256x4xf32> to vector<256x4xbf16>
    %33 = vector.extract_strided_slice %4 {offsets = [12, 0], sizes = [4, 32], strides = [1, 1]} : vector<36x32xbf16> to vector<4x32xbf16>
    %cst_10 = arith.constant dense<0.000000e+00> : vector<256x32xf32>
    %34 = tpu.matmul %32, %33, %cst_10 {dimension_numbers = #tpu.dot_dimension_numbers<[1], [0], [0], [1], [0, 0, 1, 1], [], []>} : vector<256x4xbf16>, vector<4x32xbf16>, vector<256x32xf32> -> vector<256x32xf32>
    %35 = arith.addf %29, %34 : vector<256x32xf32>
    %36 = vector.extract_strided_slice %10 {offsets = [1, 1, 0], sizes = [16, 16, 4], strides = [1, 1, 1]} : vector<18x18x4xf32> to vector<16x16x4xf32>
    %37 = vector.shape_cast %36 : vector<16x16x4xf32> to vector<256x4xf32>
    %38 = arith.truncf %37 : vector<256x4xf32> to vector<256x4xbf16>
    %39 = vector.extract_strided_slice %4 {offsets = [16, 0], sizes = [4, 32], strides = [1, 1]} : vector<36x32xbf16> to vector<4x32xbf16>
    %cst_11 = arith.constant dense<0.000000e+00> : vector<256x32xf32>
    %40 = tpu.matmul %38, %39, %cst_11 {dimension_numbers = #tpu.dot_dimension_numbers<[1], [0], [0], [1], [0, 0, 1, 1], [], []>} : vector<256x4xbf16>, vector<4x32xbf16>, vector<256x32xf32> -> vector<256x32xf32>
    %41 = arith.addf %35, %40 : vector<256x32xf32>
    %42 = vector.extract_strided_slice %10 {offsets = [1, 2, 0], sizes = [16, 16, 4], strides = [1, 1, 1]} : vector<18x18x4xf32> to vector<16x16x4xf32>
    %43 = vector.shape_cast %42 : vector<16x16x4xf32> to vector<256x4xf32>
    %44 = arith.truncf %43 : vector<256x4xf32> to vector<256x4xbf16>
    %45 = vector.extract_strided_slice %4 {offsets = [20, 0], sizes = [4, 32], strides = [1, 1]} : vector<36x32xbf16> to vector<4x32xbf16>
    %cst_12 = arith.constant dense<0.000000e+00> : vector<256x32xf32>
    %46 = tpu.matmul %44, %45, %cst_12 {dimension_numbers = #tpu.dot_dimension_numbers<[1], [0], [0], [1], [0, 0, 1, 1], [], []>} : vector<256x4xbf16>, vector<4x32xbf16>, vector<256x32xf32> -> vector<256x32xf32>
    %47 = arith.addf %41, %46 : vector<256x32xf32>
    %48 = vector.extract_strided_slice %10 {offsets = [2, 0, 0], sizes = [16, 16, 4], strides = [1, 1, 1]} : vector<18x18x4xf32> to vector<16x16x4xf32>
    %49 = vector.shape_cast %48 : vector<16x16x4xf32> to vector<256x4xf32>
    %50 = arith.truncf %49 : vector<256x4xf32> to vector<256x4xbf16>
    %51 = vector.extract_strided_slice %4 {offsets = [24, 0], sizes = [4, 32], strides = [1, 1]} : vector<36x32xbf16> to vector<4x32xbf16>
    %cst_13 = arith.constant dense<0.000000e+00> : vector<256x32xf32>
    %52 = tpu.matmul %50, %51, %cst_13 {dimension_numbers = #tpu.dot_dimension_numbers<[1], [0], [0], [1], [0, 0, 1, 1], [], []>} : vector<256x4xbf16>, vector<4x32xbf16>, vector<256x32xf32> -> vector<256x32xf32>
    %53 = arith.addf %47, %52 : vector<256x32xf32>
    %54 = vector.extract_strided_slice %10 {offsets = [2, 1, 0], sizes = [16, 16, 4], strides = [1, 1, 1]} : vector<18x18x4xf32> to vector<16x16x4xf32>
    %55 = vector.shape_cast %54 : vector<16x16x4xf32> to vector<256x4xf32>
    %56 = arith.truncf %55 : vector<256x4xf32> to vector<256x4xbf16>
    %57 = vector.extract_strided_slice %4 {offsets = [28, 0], sizes = [4, 32], strides = [1, 1]} : vector<36x32xbf16> to vector<4x32xbf16>
    %cst_14 = arith.constant dense<0.000000e+00> : vector<256x32xf32>
    %58 = tpu.matmul %56, %57, %cst_14 {dimension_numbers = #tpu.dot_dimension_numbers<[1], [0], [0], [1], [0, 0, 1, 1], [], []>} : vector<256x4xbf16>, vector<4x32xbf16>, vector<256x32xf32> -> vector<256x32xf32>
    %59 = arith.addf %53, %58 : vector<256x32xf32>
    %60 = vector.extract_strided_slice %10 {offsets = [2, 2, 0], sizes = [16, 16, 4], strides = [1, 1, 1]} : vector<18x18x4xf32> to vector<16x16x4xf32>
    %61 = vector.shape_cast %60 : vector<16x16x4xf32> to vector<256x4xf32>
    %62 = arith.truncf %61 : vector<256x4xf32> to vector<256x4xbf16>
    %63 = vector.extract_strided_slice %4 {offsets = [32, 0], sizes = [4, 32], strides = [1, 1]} : vector<36x32xbf16> to vector<4x32xbf16>
    %cst_15 = arith.constant dense<0.000000e+00> : vector<256x32xf32>
    %64 = tpu.matmul %62, %63, %cst_15 {dimension_numbers = #tpu.dot_dimension_numbers<[1], [0], [0], [1], [0, 0, 1, 1], [], []>} : vector<256x4xbf16>, vector<4x32xbf16>, vector<256x32xf32> -> vector<256x32xf32>
    %65 = arith.addf %59, %64 : vector<256x32xf32>
    %66 = vector.shape_cast %65 : vector<256x32xf32> to vector<8x2x16x32xf32>
    %cst_16 = arith.constant dense<0xFF800000> : vector<8x16x32xf32>
    %67 = vector.multi_reduction <maximumf>, %66, %cst_16 [1] : vector<8x2x16x32xf32> to vector<8x16x32xf32>
    %68 = vector.shape_cast %67 : vector<8x16x32xf32> to vector<8x8x2x32xf32>
    %cst_17 = arith.constant dense<0xFF800000> : vector<8x8x32xf32>
    %69 = vector.multi_reduction <maximumf>, %68, %cst_17 [2] : vector<8x8x2x32xf32> to vector<8x8x32xf32>
    %70 = vector.shape_cast %5 : vector<1x32xf32> to vector<1x1x32xf32>
    %71 = vector.broadcast %70 : vector<1x1x32xf32> to vector<8x8x32xf32>
    %72 = arith.addf %69, %71 : vector<8x8x32xf32>
    %cst_18 = arith.constant 0.000000e+00 : f32
    %73 = vector.broadcast %cst_18 : f32 to vector<8x8x32xf32>
    %74 = arith.maximumf %72, %73 : vector<8x8x32xf32>
    %75 = vector.shape_cast %74 : vector<8x8x32xf32> to vector<8x256xf32>
    %c0_19 = arith.constant 0 : index
    %76 = arith.index_cast %6 : i32 to index
    %c0_20 = arith.constant 0 : index
    %77 = vector.load %arg5[%c0_19, %76, %c0_20] : memref<1x8x256xf32, #tpu.memory_space<vmem>>, vector<1x8x256xf32>
    %78 = vector.shape_cast %77 : vector<1x8x256xf32> to vector<8x256xf32>
    %79 = vector.shape_cast %75 : vector<8x256xf32> to vector<1x8x256xf32>
    tpu.vector_store %arg5[%c0_19, %76, %c0_20], %79 {strides = array<i32>} : memref<1x8x256xf32, #tpu.memory_space<vmem>>, vector<1x8x256xf32>,
    %c1_i32 = arith.constant 1 : i32
    return
  }
  func.func @transform_0(%arg0: i32, %arg1: i32) -> (i32, i32, i32, i32) {
    %c0_i32 = arith.constant 0 : i32
    %c0_i32_0 = arith.constant 0 : i32
    %c0_i32_1 = arith.constant 0 : i32
    %c0_i32_2 = arith.constant 0 : i32
    return %arg0, %c0_i32, %c0_i32_0, %c0_i32_1 : i32, i32, i32, i32
  }
  func.func @transform_1(%arg0: i32, %arg1: i32) -> (i32, i32) {
    %c0_i32 = arith.constant 0 : i32
    %c0_i32_0 = arith.constant 0 : i32
    %c0_i32_1 = arith.constant 0 : i32
    return %c0_i32, %c0_i32_0 : i32, i32
  }
  func.func @transform_2(%arg0: i32, %arg1: i32) -> (i32, i32) {
    %c0_i32 = arith.constant 0 : i32
    %c0_i32_0 = arith.constant 0 : i32
    %c0_i32_1 = arith.constant 0 : i32
    return %c0_i32, %c0_i32_0 : i32, i32
  }
  func.func @transform_3(%arg0: i32, %arg1: i32) -> (i32, i32, i32) {
    %c0_i32 = arith.constant 0 : i32
    %c0_i32_0 = arith.constant 0 : i32
    return %arg0, %arg1, %c0_i32 : i32, i32, i32
  }
}

</mosaic_0001>

<llo_original>
// kernel: vggnet1_conv_layer_forward.1
$region0: #{vggnet1_conv_layer_forward.1}
  #allocation0 [shape = 'u32[]', space=smem, size = 0x4, offset = 0x4, fixed_abs, tag = 'smem constant byte address 0x4 - core index']
  #allocation1 [shape = 'u32[144,128]{1,0:T(1,128)}', space=vmem, size = 0x12000, scoped, tag = 'internal scratch']
  #allocation2 [shape = 'f32[18,18,4]{2,1,0:T(8,128)}', space=vmem, size = 0x36000, scoped, tag = 'scratch operand']
  %s0 = inlined_call_operand.vmem [shape: bf16[2,16,16,4], index: 0, kind: input, shape index: {}]
  %s1 = inlined_call_operand.vmem [shape: bf16[36,32], index: 1, kind: input, shape index: {}]
  %s2 = inlined_call_operand.vmem [shape: f32[1,32], index: 2, kind: input, shape index: {}]
  %s3 = inlined_call_operand.vmem [shape: f32[2,8,256], index: 3, kind: output, shape index: {}]
  %s4 = sld [smem:[#allocation0]]
  $region49: #{vggnet1_conv_layer_forward.1} parent=0
    _
  %s6 = ssub.s32 1, %s4
  %s7 = scalar_select 0, %s6, %s4
  loop: start=0, step=1, limit=4
  $region2: #{vggnet1_conv_layer_forward.1} parent=0 // loop_pre_header
    _
  $region3: #{vggnet1_conv_layer_forward.1} parent=0 // loop_header
    %s9 = sphi 0, %s13
    %p10 = scmp.ge.s32.totalorder %s9, 4
    %s16 = sphi 0, %s28
    %s17 = sphi 0, %s24
    %s18 = sphi 0, %s16
    %s19 = sphi 0, %s17
    %s20 = sphi 0, %s18
    %s21 = sphi 0, %s19
    %s31 = sphi 0, %s33
    %s34 = sphi 0, %s31
    %s35 = sphi 0, %s34
    %s51 = sphi 0, %s35
    %s55 = sphi 0, %s55
    %s57 = sphi 0, %s55
    %s58 = sphi 0, %s57
    %s72 = sphi 0, %s58
    %s76 = sphi 0, %s76
    %s78 = sphi 0, %s76
    %s79 = sphi 0, %s78
    %s93 = sphi 0, %s79
    %s101 = sphi 0, %s103
    %s104 = sphi 0, %s101
    %s105 = sphi 0, %s104
    %s121 = sphi 0, %s105
  $region4: #{vggnet1_conv_layer_forward.1} parent=0 // loop_header_branch
    %12 = sbr.rel (%p10) target = $region8
  $region5: #{vggnet1_conv_layer_forward.1} parent=0 // loop_body
    %s14 = ssub.s32 %s9, 1
    %s15 = ssub.s32 %s9, 2
    %s22 = sadd.s32 1, %s17
    %p23 = scmp.ge.s32.totalorder %s22, 1
    %s24 = scalar_select %p23, 0, %s22
    %s25 = sadd.s32 1, %s16
    %s26 = scalar_select %p23, %s25, %s16
    %p27 = scmp.ge.s32.totalorder %s26, 2
    %s28 = scalar_select %p27, 0, %s26
    %s29 = ssub.s32 %s16, %s28
    %p30 = scmp.eq.s32.totalorder %s29, 0
    %s32 = sadd.s32 %s31, 1
    %s33 = scalar_select %p30, %s31, %s32
    %p36 = pneg %p30
    %p37 = scmp.eq.s32.totalorder %s9, 1
    %p38 = por %p36, %p37
    %p39 = scmp.ne.s32.totalorder %s31, %s34
    %p40 = scmp.eq.s32.totalorder %s9, 0
    %p41 = por %p39, %p40
    %p42 = scmp.ne.s32.totalorder %s31, %s34
    %p43 = scmp.eq.s32.totalorder %s14, 1
    %p44 = por %p42, %p43
    %p45 = scmp.ne.s32.totalorder %s34, %s35
    %p46 = scmp.eq.s32.totalorder %s14, 0
    %p47 = por %p45, %p46
    %p48 = scmp.ne.s32.totalorder %s34, %s35
    %p49 = scmp.eq.s32.totalorder %s15, 1
    %p50 = por %p48, %p49
    %p52 = scmp.ne.s32.totalorder %s35, %s51
    %p53 = scmp.eq.s32.totalorder %s15, 0
    %p54 = por %p52, %p53
    %s56 = sadd.s32 %s55, 1
    %p59 = scmp.eq.s32.totalorder %s9, 1
    %p60 = scmp.ne.s32.totalorder %s55, %s57
    %p61 = scmp.eq.s32.totalorder %s9, 0
    %p62 = por %p60, %p61
    %p63 = scmp.ne.s32.totalorder %s55, %s57
    %p64 = scmp.eq.s32.totalorder %s14, 1
    %p65 = por %p63, %p64
    %p66 = scmp.ne.s32.totalorder %s57, %s58
    %p67 = scmp.eq.s32.totalorder %s14, 0
    %p68 = por %p66, %p67
    %p69 = scmp.ne.s32.totalorder %s57, %s58
    %p70 = scmp.eq.s32.totalorder %s15, 1
    %p71 = por %p69, %p70
    %p73 = scmp.ne.s32.totalorder %s58, %s72
    %p74 = scmp.eq.s32.totalorder %s15, 0
    %p75 = por %p73, %p74
    %s77 = sadd.s32 %s76, 1
    %p80 = scmp.eq.s32.totalorder %s9, 1
    %p81 = scmp.ne.s32.totalorder %s76, %s78
    %p82 = scmp.eq.s32.totalorder %s9, 0
    %p83 = por %p81, %p82
    %p84 = scmp.ne.s32.totalorder %s76, %s78
    %p85 = scmp.eq.s32.totalorder %s14, 1
    %p86 = por %p84, %p85
    %p87 = scmp.ne.s32.totalorder %s78, %s79
    %p88 = scmp.eq.s32.totalorder %s14, 0
    %p89 = por %p87, %p88
    %p90 = scmp.ne.s32.totalorder %s78, %s79
    %p91 = scmp.eq.s32.totalorder %s15, 1
    %p92 = por %p90, %p91
    %p94 = scmp.ne.s32.totalorder %s79, %s93
    %p95 = scmp.eq.s32.totalorder %s15, 0
    %p96 = por %p94, %p95
    %s97 = ssub.s32 %s16, %s28
    %s98 = ssub.s32 %s17, %s24
    %s99 = sor.u32 %s97, %s98
    %p100 = scmp.eq.s32.totalorder %s99, 0
    %s102 = sadd.s32 %s101, 1
    %s103 = scalar_select %p100, %s101, %s102
    %p106 = pneg %p100
    %p107 = scmp.eq.s32.totalorder %s9, 1
    %p108 = por %p106, %p107
    %p109 = scmp.ne.s32.totalorder %s101, %s104
    %p110 = scmp.eq.s32.totalorder %s9, 0
    %p111 = por %p109, %p110
    %p112 = scmp.ne.s32.totalorder %s101, %s104
    %p113 = scmp.eq.s32.totalorder %s14, 1
    %p114 = por %p112, %p113
    %p115 = scmp.ne.s32.totalorder %s104, %s105
    %p116 = scmp.eq.s32.totalorder %s14, 0
    %p117 = por %p115, %p116
    %p118 = scmp.ne.s32.totalorder %s104, %s105
    %p119 = scmp.eq.s32.totalorder %s15, 1
    %p120 = por %p118, %p119
    %p122 = scmp.ne.s32.totalorder %s105, %s121
    %p123 = scmp.eq.s32.totalorder %s15, 0
    %p124 = por %p122, %p123
    %p125 = scmp.le.s32.totalorder 1, %s9
    %p126 = scmp.lt.s32.totalorder %s9, 3
    %p127 = pnand %p125, %p126
    %p128 = pneg %p127
    // Predicated region
    $region9: #{vggnet1_conv_layer_forward.1} parent=5 // pred_check
      _
    $region10: #{vggnet1_conv_layer_forward.1} parent=5 // pred_check_branch
      %130 = sbr.rel (%p127) target = $region12
    $region11: #{vggnet1_conv_layer_forward.1} parent=5 // pred_region
      %s131 = ssub.s32 %s9, 1
      // Predicated region
      $region13: #{vggnet1_conv_layer_forward.1} parent=11 // pred_check
        %p132 = pneg %p68
      $region14: #{vggnet1_conv_layer_forward.1} parent=11 // pred_check_branch
        %134 = sbr.rel (%p132) target = $region16
      $region15: #{vggnet1_conv_layer_forward.1} parent=11 // pred_region
        _
      $region16: #{vggnet1_conv_layer_forward.1} parent=11 // pred_fallthru
        _
      // Predicated region
      $region17: #{vggnet1_conv_layer_forward.1} parent=11 // pred_check
        %p135 = pneg %p89
      $region18: #{vggnet1_conv_layer_forward.1} parent=11 // pred_check_branch
        %137 = sbr.rel (%p135) target = $region20
      $region19: #{vggnet1_conv_layer_forward.1} parent=11 // pred_region
        _
      $region20: #{vggnet1_conv_layer_forward.1} parent=11 // pred_fallthru
        _
    $region12: #{vggnet1_conv_layer_forward.1} parent=5 // pred_fallthru
      _
    %p138 = scmp.lt.s32.totalorder %s9, 2
    // Predicated region
    $region21: #{vggnet1_conv_layer_forward.1} parent=5 // pred_check
      %p139 = pneg %p138
    $region22: #{vggnet1_conv_layer_forward.1} parent=5 // pred_check_branch
      %141 = sbr.rel (%p139) target = $region24
    $region23: #{vggnet1_conv_layer_forward.1} parent=5 // pred_region
      // Predicated region
      $region25: #{vggnet1_conv_layer_forward.1} parent=23 // pred_check
        %p142 = pneg %p41
      $region26: #{vggnet1_conv_layer_forward.1} parent=23 // pred_check_branch
        %144 = sbr.rel (%p142) target = $region28
      $region27: #{vggnet1_conv_layer_forward.1} parent=23 // pred_region
        %p145 = scmp.lt.s32.totalorder %s16, 1
        %s146 = scalar_select %p145, %s16, 1
        %s147 = smul.addr %s146, 32
        %s148 = smul.addr %s147, 4
        %s149 = scalar_lea.vmem %s0, %s148
      $region28: #{vggnet1_conv_layer_forward.1} parent=23 // pred_fallthru
        _
    $region24: #{vggnet1_conv_layer_forward.1} parent=5 // pred_fallthru
      _
    %p150 = scmp.le.s32.totalorder 1, %s9
    %p151 = scmp.lt.s32.totalorder %s9, 3
    %p152 = pnand %p150, %p151
    %p153 = pneg %p152
    // Predicated region
    $region29: #{vggnet1_conv_layer_forward.1} parent=5 // pred_check
      _
    $region30: #{vggnet1_conv_layer_forward.1} parent=5 // pred_check_branch
      %155 = sbr.rel (%p152) target = $region32
    $region31: #{vggnet1_conv_layer_forward.1} parent=5 // pred_region
      %s156 = ssub.s32 %s9, 1
      %p157 = scmp.lt.s32.totalorder %s18, 1
      %s158 = scalar_select %p157, %s18, 1
      %s159 = smul.addr %s158, 32
      %s160 = smul.addr %s159, 4
      %s161 = scalar_lea.vmem %s0, %s160
      %p162 = pneg %p47
      %p163 = pneg %p44
      %p164 = pneg %p68
      %p165 = pneg %p65
      %p166 = pneg %p89
      %p167 = pneg %p86
      %p168 = pneg %p117
      %p169 = pneg %p114
      %p170 = scmp.lt.s32.totalorder %s18, 1
      %s171 = scalar_select %p170, %s18, 1
      %p172 = scmp.lt.s32.totalorder %s19, 0
      %s173 = scalar_select %p172, %s19, 0
      %s174 = smul.addr %s173, 2
      %s175 = smul.addr %s171, 2
      %s176 = sadd.s32 %s174, %s175
      %s177 = smul.addr %s176, 8
      %s178 = scalar_lea.vmem %s3, %s177
      %p179 = scmp.lt.s32.totalorder %s18, 1
      %s180 = scalar_select %p179, %s18, 1
      %s181 = smul.addr %s180, 32
      %s182 = smul.addr %s181, 4
      %s183 = scalar_lea.vmem %s0, %s182
      %p184 = scmp.lt.s32.totalorder %s18, 1
      %s185 = scalar_select %p184, %s18, 1
      %p186 = scmp.lt.s32.totalorder %s19, 0
      %s187 = scalar_select %p186, %s19, 0
      %s188 = smul.addr %s187, 2
      %s189 = smul.addr %s185, 2
      %s190 = sadd.s32 %s188, %s189
      %s191 = smul.addr %s190, 8
      %s192 = scalar_lea.vmem %s3, %s191
      %p194 = scmp.eq.s32.totalorder %s19, 0
      // Predicated region
      $region33: #{vggnet1_conv_layer_forward.1} parent=31 // pred_check
        %p195 = pneg %p194
      $region34: #{vggnet1_conv_layer_forward.1} parent=31 // pred_check_branch
        %197 = sbr.rel (%p195) target = $region36
      $region35: #{vggnet1_conv_layer_forward.1} parent=31 // pred_region
        %vm198 = vcmask 31744
        %199 = vst.msk [vmem:[#allocation2] sm:$0xff] %vm198, 0.0
        %200 = vst.msk [vmem:[#allocation2 + $0x8] sm:$0xff] %vm198, 0.0
        %vm201 = vcmask 25600
        %202 = vst.msk [vmem:[#allocation2 + $0x10] sm:$0x3] %vm201, 0.0
        %203 = vst.msk [vmem:[#allocation2 + $0x18] sm:$0xff] %vm198, 0.0
        %204 = vst.msk [vmem:[#allocation2 + $0x20] sm:$0xff] %vm198, 0.0
        %205 = vst.msk [vmem:[#allocation2 + $0x28] sm:$0x3] %vm201, 0.0
        %206 = vst.msk [vmem:[#allocation2 + $0x30] sm:$0xff] %vm198, 0.0
        %207 = vst.msk [vmem:[#allocation2 + $0x38] sm:$0xff] %vm198, 0.0
        %208 = vst.msk [vmem:[#allocation2 + $0x40] sm:$0x3] %vm201, 0.0
        %209 = vst.msk [vmem:[#allocation2 + $0x48] sm:$0xff] %vm198, 0.0
        %210 = vst.msk [vmem:[#allocation2 + $0x50] sm:$0xff] %vm198, 0.0
        %211 = vst.msk [vmem:[#allocation2 + $0x58] sm:$0x3] %vm201, 0.0
        %212 = vst.msk [vmem:[#allocation2 + $0x60] sm:$0xff] %vm198, 0.0
        %213 = vst.msk [vmem:[#allocation2 + $0x68] sm:$0xff] %vm198, 0.0
        %214 = vst.msk [vmem:[#allocation2 + $0x70] sm:$0x3] %vm201, 0.0
        %215 = vst.msk [vmem:[#allocation2 + $0x78] sm:$0xff] %vm198, 0.0
        %216 = vst.msk [vmem:[#allocation2 + $0x80] sm:$0xff] %vm198, 0.0
        %217 = vst.msk [vmem:[#allocation2 + $0x88] sm:$0x3] %vm201, 0.0
        %218 = vst.msk [vmem:[#allocation2 + $0x90] sm:$0xff] %vm198, 0.0
        %219 = vst.msk [vmem:[#allocation2 + $0x98] sm:$0xff] %vm198, 0.0
        %220 = vst.msk [vmem:[#allocation2 + $0xa0] sm:$0x3] %vm201, 0.0
        %221 = vst.msk [vmem:[#allocation2 + $0xa8] sm:$0xff] %vm198, 0.0
        %222 = vst.msk [vmem:[#allocation2 + $0xb0] sm:$0xff] %vm198, 0.0
        %223 = vst.msk [vmem:[#allocation2 + $0xb8] sm:$0x3] %vm201, 0.0
        %224 = vst.msk [vmem:[#allocation2 + $0xc0] sm:$0xff] %vm198, 0.0
        %225 = vst.msk [vmem:[#allocation2 + $0xc8] sm:$0xff] %vm198, 0.0
        %226 = vst.msk [vmem:[#allocation2 + $0xd0] sm:$0x3] %vm201, 0.0
        %227 = vst.msk [vmem:[#allocation2 + $0xd8] sm:$0xff] %vm198, 0.0
        %228 = vst.msk [vmem:[#allocation2 + $0xe0] sm:$0xff] %vm198, 0.0
        %229 = vst.msk [vmem:[#allocation2 + $0xe8] sm:$0x3] %vm201, 0.0
        %230 = vst.msk [vmem:[#allocation2 + $0xf0] sm:$0xff] %vm198, 0.0
        %231 = vst.msk [vmem:[#allocation2 + $0xf8] sm:$0xff] %vm198, 0.0
        %232 = vst.msk [vmem:[#allocation2 + $0x100] sm:$0x3] %vm201, 0.0
        %233 = vst.msk [vmem:[#allocation2 + $0x108] sm:$0xff] %vm198, 0.0
        %234 = vst.msk [vmem:[#allocation2 + $0x110] sm:$0xff] %vm198, 0.0
        %235 = vst.msk [vmem:[#allocation2 + $0x118] sm:$0x3] %vm201, 0.0
        %236 = vst.msk [vmem:[#allocation2 + $0x120] sm:$0xff] %vm198, 0.0
        %237 = vst.msk [vmem:[#allocation2 + $0x128] sm:$0xff] %vm198, 0.0
        %238 = vst.msk [vmem:[#allocation2 + $0x130] sm:$0x3] %vm201, 0.0
        %239 = vst.msk [vmem:[#allocation2 + $0x138] sm:$0xff] %vm198, 0.0
        %240 = vst.msk [vmem:[#allocation2 + $0x140] sm:$0xff] %vm198, 0.0
        %241 = vst.msk [vmem:[#allocation2 + $0x148] sm:$0x3] %vm201, 0.0
        %242 = vst.msk [vmem:[#allocation2 + $0x150] sm:$0xff] %vm198, 0.0
        %243 = vst.msk [vmem:[#allocation2 + $0x158] sm:$0xff] %vm198, 0.0
        %244 = vst.msk [vmem:[#allocation2 + $0x160] sm:$0x3] %vm201, 0.0
        %245 = vst.msk [vmem:[#allocation2 + $0x168] sm:$0xff] %vm198, 0.0
        %246 = vst.msk [vmem:[#allocation2 + $0x170] sm:$0xff] %vm198, 0.0
        %247 = vst.msk [vmem:[#allocation2 + $0x178] sm:$0x3] %vm201, 0.0
        %248 = vst.msk [vmem:[#allocation2 + $0x180] sm:$0xff] %vm198, 0.0
        %249 = vst.msk [vmem:[#allocation2 + $0x188] sm:$0xff] %vm198, 0.0
        %250 = vst.msk [vmem:[#allocation2 + $0x190] sm:$0x3] %vm201, 0.0
        %251 = vst.msk [vmem:[#allocation2 + $0x198] sm:$0xff] %vm198, 0.0
        %252 = vst.msk [vmem:[#allocation2 + $0x1a0] sm:$0xff] %vm198, 0.0
        %253 = vst.msk [vmem:[#allocation2 + $0x1a8] sm:$0x3] %vm201, 0.0
        %v254 = vld [vmem:[%s183] sm:$0xf]
        %v255 = vld [vmem:[%s183 + $0x4] sm:$0xf]
        %v256 = vld [vmem:[%s183 + $0x8] sm:$0xf]
        %v257 = vld [vmem:[%s183 + $0xc] sm:$0xf]
        %v258 = vld [vmem:[%s183 + $0x10] sm:$0xf]
        %v259 = vld [vmem:[%s183 + $0x14] sm:$0xf]
        %v260 = vld [vmem:[%s183 + $0x18] sm:$0xf]
        %v261 = vld [vmem:[%s183 + $0x1c] sm:$0xf]
        %v262 = vld [vmem:[%s183 + $0x20] sm:$0xf]
        %v263 = vld [vmem:[%s183 + $0x24] sm:$0xf]
        %v264 = vld [vmem:[%s183 + $0x28] sm:$0xf]
        %v265 = vld [vmem:[%s183 + $0x2c] sm:$0xf]
        %v266 = vld [vmem:[%s183 + $0x30] sm:$0xf]
        %v267 = vld [vmem:[%s183 + $0x34] sm:$0xf]
        %v268 = vld [vmem:[%s183 + $0x38] sm:$0xf]
        %v269 = vld [vmem:[%s183 + $0x3c] sm:$0xf]
        %v270 = vld [vmem:[%s183 + $0x40] sm:$0xf]
        %v271 = vld [vmem:[%s183 + $0x44] sm:$0xf]
        %v272 = vld [vmem:[%s183 + $0x48] sm:$0xf]
        %v273 = vld [vmem:[%s183 + $0x4c] sm:$0xf]
        %v274 = vld [vmem:[%s183 + $0x50] sm:$0xf]
        %v275 = vld [vmem:[%s183 + $0x54] sm:$0xf]
        %v276 = vld [vmem:[%s183 + $0x58] sm:$0xf]
        %v277 = vld [vmem:[%s183 + $0x5c] sm:$0xf]
        %v278 = vld [vmem:[%s183 + $0x60] sm:$0xf]
        %v279 = vld [vmem:[%s183 + $0x64] sm:$0xf]
        %v280 = vld [vmem:[%s183 + $0x68] sm:$0xf]
        %v281 = vld [vmem:[%s183 + $0x6c] sm:$0xf]
        %v282 = vld [vmem:[%s183 + $0x70] sm:$0xf]
        %v283 = vld [vmem:[%s183 + $0x74] sm:$0xf]
        %v284 = vld [vmem:[%s183 + $0x78] sm:$0xf]
        %v285 = vld [vmem:[%s183 + $0x7c] sm:$0xf]
        %v286 = vunpack.c.l.bf16 %v254
        %v287 = vunpack.c.l.bf16 %v255
        %v288 = vunpack.c.l.bf16 %v256
        %v289 = vunpack.c.l.bf16 %v257
        %v290 = vunpack.c.l.bf16 %v258
        %v291 = vunpack.c.l.bf16 %v259
        %v292 = vunpack.c.l.bf16 %v260
        %v293 = vunpack.c.l.bf16 %v261
        %v294 = vunpack.c.l.bf16 %v262
        %v295 = vunpack.c.l.bf16 %v263
        %v296 = vunpack.c.l.bf16 %v264
        %v297 = vunpack.c.l.bf16 %v265
        %v298 = vunpack.c.l.bf16 %v266
        %v299 = vunpack.c.l.bf16 %v267
        %v300 = vunpack.c.l.bf16 %v268
        %v301 = vunpack.c.l.bf16 %v269
        %v302 = vunpack.c.l.bf16 %v270
        %v303 = vunpack.c.l.bf16 %v271
        %v304 = vunpack.c.l.bf16 %v272
        %v305 = vunpack.c.l.bf16 %v273
        %v306 = vunpack.c.l.bf16 %v274
        %v307 = vunpack.c.l.bf16 %v275
        %v308 = vunpack.c.l.bf16 %v276
        %v309 = vunpack.c.l.bf16 %v277
        %v310 = vunpack.c.l.bf16 %v278
        %v311 = vunpack.c.l.bf16 %v279
        %v312 = vunpack.c.l.bf16 %v280
        %v313 = vunpack.c.l.bf16 %v281
        %v314 = vunpack.c.l.bf16 %v282
        %v315 = vunpack.c.l.bf16 %v283
        %v316 = vunpack.c.l.bf16 %v284
        %v317 = vunpack.c.l.bf16 %v285
        %s318 = scalar_lea.vmem [#allocation2], 24
        %319 = vst.msk [vmem:[%s318 + $0x1] sm:$0xff] %vm198, %v286
        %320 = vst.msk [vmem:[%s318 + $0x9] sm:$0xff] %vm198, %v287
        %321 = vst.msk [vmem:[%s318 + $0x19] sm:$0xff] %vm198, %v288
        %322 = vst.msk [vmem:[%s318 + $0x21] sm:$0xff] %vm198, %v289
        %323 = vst.msk [vmem:[%s318 + $0x31] sm:$0xff] %vm198, %v290
        %324 = vst.msk [vmem:[%s318 + $0x39] sm:$0xff] %vm198, %v291
        %325 = vst.msk [vmem:[%s318 + $0x49] sm:$0xff] %vm198, %v292
        %326 = vst.msk [vmem:[%s318 + $0x51] sm:$0xff] %vm198, %v293
        %327 = vst.msk [vmem:[%s318 + $0x61] sm:$0xff] %vm198, %v294
        %328 = vst.msk [vmem:[%s318 + $0x69] sm:$0xff] %vm198, %v295
        %329 = vst.msk [vmem:[%s318 + $0x79] sm:$0xff] %vm198, %v296
        %330 = vst.msk [vmem:[%s318 + $0x81] sm:$0xff] %vm198, %v297
        %331 = vst.msk [vmem:[%s318 + $0x91] sm:$0xff] %vm198, %v298
        %332 = vst.msk [vmem:[%s318 + $0x99] sm:$0xff] %vm198, %v299
        %333 = vst.msk [vmem:[%s318 + $0xa9] sm:$0xff] %vm198, %v300
        %334 = vst.msk [vmem:[%s318 + $0xb1] sm:$0xff] %vm198, %v301
        %335 = vst.msk [vmem:[%s318 + $0xc1] sm:$0xff] %vm198, %v302
        %336 = vst.msk [vmem:[%s318 + $0xc9] sm:$0xff] %vm198, %v303
        %337 = vst.msk [vmem:[%s318 + $0xd9] sm:$0xff] %vm198, %v304
        %338 = vst.msk [vmem:[%s318 + $0xe1] sm:$0xff] %vm198, %v305
        %339 = vst.msk [vmem:[%s318 + $0xf1] sm:$0xff] %vm198, %v306
        %340 = vst.msk [vmem:[%s318 + $0xf9] sm:$0xff] %vm198, %v307
        %341 = vst.msk [vmem:[%s318 + $0x109] sm:$0xff] %vm198, %v308
        %342 = vst.msk [vmem:[%s318 + $0x111] sm:$0xff] %vm198, %v309
        %343 = vst.msk [vmem:[%s318 + $0x121] sm:$0xff] %vm198, %v310
        %344 = vst.msk [vmem:[%s318 + $0x129] sm:$0xff] %vm198, %v311
        %345 = vst.msk [vmem:[%s318 + $0x139] sm:$0xff] %vm198, %v312
        %346 = vst.msk [vmem:[%s318 + $0x141] sm:$0xff] %vm198, %v313
        %347 = vst.msk [vmem:[%s318 + $0x151] sm:$0xff] %vm198, %v314
        %348 = vst.msk [vmem:[%s318 + $0x159] sm:$0xff] %vm198, %v315
        %349 = vst.msk [vmem:[%s318 + $0x169] sm:$0xff] %vm198, %v316
        %350 = vst.msk [vmem:[%s318 + $0x171] sm:$0xff] %vm198, %v317
      $region36: #{vggnet1_conv_layer_forward.1} parent=31 // pred_fallthru
        _
      %s351 = smul.u32 %s19, 16
      %v352 = vld [vmem:[%s1] sm:$0xf]
      %v353 = vld [vmem:[%s1 + $0x4] sm:$0xf]
      %v354 = vld [vmem:[%s1 + $0x8] sm:$0xf]
      %v355 = vld [vmem:[%s1 + $0xc] sm:$0xf]
      %v356 = vld [vmem:[%s1 + $0x10] sm:$0x3]
      %v357 = vld [vmem:[%s2] sm:$0x1]
      %s358 = smul.u32 %s351, 24
      %s359 = scalar_lea.vmem [#allocation2], %s358
      %v360 = vld [vmem:[%s359] sm:$0xff]
      %v361 = vld [vmem:[%s359 + $0x8] sm:$0xff]
      %v362 = vld [vmem:[%s359 + $0x10] sm:$0x3]
      %v363 = vld [vmem:[%s359 + $0x18] sm:$0xff]
      %v364 = vld [vmem:[%s359 + $0x20] sm:$0xff]
      %v365 = vld [vmem:[%s359 + $0x28] sm:$0x3]
      %v366 = vld [vmem:[%s359 + $0x30] sm:$0xff]
      %v367 = vld [vmem:[%s359 + $0x38] sm:$0xff]
      %v368 = vld [vmem:[%s359 + $0x40] sm:$0x3]
      %v369 = vld [vmem:[%s359 + $0x48] sm:$0xff]
      %v370 = vld [vmem:[%s359 + $0x50] sm:$0xff]
      %v371 = vld [vmem:[%s359 + $0x58] sm:$0x3]
      %v372 = vld [vmem:[%s359 + $0x60] sm:$0xff]
      %v373 = vld [vmem:[%s359 + $0x68] sm:$0xff]
      %v374 = vld [vmem:[%s359 + $0x70] sm:$0x3]
      %v375 = vld [vmem:[%s359 + $0x78] sm:$0xff]
      %v376 = vld [vmem:[%s359 + $0x80] sm:$0xff]
      %v377 = vld [vmem:[%s359 + $0x88] sm:$0x3]
      %v378 = vld [vmem:[%s359 + $0x90] sm:$0xff]
      %v379 = vld [vmem:[%s359 + $0x98] sm:$0xff]
      %v380 = vld [vmem:[%s359 + $0xa0] sm:$0x3]
      %v381 = vld [vmem:[%s359 + $0xa8] sm:$0xff]
      %v382 = vld [vmem:[%s359 + $0xb0] sm:$0xff]
      %v383 = vld [vmem:[%s359 + $0xb8] sm:$0x3]
      %v384 = vld [vmem:[%s359 + $0xc0] sm:$0xff]
      %v385 = vld [vmem:[%s359 + $0xc8] sm:$0xff]
      %v386 = vld [vmem:[%s359 + $0xd0] sm:$0x3]
      %v387 = vld [vmem:[%s359 + $0xd8] sm:$0xff]
      %v388 = vld [vmem:[%s359 + $0xe0] sm:$0xff]
      %v389 = vld [vmem:[%s359 + $0xe8] sm:$0x3]
      %v390 = vld [vmem:[%s359 + $0xf0] sm:$0xff]
      %v391 = vld [vmem:[%s359 + $0xf8] sm:$0xff]
      %v392 = vld [vmem:[%s359 + $0x100] sm:$0x3]
      %v393 = vld [vmem:[%s359 + $0x108] sm:$0xff]
      %v394 = vld [vmem:[%s359 + $0x110] sm:$0xff]
      %v395 = vld [vmem:[%s359 + $0x118] sm:$0x3]
      %v396 = vld [vmem:[%s359 + $0x120] sm:$0xff]
      %v397 = vld [vmem:[%s359 + $0x128] sm:$0xff]
      %v398 = vld [vmem:[%s359 + $0x130] sm:$0x3]
      %v399 = vld [vmem:[%s359 + $0x138] sm:$0xff]
      %v400 = vld [vmem:[%s359 + $0x140] sm:$0xff]
      %v401 = vld [vmem:[%s359 + $0x148] sm:$0x3]
      %v402 = vld [vmem:[%s359 + $0x150] sm:$0xff]
      %v403 = vld [vmem:[%s359 + $0x158] sm:$0xff]
      %v404 = vld [vmem:[%s359 + $0x160] sm:$0x3]
      %v405 = vld [vmem:[%s359 + $0x168] sm:$0xff]
      %v406 = vld [vmem:[%s359 + $0x170] sm:$0xff]
      %v407 = vld [vmem:[%s359 + $0x178] sm:$0x3]
      %v408 = vld [vmem:[%s359 + $0x180] sm:$0xff]
      %v409 = vld [vmem:[%s359 + $0x188] sm:$0xff]
      %v410 = vld [vmem:[%s359 + $0x190] sm:$0x3]
      %v411 = vld [vmem:[%s359 + $0x198] sm:$0xff]
      %v412 = vld [vmem:[%s359 + $0x1a0] sm:$0xff]
      %v413 = vld [vmem:[%s359 + $0x1a8] sm:$0x3]
      %v414 = vpack.c.bf16 %v361, %v360
      %v415 = vpack.c.bf16 %v364, %v363
      %v416 = vpack.c.bf16 %v367, %v366
      %v417 = vpack.c.bf16 %v370, %v369
      %v418 = vpack.c.bf16 %v373, %v372
      %v419 = vpack.c.bf16 %v376, %v375
      %v420 = vpack.c.bf16 %v379, %v378
      %v421 = vpack.c.bf16 %v382, %v381
      %v422 = vpack.c.bf16 %v385, %v384
      %v423 = vpack.c.bf16 %v388, %v387
      %v424 = vpack.c.bf16 %v391, %v390
      %v425 = vpack.c.bf16 %v394, %v393
      %v426 = vpack.c.bf16 %v397, %v396
      %v427 = vpack.c.bf16 %v400, %v399
      %v428 = vpack.c.bf16 %v403, %v402
      %v429 = vpack.c.bf16 %v406, %v405
      %vm478 = vcmask 1046528
      %v479 = vrot.slane %v360, 1
      %v480 = vrot.slane %v361, 1
      %v481 = vsel %vm478, %v479, %v480
      %v482 = vrot.slane %v362, 1
      %v483 = vsel %vm478, %v480, %v482
      %v484 = vrot.slane %v363, 1
      %v485 = vrot.slane %v364, 1
      %v486 = vsel %vm478, %v484, %v485
      %v487 = vrot.slane %v365, 1
      %v488 = vsel %vm478, %v485, %v487
      %v489 = vrot.slane %v366, 1
      %v490 = vrot.slane %v367, 1
      %v491 = vsel %vm478, %v489, %v490
      %v492 = vrot.slane %v368, 1
      %v493 = vsel %vm478, %v490, %v492
      %v494 = vrot.slane %v369, 1
      %v495 = vrot.slane %v370, 1
      %v496 = vsel %vm478, %v494, %v495
      %v497 = vrot.slane %v371, 1
      %v498 = vsel %vm478, %v495, %v497
      %v499 = vrot.slane %v372, 1
      %v500 = vrot.slane %v373, 1
      %v501 = vsel %vm478, %v499, %v500
      %v502 = vrot.slane %v374, 1
      %v503 = vsel %vm478, %v500, %v502
      %v504 = vrot.slane %v375, 1
      %v505 = vrot.slane %v376, 1
      %v506 = vsel %vm478, %v504, %v505
      %v507 = vrot.slane %v377, 1
      %v508 = vsel %vm478, %v505, %v507
      %v509 = vrot.slane %v378, 1
      %v510 = vrot.slane %v379, 1
      %v511 = vsel %vm478, %v509, %v510
      %v512 = vrot.slane %v380, 1
      %v513 = vsel %vm478, %v510, %v512
      %v514 = vrot.slane %v381, 1
      %v515 = vrot.slane %v382, 1
      %v516 = vsel %vm478, %v514, %v515
      %v517 = vrot.slane %v383, 1
      %v518 = vsel %vm478, %v515, %v517
      %v519 = vrot.slane %v384, 1
      %v520 = vrot.slane %v385, 1
      %v521 = vsel %vm478, %v519, %v520
      %v522 = vrot.slane %v386, 1
      %v523 = vsel %vm478, %v520, %v522
      %v524 = vrot.slane %v387, 1
      %v525 = vrot.slane %v388, 1
      %v526 = vsel %vm478, %v524, %v525
      %v527 = vrot.slane %v389, 1
      %v528 = vsel %vm478, %v525, %v527
      %v529 = vrot.slane %v390, 1
      %v530 = vrot.slane %v391, 1
      %v531 = vsel %vm478, %v529, %v530
      %v532 = vrot.slane %v392, 1
      %v533 = vsel %vm478, %v530, %v532
      %v534 = vrot.slane %v393, 1
      %v535 = vrot.slane %v394, 1
      %v536 = vsel %vm478, %v534, %v535
      %v537 = vrot.slane %v395, 1
      %v538 = vsel %vm478, %v535, %v537
      %v539 = vrot.slane %v396, 1
      %v540 = vrot.slane %v397, 1
      %v541 = vsel %vm478, %v539, %v540
      %v542 = vrot.slane %v398, 1
      %v543 = vsel %vm478, %v540, %v542
      %v544 = vrot.slane %v399, 1
      %v545 = vrot.slane %v400, 1
      %v546 = vsel %vm478, %v544, %v545
      %v547 = vrot.slane %v401, 1
      %v548 = vsel %vm478, %v545, %v547
      %v549 = vrot.slane %v402, 1
      %v550 = vrot.slane %v403, 1
      %v551 = vsel %vm478, %v549, %v550
      %v552 = vrot.slane %v404, 1
      %v553 = vsel %vm478, %v550, %v552
      %v554 = vrot.slane %v405, 1
      %v555 = vrot.slane %v406, 1
      %v556 = vsel %vm478, %v554, %v555
      %v557 = vrot.slane %v407, 1
      %v558 = vsel %vm478, %v555, %v557
      %v591 = vpack.c.bf16 %v483, %v481
      %v592 = vpack.c.bf16 %v488, %v486
      %v593 = vpack.c.bf16 %v493, %v491
      %v594 = vpack.c.bf16 %v498, %v496
      %v595 = vpack.c.bf16 %v503, %v501
      %v596 = vpack.c.bf16 %v508, %v506
      %v597 = vpack.c.bf16 %v513, %v511
      %v598 = vpack.c.bf16 %v518, %v516
      %v599 = vpack.c.bf16 %v523, %v521
      %v600 = vpack.c.bf16 %v528, %v526
      %v601 = vpack.c.bf16 %v533, %v531
      %v602 = vpack.c.bf16 %v538, %v536
      %v603 = vpack.c.bf16 %v543, %v541
      %v604 = vpack.c.bf16 %v548, %v546
      %v605 = vpack.c.bf16 %v553, %v551
      %v606 = vpack.c.bf16 %v558, %v556
      %v608 = vunpack.c.l.b16 %v352
      %v609 = vpack.c.b16 %v608, %v608
      %v610 = vrot.slane %v609, 2
      %vm611 = vcmask 31744
      %v613 = vsel %vm611, %v591, 0
      %v616 = vsel %vm611, %v592, 0
      %v619 = vsel %vm611, %v593, 0
      %v622 = vsel %vm611, %v594, 0
      %v625 = vsel %vm611, %v595, 0
      %v628 = vsel %vm611, %v596, 0
      %v631 = vsel %vm611, %v597, 0
      %v634 = vsel %vm611, %v598, 0
      %v637 = vsel %vm611, %v599, 0
      %v640 = vsel %vm611, %v600, 0
      %v643 = vsel %vm611, %v601, 0
      %v646 = vsel %vm611, %v602, 0
      %v649 = vsel %vm611, %v603, 0
      %v652 = vsel %vm611, %v604, 0
      %v655 = vsel %vm611, %v605, 0
      %v658 = vsel %vm611, %v606, 0
      %vm660 = vcmask 1041408
      %v662 = vsel %vm660, %v610, 0
      %664 = vmatprep.subr.bf16.mxu0 0
      %665 = vmatpush1.bf16.msra.mxu0 %v662
      %666 = vmatprep.subr.bf16.mxu0 0
      %667 = vmatpush1.bf16.msra.mxu0 0
      %668 = vmatprep.subr.bf16.mxu0 0
      %669 = vmatpush1.bf16.msra.mxu0 0
      %670 = vmatprep.subr.bf16.mxu0 0
      %671 = vmatpush1.bf16.msra.mxu0 0
      %672 = vmatprep.subr.bf16.mxu0 0
      %673 = vmatpush1.bf16.msra.mxu0 0
      %674 = vmatprep.subr.bf16.mxu0 0
      %675 = vmatpush1.bf16.msra.mxu0 0
      %676 = vmatprep.subr.bf16.mxu0 0
      %677 = vmatpush1.bf16.msra.mxu0 0
      %678 = vmatprep.subr.bf16.mxu0 0
      %679 = vmatpush1.bf16.msra.mxu0 0
      %680 = vmatprep.subr.bf16.mxu0 0
      %681 = vmatpush1.bf16.msra.mxu0 0
      %682 = vmatprep.subr.bf16.mxu0 0
      %683 = vmatpush1.bf16.msra.mxu0 0
      %684 = vmatprep.subr.bf16.mxu0 0
      %685 = vmatpush1.bf16.msra.mxu0 0
      %686 = vmatprep.subr.bf16.mxu0 0
      %687 = vmatpush1.bf16.msra.mxu0 0
      %688 = vmatprep.subr.bf16.mxu0 0
      %689 = vmatpush1.bf16.msra.mxu0 0
      %690 = vmatprep.subr.bf16.mxu0 0
      %691 = vmatpush1.bf16.msra.mxu0 0
      %692 = vmatprep.subr.bf16.mxu0 0
      %693 = vmatpush1.bf16.msra.mxu0 0
      %694 = vmatprep.subr.bf16.mxu0 0
      %695 = vmatpush1.bf16.msra.mxu0 0
      %696 = vmatprep.mubr.bf16.mxu0 0
      %697 = vmatmul.mubr.bf16.gmra.mrb[0].mxu0 %v613
      %v698 = vpop.f32.mrb[0].mxu0
      %v699 = vadd.f32 0.0, %v698
      %v700 = vpop.f32.mrb[0].mxu0
      %v701 = vpop.f32.mrb[0].mxu0
      %v702 = vadd.f32 0.0, %v701
      %v703 = vpop.f32.mrb[0].mxu0
      %704 = vmatprep.mubr.bf16.mxu0 0
      %705 = vmatmul.mubr.bf16.gmra.mrb[0].mxu0 %v616
      %v706 = vpop.f32.mrb[0].mxu0
      %v707 = vadd.f32 0.0, %v706
      %v708 = vpop.f32.mrb[0].mxu0
      %v709 = vpop.f32.mrb[0].mxu0
      %v710 = vadd.f32 0.0, %v709
      %v711 = vpop.f32.mrb[0].mxu0
      %712 = vmatprep.mubr.bf16.mxu0 0
      %713 = vmatmul.mubr.bf16.gmra.mrb[0].mxu0 %v619
      %v714 = vpop.f32.mrb[0].mxu0
      %v715 = vadd.f32 0.0, %v714
      %v716 = vpop.f32.mrb[0].mxu0
      %v717 = vpop.f32.mrb[0].mxu0
      %v718 = vadd.f32 0.0, %v717
      %v719 = vpop.f32.mrb[0].mxu0
      %720 = vmatprep.mubr.bf16.mxu0 0
      %721 = vmatmul.mubr.bf16.gmra.mrb[0].mxu0 %v622
      %v722 = vpop.f32.mrb[0].mxu0
      %v723 = vadd.f32 0.0, %v722
      %v724 = vpop.f32.mrb[0].mxu0
      %v725 = vpop.f32.mrb[0].mxu0
      %v726 = vadd.f32 0.0, %v725
      %v727 = vpop.f32.mrb[0].mxu0
      %728 = vmatprep.mubr.bf16.mxu0 0
      %729 = vmatmul.mubr.bf16.gmra.mrb[0].mxu0 %v625
      %v730 = vpop.f32.mrb[0].mxu0
      %v731 = vadd.f32 0.0, %v730
      %v732 = vpop.f32.mrb[0].mxu0
      %v733 = vpop.f32.mrb[0].mxu0
      %v734 = vadd.f32 0.0, %v733
      %v735 = vpop.f32.mrb[0].mxu0
      %736 = vmatprep.mubr.bf16.mxu0 0
      %737 = vmatmul.mubr.bf16.gmra.mrb[0].mxu0 %v628
      %v738 = vpop.f32.mrb[0].mxu0
      %v739 = vadd.f32 0.0, %v738
      %v740 = vpop.f32.mrb[0].mxu0
      %v741 = vpop.f32.mrb[0].mxu0
      %v742 = vadd.f32 0.0, %v741
      %v743 = vpop.f32.mrb[0].mxu0
      %744 = vmatprep.mubr.bf16.mxu0 0
      %745 = vmatmul.mubr.bf16.gmra.mrb[0].mxu0 %v631
      %v746 = vpop.f32.mrb[0].mxu0
      %v747 = vadd.f32 0.0, %v746
      %v748 = vpop.f32.mrb[0].mxu0
      %v749 = vpop.f32.mrb[0].mxu0
      %v750 = vadd.f32 0.0, %v749
      %v751 = vpop.f32.mrb[0].mxu0
      %752 = vmatprep.mubr.bf16.mxu0 0
      %753 = vmatmul.mubr.bf16.gmra.mrb[0].mxu0 %v634
      %v754 = vpop.f32.mrb[0].mxu0
      %v755 = vadd.f32 0.0, %v754
      %v756 = vpop.f32.mrb[0].mxu0
      %v757 = vpop.f32.mrb[0].mxu0
      %v758 = vadd.f32 0.0, %v757
      %v759 = vpop.f32.mrb[0].mxu0
      %760 = vmatprep.mubr.bf16.mxu0 0
      %761 = vmatmul.mubr.bf16.gmra.mrb[0].mxu0 %v637
      %v762 = vpop.f32.mrb[0].mxu0
      %v763 = vadd.f32 0.0, %v762
      %v764 = vpop.f32.mrb[0].mxu0
      %v765 = vpop.f32.mrb[0].mxu0
      %v766 = vadd.f32 0.0, %v765
      %v767 = vpop.f32.mrb[0].mxu0
      %768 = vmatprep.mubr.bf16.mxu0 0
      %769 = vmatmul.mubr.bf16.gmra.mrb[0].mxu0 %v640
      %v770 = vpop.f32.mrb[0].mxu0
      %v771 = vadd.f32 0.0, %v770
      %v772 = vpop.f32.mrb[0].mxu0
      %v773 = vpop.f32.mrb[0].mxu0
      %v774 = vadd.f32 0.0, %v773
      %v775 = vpop.f32.mrb[0].mxu0
      %776 = vmatprep.mubr.bf16.mxu0 0
      %777 = vmatmul.mubr.bf16.gmra.mrb[0].mxu0 %v643
      %v778 = vpop.f32.mrb[0].mxu0
      %v779 = vadd.f32 0.0, %v778
      %v780 = vpop.f32.mrb[0].mxu0
      %v781 = vpop.f32.mrb[0].mxu0
      %v782 = vadd.f32 0.0, %v781
      %v783 = vpop.f32.mrb[0].mxu0
      %784 = vmatprep.mubr.bf16.mxu0 0
      %785 = vmatmul.mubr.bf16.gmra.mrb[0].mxu0 %v646
      %v786 = vpop.f32.mrb[0].mxu0
      %v787 = vadd.f32 0.0, %v786
      %v788 = vpop.f32.mrb[0].mxu0
      %v789 = vpop.f32.mrb[0].mxu0
      %v790 = vadd.f32 0.0, %v789
      %v791 = vpop.f32.mrb[0].mxu0
      %792 = vmatprep.mubr.bf16.mxu0 0
      %793 = vmatmul.mubr.bf16.gmra.mrb[0].mxu0 %v649
      %v794 = vpop.f32.mrb[0].mxu0
      %v795 = vadd.f32 0.0, %v794
      %v796 = vpop.f32.mrb[0].mxu0
      %v797 = vpop.f32.mrb[0].mxu0
      %v798 = vadd.f32 0.0, %v797
      %v799 = vpop.f32.mrb[0].mxu0
      %800 = vmatprep.mubr.bf16.mxu0 0
      %801 = vmatmul.mubr.bf16.gmra.mrb[0].mxu0 %v652
      %v802 = vpop.f32.mrb[0].mxu0
      %v803 = vadd.f32 0.0, %v802
      %v804 = vpop.f32.mrb[0].mxu0
      %v805 = vpop.f32.mrb[0].mxu0
      %v806 = vadd.f32 0.0, %v805
      %v807 = vpop.f32.mrb[0].mxu0
      %808 = vmatprep.mubr.bf16.mxu0 0
      %809 = vmatmul.mubr.bf16.gmra.mrb[0].mxu0 %v655
      %v810 = vpop.f32.mrb[0].mxu0
      %v811 = vadd.f32 0.0, %v810
      %v812 = vpop.f32.mrb[0].mxu0
      %v813 = vpop.f32.mrb[0].mxu0
      %v814 = vadd.f32 0.0, %v813
      %v815 = vpop.f32.mrb[0].mxu0
      %816 = vmatprep.mubr.bf16.mxu0 0
      %817 = vmatmul.mubr.bf16.gmra.mrb[0].mxu0 %v658
      %v818 = vpop.f32.mrb[0].mxu0
      %v819 = vadd.f32 0.0, %v818
      %v820 = vpop.f32.mrb[0].mxu0
      %v821 = vpop.f32.mrb[0].mxu0
      %v822 = vadd.f32 0.0, %v821
      %v823 = vpop.f32.mrb[0].mxu0
      %824 = vdwg.mxu0
      %v826 = vsel %vm611, %v414, 0
      %v829 = vsel %vm611, %v415, 0
      %v832 = vsel %vm611, %v416, 0
      %v835 = vsel %vm611, %v417, 0
      %v838 = vsel %vm611, %v418, 0
      %v841 = vsel %vm611, %v419, 0
      %v844 = vsel %vm611, %v420, 0
      %v847 = vsel %vm611, %v421, 0
      %v850 = vsel %vm611, %v422, 0
      %v853 = vsel %vm611, %v423, 0
      %v856 = vsel %vm611, %v424, 0
      %v859 = vsel %vm611, %v425, 0
      %v862 = vsel %vm611, %v426, 0
      %v865 = vsel %vm611, %v427, 0
      %v868 = vsel %vm611, %v428, 0
      %v871 = vsel %vm611, %v429, 0
      %v874 = vsel %vm660, %v352, 0
      %876 = vmatprep.subr.bf16.mxu0 0
      %877 = vmatpush1.bf16.msra.mxu0 %v874
      %878 = vmatprep.subr.bf16.mxu0 0
      %879 = vmatpush1.bf16.msra.mxu0 0
      %880 = vmatprep.subr.bf16.mxu0 0
      %881 = vmatpush1.bf16.msra.mxu0 0
      %882 = vmatprep.subr.bf16.mxu0 0
      %883 = vmatpush1.bf16.msra.mxu0 0
      %884 = vmatprep.subr.bf16.mxu0 0
      %885 = vmatpush1.bf16.msra.mxu0 0
      %886 = vmatprep.subr.bf16.mxu0 0
      %887 = vmatpush1.bf16.msra.mxu0 0
      %888 = vmatprep.subr.bf16.mxu0 0
      %889 = vmatpush1.bf16.msra.mxu0 0
      %890 = vmatprep.subr.bf16.mxu0 0
      %891 = vmatpush1.bf16.msra.mxu0 0
      %892 = vmatprep.subr.bf16.mxu0 0
      %893 = vmatpush1.bf16.msra.mxu0 0
      %894 = vmatprep.subr.bf16.mxu0 0
      %895 = vmatpush1.bf16.msra.mxu0 0
      %896 = vmatprep.subr.bf16.mxu0 0
      %897 = vmatpush1.bf16.msra.mxu0 0
      %898 = vmatprep.subr.bf16.mxu0 0
      %899 = vmatpush1.bf16.msra.mxu0 0
      %900 = vmatprep.subr.bf16.mxu0 0
      %901 = vmatpush1.bf16.msra.mxu0 0
      %902 = vmatprep.subr.bf16.mxu0 0
      %903 = vmatpush1.bf16.msra.mxu0 0
      %904 = vmatprep.subr.bf16.mxu0 0
      %905 = vmatpush1.bf16.msra.mxu0 0
      %906 = vmatprep.subr.bf16.mxu0 0
      %907 = vmatpush1.bf16.msra.mxu0 0
      %908 = vmatprep.mubr.bf16.mxu0 0
      %909 = vmatmul.mubr.bf16.gmra.mrb[0].mxu0 %v826
      %v910 = vpop.f32.mrb[0].mxu0
      %v911 = vadd.f32 %v699, %v910
      %v912 = vpop.f32.mrb[0].mxu0
      %v913 = vpop.f32.mrb[0].mxu0
      %v914 = vadd.f32 %v702, %v913
      %v915 = vpop.f32.mrb[0].mxu0
      %916 = vmatprep.mubr.bf16.mxu0 0
      %917 = vmatmul.mubr.bf16.gmra.mrb[0].mxu0 %v829
      %v918 = vpop.f32.mrb[0].mxu0
      %v919 = vadd.f32 %v707, %v918
      %v920 = vpop.f32.mrb[0].mxu0
      %v921 = vpop.f32.mrb[0].mxu0
      %v922 = vadd.f32 %v710, %v921
      %v923 = vpop.f32.mrb[0].mxu0
      %924 = vmatprep.mubr.bf16.mxu0 0
      %925 = vmatmul.mubr.bf16.gmra.mrb[0].mxu0 %v832
      %v926 = vpop.f32.mrb[0].mxu0
      %v927 = vadd.f32 %v715, %v926
      %v928 = vpop.f32.mrb[0].mxu0
      %v929 = vpop.f32.mrb[0].mxu0
      %v930 = vadd.f32 %v718, %v929
      %v931 = vpop.f32.mrb[0].mxu0
      %932 = vmatprep.mubr.bf16.mxu0 0
      %933 = vmatmul.mubr.bf16.gmra.mrb[0].mxu0 %v835
      %v934 = vpop.f32.mrb[0].mxu0
      %v935 = vadd.f32 %v723, %v934
      %v936 = vpop.f32.mrb[0].mxu0
      %v937 = vpop.f32.mrb[0].mxu0
      %v938 = vadd.f32 %v726, %v937
      %v939 = vpop.f32.mrb[0].mxu0
      %940 = vmatprep.mubr.bf16.mxu0 0
      %941 = vmatmul.mubr.bf16.gmra.mrb[0].mxu0 %v838
      %v942 = vpop.f32.mrb[0].mxu0
      %v943 = vadd.f32 %v731, %v942
      %v944 = vpop.f32.mrb[0].mxu0
      %v945 = vpop.f32.mrb[0].mxu0
      %v946 = vadd.f32 %v734, %v945
      %v947 = vpop.f32.mrb[0].mxu0
      %948 = vmatprep.mubr.bf16.mxu0 0
      %949 = vmatmul.mubr.bf16.gmra.mrb[0].mxu0 %v841
      %v950 = vpop.f32.mrb[0].mxu0
      %v951 = vadd.f32 %v739, %v950
      %v952 = vpop.f32.mrb[0].mxu0
      %v953 = vpop.f32.mrb[0].mxu0
      %v954 = vadd.f32 %v742, %v953
      %v955 = vpop.f32.mrb[0].mxu0
      %956 = vmatprep.mubr.bf16.mxu0 0
      %957 = vmatmul.mubr.bf16.gmra.mrb[0].mxu0 %v844
      %v958 = vpop.f32.mrb[0].mxu0
      %v959 = vadd.f32 %v747, %v958
      %v960 = vpop.f32.mrb[0].mxu0
      %v961 = vpop.f32.mrb[0].mxu0
      %v962 = vadd.f32 %v750, %v961
      %v963 = vpop.f32.mrb[0].mxu0
      %964 = vmatprep.mubr.bf16.mxu0 0
      %965 = vmatmul.mubr.bf16.gmra.mrb[0].mxu0 %v847
      %v966 = vpop.f32.mrb[0].mxu0
      %v967 = vadd.f32 %v755, %v966
      %v968 = vpop.f32.mrb[0].mxu0
      %v969 = vpop.f32.mrb[0].mxu0
      %v970 = vadd.f32 %v758, %v969
      %v971 = vpop.f32.mrb[0].mxu0
      %972 = vmatprep.mubr.bf16.mxu0 0
      %973 = vmatmul.mubr.bf16.gmra.mrb[0].mxu0 %v850
      %v974 = vpop.f32.mrb[0].mxu0
      %v975 = vadd.f32 %v763, %v974
      %v976 = vpop.f32.mrb[0].mxu0
      %v977 = vpop.f32.mrb[0].mxu0
      %v978 = vadd.f32 %v766, %v977
      %v979 = vpop.f32.mrb[0].mxu0
      %980 = vmatprep.mubr.bf16.mxu0 0
      %981 = vmatmul.mubr.bf16.gmra.mrb[0].mxu0 %v853
      %v982 = vpop.f32.mrb[0].mxu0
      %v983 = vadd.f32 %v771, %v982
      %v984 = vpop.f32.mrb[0].mxu0
      %v985 = vpop.f32.mrb[0].mxu0
      %v986 = vadd.f32 %v774, %v985
      %v987 = vpop.f32.mrb[0].mxu0
      %988 = vmatprep.mubr.bf16.mxu0 0
      %989 = vmatmul.mubr.bf16.gmra.mrb[0].mxu0 %v856
      %v990 = vpop.f32.mrb[0].mxu0
      %v991 = vadd.f32 %v779, %v990
      %v992 = vpop.f32.mrb[0].mxu0
      %v993 = vpop.f32.mrb[0].mxu0
      %v994 = vadd.f32 %v782, %v993
      %v995 = vpop.f32.mrb[0].mxu0
      %996 = vmatprep.mubr.bf16.mxu0 0
      %997 = vmatmul.mubr.bf16.gmra.mrb[0].mxu0 %v859
      %v998 = vpop.f32.mrb[0].mxu0
      %v999 = vadd.f32 %v787, %v998
      %v1000 = vpop.f32.mrb[0].mxu0
      %v1001 = vpop.f32.mrb[0].mxu0
      %v1002 = vadd.f32 %v790, %v1001
      %v1003 = vpop.f32.mrb[0].mxu0
      %1004 = vmatprep.mubr.bf16.mxu0 0
      %1005 = vmatmul.mubr.bf16.gmra.mrb[0].mxu0 %v862
      %v1006 = vpop.f32.mrb[0].mxu0
      %v1007 = vadd.f32 %v795, %v1006
      %v1008 = vpop.f32.mrb[0].mxu0
      %v1009 = vpop.f32.mrb[0].mxu0
      %v1010 = vadd.f32 %v798, %v1009
      %v1011 = vpop.f32.mrb[0].mxu0
      %1012 = vmatprep.mubr.bf16.mxu0 0
      %1013 = vmatmul.mubr.bf16.gmra.mrb[0].mxu0 %v865
      %v1014 = vpop.f32.mrb[0].mxu0
      %v1015 = vadd.f32 %v803, %v1014
      %v1016 = vpop.f32.mrb[0].mxu0
      %v1017 = vpop.f32.mrb[0].mxu0
      %v1018 = vadd.f32 %v806, %v1017
      %v1019 = vpop.f32.mrb[0].mxu0
      %1020 = vmatprep.mubr.bf16.mxu0 0
      %1021 = vmatmul.mubr.bf16.gmra.mrb[0].mxu0 %v868
      %v1022 = vpop.f32.mrb[0].mxu0
      %v1023 = vadd.f32 %v811, %v1022
      %v1024 = vpop.f32.mrb[0].mxu0
      %v1025 = vpop.f32.mrb[0].mxu0
      %v1026 = vadd.f32 %v814, %v1025
      %v1027 = vpop.f32.mrb[0].mxu0
      %1028 = vmatprep.mubr.bf16.mxu0 0
      %1029 = vmatmul.mubr.bf16.gmra.mrb[0].mxu0 %v871
      %v1030 = vpop.f32.mrb[0].mxu0
      %v1031 = vadd.f32 %v819, %v1030
      %v1032 = vpop.f32.mrb[0].mxu0
      %v1033 = vpop.f32.mrb[0].mxu0
      %v1034 = vadd.f32 %v822, %v1033
      %v1035 = vpop.f32.mrb[0].mxu0
      %1036 = vdwg.mxu0
      %vm1037 = vcmask 1045504
      %v1038 = vrot.slane %v360, 2
      %v1039 = vrot.slane %v361, 2
      %v1040 = vsel %vm1037, %v1038, %v1039
      %v1041 = vrot.slane %v362, 2
      %v1042 = vsel %vm1037, %v1039, %v1041
      %v1043 = vrot.slane %v363, 2
      %v1044 = vrot.slane %v364, 2
      %v1045 = vsel %vm1037, %v1043, %v1044
      %v1046 = vrot.slane %v365, 2
      %v1047 = vsel %vm1037, %v1044, %v1046
      %v1048 = vrot.slane %v366, 2
      %v1049 = vrot.slane %v367, 2
      %v1050 = vsel %vm1037, %v1048, %v1049
      %v1051 = vrot.slane %v368, 2
      %v1052 = vsel %vm1037, %v1049, %v1051
      %v1053 = vrot.slane %v369, 2
      %v1054 = vrot.slane %v370, 2
      %v1055 = vsel %vm1037, %v1053, %v1054
      %v1056 = vrot.slane %v371, 2
      %v1057 = vsel %vm1037, %v1054, %v1056
      %v1058 = vrot.slane %v372, 2
      %v1059 = vrot.slane %v373, 2
      %v1060 = vsel %vm1037, %v1058, %v1059
      %v1061 = vrot.slane %v374, 2
      %v1062 = vsel %vm1037, %v1059, %v1061
      %v1063 = vrot.slane %v375, 2
      %v1064 = vrot.slane %v376, 2
      %v1065 = vsel %vm1037, %v1063, %v1064
      %v1066 = vrot.slane %v377, 2
      %v1067 = vsel %vm1037, %v1064, %v1066
      %v1068 = vrot.slane %v378, 2
      %v1069 = vrot.slane %v379, 2
      %v1070 = vsel %vm1037, %v1068, %v1069
      %v1071 = vrot.slane %v380, 2
      %v1072 = vsel %vm1037, %v1069, %v1071
      %v1073 = vrot.slane %v381, 2
      %v1074 = vrot.slane %v382, 2
      %v1075 = vsel %vm1037, %v1073, %v1074
      %v1076 = vrot.slane %v383, 2
      %v1077 = vsel %vm1037, %v1074, %v1076
      %v1078 = vrot.slane %v384, 2
      %v1079 = vrot.slane %v385, 2
      %v1080 = vsel %vm1037, %v1078, %v1079
      %v1081 = vrot.slane %v386, 2
      %v1082 = vsel %vm1037, %v1079, %v1081
      %v1083 = vrot.slane %v387, 2
      %v1084 = vrot.slane %v388, 2
      %v1085 = vsel %vm1037, %v1083, %v1084
      %v1086 = vrot.slane %v389, 2
      %v1087 = vsel %vm1037, %v1084, %v1086
      %v1088 = vrot.slane %v390, 2
      %v1089 = vrot.slane %v391, 2
      %v1090 = vsel %vm1037, %v1088, %v1089
      %v1091 = vrot.slane %v392, 2
      %v1092 = vsel %vm1037, %v1089, %v1091
      %v1093 = vrot.slane %v393, 2
      %v1094 = vrot.slane %v394, 2
      %v1095 = vsel %vm1037, %v1093, %v1094
      %v1096 = vrot.slane %v395, 2
      %v1097 = vsel %vm1037, %v1094, %v1096
      %v1098 = vrot.slane %v396, 2
      %v1099 = vrot.slane %v397, 2
      %v1100 = vsel %vm1037, %v1098, %v1099
      %v1101 = vrot.slane %v398, 2
      %v1102 = vsel %vm1037, %v1099, %v1101
      %v1103 = vrot.slane %v399, 2
      %v1104 = vrot.slane %v400, 2
      %v1105 = vsel %vm1037, %v1103, %v1104
      %v1106 = vrot.slane %v401, 2
      %v1107 = vsel %vm1037, %v1104, %v1106
      %v1108 = vrot.slane %v402, 2
      %v1109 = vrot.slane %v403, 2
      %v1110 = vsel %vm1037, %v1108, %v1109
      %v1111 = vrot.slane %v404, 2
      %v1112 = vsel %vm1037, %v1109, %v1111
      %v1113 = vrot.slane %v405, 2
      %v1114 = vrot.slane %v406, 2
      %v1115 = vsel %vm1037, %v1113, %v1114
      %v1116 = vrot.slane %v407, 2
      %v1117 = vsel %vm1037, %v1114, %v1116
      %v1150 = vpack.c.bf16 %v1042, %v1040
      %v1151 = vpack.c.bf16 %v1047, %v1045
      %v1152 = vpack.c.bf16 %v1052, %v1050
      %v1153 = vpack.c.bf16 %v1057, %v1055
      %v1154 = vpack.c.bf16 %v1062, %v1060
      %v1155 = vpack.c.bf16 %v1067, %v1065
      %v1156 = vpack.c.bf16 %v1072, %v1070
      %v1157 = vpack.c.bf16 %v1077, %v1075
      %v1158 = vpack.c.bf16 %v1082, %v1080
      %v1159 = vpack.c.bf16 %v1087, %v1085
      %v1160 = vpack.c.bf16 %v1092, %v1090
      %v1161 = vpack.c.bf16 %v1097, %v1095
      %v1162 = vpack.c.bf16 %v1102, %v1100
      %v1163 = vpack.c.bf16 %v1107, %v1105
      %v1164 = vpack.c.bf16 %v1112, %v1110
      %v1165 = vpack.c.bf16 %v1117, %v1115
      %v1167 = vsel %vm611, %v1150, 0
      %v1170 = vsel %vm611, %v1151, 0
      %v1173 = vsel %vm611, %v1152, 0
      %v1176 = vsel %vm611, %v1153, 0
      %v1179 = vsel %vm611, %v1154, 0
      %v1182 = vsel %vm611, %v1155, 0
      %v1185 = vsel %vm611, %v1156, 0
      %v1188 = vsel %vm611, %v1157, 0
      %v1191 = vsel %vm611, %v1158, 0
      %v1194 = vsel %vm611, %v1159, 0
      %v1197 = vsel %vm611, %v1160, 0
      %v1200 = vsel %vm611, %v1161, 0
      %v1203 = vsel %vm611, %v1162, 0
      %v1206 = vsel %vm611, %v1163, 0
      %v1209 = vsel %vm611, %v1164, 0
      %v1212 = vsel %vm611, %v1165, 0
      %v1215 = vsel %vm660, %v353, 0
      %1217 = vmatprep.subr.bf16.mxu0 0
      %1218 = vmatpush1.bf16.msra.mxu0 %v1215
      %1219 = vmatprep.subr.bf16.mxu0 0
      %1220 = vmatpush1.bf16.msra.mxu0 0
      %1221 = vmatprep.subr.bf16.mxu0 0
      %1222 = vmatpush1.bf16.msra.mxu0 0
      %1223 = vmatprep.subr.bf16.mxu0 0
      %1224 = vmatpush1.bf16.msra.mxu0 0
      %1225 = vmatprep.subr.bf16.mxu0 0
      %1226 = vmatpush1.bf16.msra.mxu0 0
      %1227 = vmatprep.subr.bf16.mxu0 0
      %1228 = vmatpush1.bf16.msra.mxu0 0
      %1229 = vmatprep.subr.bf16.mxu0 0
      %1230 = vmatpush1.bf16.msra.mxu0 0
      %1231 = vmatprep.subr.bf16.mxu0 0
      %1232 = vmatpush1.bf16.msra.mxu0 0
      %1233 = vmatprep.subr.bf16.mxu0 0
      %1234 = vmatpush1.bf16.msra.mxu0 0
      %1235 = vmatprep.subr.bf16.mxu0 0
      %1236 = vmatpush1.bf16.msra.mxu0 0
      %1237 = vmatprep.subr.bf16.mxu0 0
      %1238 = vmatpush1.bf16.msra.mxu0 0
      %1239 = vmatprep.subr.bf16.mxu0 0
      %1240 = vmatpush1.bf16.msra.mxu0 0
      %1241 = vmatprep.subr.bf16.mxu0 0
      %1242 = vmatpush1.bf16.msra.mxu0 0
      %1243 = vmatprep.subr.bf16.mxu0 0
      %1244 = vmatpush1.bf16.msra.mxu0 0
      %1245 = vmatprep.subr.bf16.mxu0 0
      %1246 = vmatpush1.bf16.msra.mxu0 0
      %1247 = vmatprep.subr.bf16.mxu0 0
      %1248 = vmatpush1.bf16.msra.mxu0 0
      %1249 = vmatprep.mubr.bf16.mxu0 0
      %1250 = vmatmul.mubr.bf16.gmra.mrb[0].mxu0 %v1167
      %v1251 = vpop.f32.mrb[0].mxu0
      %v1252 = vadd.f32 0.0, %v1251
      %v1253 = vpop.f32.mrb[0].mxu0
      %v1254 = vpop.f32.mrb[0].mxu0
      %v1255 = vadd.f32 0.0, %v1254
      %v1256 = vpop.f32.mrb[0].mxu0
      %1257 = vmatprep.mubr.bf16.mxu0 0
      %1258 = vmatmul.mubr.bf16.gmra.mrb[0].mxu0 %v1170
      %v1259 = vpop.f32.mrb[0].mxu0
      %v1260 = vadd.f32 0.0, %v1259
      %v1261 = vpop.f32.mrb[0].mxu0
      %v1262 = vpop.f32.mrb[0].mxu0
      %v1263 = vadd.f32 0.0, %v1262
      %v1264 = vpop.f32.mrb[0].mxu0
      %1265 = vmatprep.mubr.bf16.mxu0 0
      %1266 = vmatmul.mubr.bf16.gmra.mrb[0].mxu0 %v1173
      %v1267 = vpop.f32.mrb[0].mxu0
      %v1268 = vadd.f32 0.0, %v1267
      %v1269 = vpop.f32.mrb[0].mxu0
      %v1270 = vpop.f32.mrb[0].mxu0
      %v1271 = vadd.f32 0.0, %v1270
      %v1272 = vpop.f32.mrb[0].mxu0
      %1273 = vmatprep.mubr.bf16.mxu0 0
      %1274 = vmatmul.mubr.bf16.gmra.mrb[0].mxu0 %v1176
      %v1275 = vpop.f32.mrb[0].mxu0
      %v1276 = vadd.f32 0.0, %v1275
      %v1277 = vpop.f32.mrb[0].mxu0
      %v1278 = vpop.f32.mrb[0].mxu0
      %v1279 = vadd.f32 0.0, %v1278
      %v1280 = vpop.f32.mrb[0].mxu0
      %1281 = vmatprep.mubr.bf16.mxu0 0
      %1282 = vmatmul.mubr.bf16.gmra.mrb[0].mxu0 %v1179
      %v1283 = vpop.f32.mrb[0].mxu0
      %v1284 = vadd.f32 0.0, %v1283
      %v1285 = vpop.f32.mrb[0].mxu0
      %v1286 = vpop.f32.mrb[0].mxu0
      %v1287 = vadd.f32 0.0, %v1286
      %v1288 = vpop.f32.mrb[0].mxu0
      %1289 = vmatprep.mubr.bf16.mxu0 0
      %1290 = vmatmul.mubr.bf16.gmra.mrb[0].mxu0 %v1182
      %v1291 = vpop.f32.mrb[0].mxu0
      %v1292 = vadd.f32 0.0, %v1291
      %v1293 = vpop.f32.mrb[0].mxu0
      %v1294 = vpop.f32.mrb[0].mxu0
      %v1295 = vadd.f32 0.0, %v1294
      %v1296 = vpop.f32.mrb[0].mxu0
      %1297 = vmatprep.mubr.bf16.mxu0 0
      %1298 = vmatmul.mubr.bf16.gmra.mrb[0].mxu0 %v1185
      %v1299 = vpop.f32.mrb[0].mxu0
      %v1300 = vadd.f32 0.0, %v1299
      %v1301 = vpop.f32.mrb[0].mxu0
      %v1302 = vpop.f32.mrb[0].mxu0
      %v1303 = vadd.f32 0.0, %v1302
      %v1304 = vpop.f32.mrb[0].mxu0
      %1305 = vmatprep.mubr.bf16.mxu0 0
      %1306 = vmatmul.mubr.bf16.gmra.mrb[0].mxu0 %v1188
      %v1307 = vpop.f32.mrb[0].mxu0
      %v1308 = vadd.f32 0.0, %v1307
      %v1309 = vpop.f32.mrb[0].mxu0
      %v1310 = vpop.f32.mrb[0].mxu0
      %v1311 = vadd.f32 0.0, %v1310
      %v1312 = vpop.f32.mrb[0].mxu0
      %1313 = vmatprep.mubr.bf16.mxu0 0
      %1314 = vmatmul.mubr.bf16.gmra.mrb[0].mxu0 %v1191
      %v1315 = vpop.f32.mrb[0].mxu0
      %v1316 = vadd.f32 0.0, %v1315
      %v1317 = vpop.f32.mrb[0].mxu0
      %v1318 = vpop.f32.mrb[0].mxu0
      %v1319 = vadd.f32 0.0, %v1318
      %v1320 = vpop.f32.mrb[0].mxu0
      %1321 = vmatprep.mubr.bf16.mxu0 0
      %1322 = vmatmul.mubr.bf16.gmra.mrb[0].mxu0 %v1194
      %v1323 = vpop.f32.mrb[0].mxu0
      %v1324 = vadd.f32 0.0, %v1323
      %v1325 = vpop.f32.mrb[0].mxu0
      %v1326 = vpop.f32.mrb[0].mxu0
      %v1327 = vadd.f32 0.0, %v1326
      %v1328 = vpop.f32.mrb[0].mxu0
      %1329 = vmatprep.mubr.bf16.mxu0 0
      %1330 = vmatmul.mubr.bf16.gmra.mrb[0].mxu0 %v1197
      %v1331 = vpop.f32.mrb[0].mxu0
      %v1332 = vadd.f32 0.0, %v1331
      %v1333 = vpop.f32.mrb[0].mxu0
      %v1334 = vpop.f32.mrb[0].mxu0
      %v1335 = vadd.f32 0.0, %v1334
      %v1336 = vpop.f32.mrb[0].mxu0
      %1337 = vmatprep.mubr.bf16.mxu0 0
      %1338 = vmatmul.mubr.bf16.gmra.mrb[0].mxu0 %v1200
      %v1339 = vpop.f32.mrb[0].mxu0
      %v1340 = vadd.f32 0.0, %v1339
      %v1341 = vpop.f32.mrb[0].mxu0
      %v1342 = vpop.f32.mrb[0].mxu0
      %v1343 = vadd.f32 0.0, %v1342
      %v1344 = vpop.f32.mrb[0].mxu0
      %1345 = vmatprep.mubr.bf16.mxu0 0
      %1346 = vmatmul.mubr.bf16.gmra.mrb[0].mxu0 %v1203
      %v1347 = vpop.f32.mrb[0].mxu0
      %v1348 = vadd.f32 0.0, %v1347
      %v1349 = vpop.f32.mrb[0].mxu0
      %v1350 = vpop.f32.mrb[0].mxu0
      %v1351 = vadd.f32 0.0, %v1350
      %v1352 = vpop.f32.mrb[0].mxu0
      %1353 = vmatprep.mubr.bf16.mxu0 0
      %1354 = vmatmul.mubr.bf16.gmra.mrb[0].mxu0 %v1206
      %v1355 = vpop.f32.mrb[0].mxu0
      %v1356 = vadd.f32 0.0, %v1355
      %v1357 = vpop.f32.mrb[0].mxu0
      %v1358 = vpop.f32.mrb[0].mxu0
      %v1359 = vadd.f32 0.0, %v1358
      %v1360 = vpop.f32.mrb[0].mxu0
      %1361 = vmatprep.mubr.bf16.mxu0 0
      %1362 = vmatmul.mubr.bf16.gmra.mrb[0].mxu0 %v1209
      %v1363 = vpop.f32.mrb[0].mxu0
      %v1364 = vadd.f32 0.0, %v1363
      %v1365 = vpop.f32.mrb[0].mxu0
      %v1366 = vpop.f32.mrb[0].mxu0
      %v1367 = vadd.f32 0.0, %v1366
      %v1368 = vpop.f32.mrb[0].mxu0
      %1369 = vmatprep.mubr.bf16.mxu0 0
      %1370 = vmatmul.mubr.bf16.gmra.mrb[0].mxu0 %v1212
      %v1371 = vpop.f32.mrb[0].mxu0
      %v1372 = vadd.f32 0.0, %v1371
      %v1373 = vpop.f32.mrb[0].mxu0
      %v1374 = vpop.f32.mrb[0].mxu0
      %v1375 = vadd.f32 0.0, %v1374
      %v1376 = vpop.f32.mrb[0].mxu0
      %1377 = vdwg.mxu0
      %v1378 = vadd.f32 %v911, %v1252
      %v1379 = vadd.f32 %v914, %v1255
      %v1380 = vadd.f32 %v919, %v1260
      %v1381 = vadd.f32 %v922, %v1263
      %v1382 = vadd.f32 %v927, %v1268
      %v1383 = vadd.f32 %v930, %v1271
      %v1384 = vadd.f32 %v935, %v1276
      %v1385 = vadd.f32 %v938, %v1279
      %v1386 = vadd.f32 %v943, %v1284
      %v1387 = vadd.f32 %v946, %v1287
      %v1388 = vadd.f32 %v951, %v1292
      %v1389 = vadd.f32 %v954, %v1295
      %v1390 = vadd.f32 %v959, %v1300
      %v1391 = vadd.f32 %v962, %v1303
      %v1392 = vadd.f32 %v967, %v1308
      %v1393 = vadd.f32 %v970, %v1311
      %v1394 = vadd.f32 %v975, %v1316
      %v1395 = vadd.f32 %v978, %v1319
      %v1396 = vadd.f32 %v983, %v1324
      %v1397 = vadd.f32 %v986, %v1327
      %v1398 = vadd.f32 %v991, %v1332
      %v1399 = vadd.f32 %v994, %v1335
      %v1400 = vadd.f32 %v999, %v1340
      %v1401 = vadd.f32 %v1002, %v1343
      %v1402 = vadd.f32 %v1007, %v1348
      %v1403 = vadd.f32 %v1010, %v1351
      %v1404 = vadd.f32 %v1015, %v1356
      %v1405 = vadd.f32 %v1018, %v1359
      %v1406 = vadd.f32 %v1023, %v1364
      %v1407 = vadd.f32 %v1026, %v1367
      %v1408 = vadd.f32 %v1031, %v1372
      %v1409 = vadd.f32 %v1034, %v1375
      %v1410 = vpack.c.bf16 %v409, %v408
      %v1412 = vunpack.c.l.b16 %v353
      %v1413 = vpack.c.b16 %v1412, %v1412
      %v1414 = vrot.slane %v1413, 2
      %v1416 = vsel %vm611, %v1410, 0
      %v1419 = vsel %vm660, %v1414, 0
      %1421 = vmatprep.subr.bf16.mxu0 0
      %1422 = vmatpush1.bf16.msra.mxu0 %v1419
      %1423 = vmatprep.subr.bf16.mxu0 0
      %1424 = vmatpush1.bf16.msra.mxu0 0
      %1425 = vmatprep.subr.bf16.mxu0 0
      %1426 = vmatpush1.bf16.msra.mxu0 0
      %1427 = vmatprep.subr.bf16.mxu0 0
      %1428 = vmatpush1.bf16.msra.mxu0 0
      %1429 = vmatprep.subr.bf16.mxu0 0
      %1430 = vmatpush1.bf16.msra.mxu0 0
      %1431 = vmatprep.subr.bf16.mxu0 0
      %1432 = vmatpush1.bf16.msra.mxu0 0
      %1433 = vmatprep.subr.bf16.mxu0 0
      %1434 = vmatpush1.bf16.msra.mxu0 0
      %1435 = vmatprep.subr.bf16.mxu0 0
      %1436 = vmatpush1.bf16.msra.mxu0 0
      %1437 = vmatprep.subr.bf16.mxu0 0
      %1438 = vmatpush1.bf16.msra.mxu0 0
      %1439 = vmatprep.subr.bf16.mxu0 0
      %1440 = vmatpush1.bf16.msra.mxu0 0
      %1441 = vmatprep.subr.bf16.mxu0 0
      %1442 = vmatpush1.bf16.msra.mxu0 0
      %1443 = vmatprep.subr.bf16.mxu0 0
      %1444 = vmatpush1.bf16.msra.mxu0 0
      %1445 = vmatprep.subr.bf16.mxu0 0
      %1446 = vmatpush1.bf16.msra.mxu0 0
      %1447 = vmatprep.subr.bf16.mxu0 0
      %1448 = vmatpush1.bf16.msra.mxu0 0
      %1449 = vmatprep.subr.bf16.mxu0 0
      %1450 = vmatpush1.bf16.msra.mxu0 0
      %1451 = vmatprep.subr.bf16.mxu0 0
      %1452 = vmatpush1.bf16.msra.mxu0 0
      %1453 = vmatprep.mubr.bf16.mxu0 0
      %1454 = vmatmul.mubr.bf16.gmra.mrb[0].mxu0 %v829
      %v1455 = vpop.f32.mrb[0].mxu0
      %v1456 = vadd.f32 0.0, %v1455
      %v1457 = vpop.f32.mrb[0].mxu0
      %v1458 = vpop.f32.mrb[0].mxu0
      %v1459 = vadd.f32 0.0, %v1458
      %v1460 = vpop.f32.mrb[0].mxu0
      %1461 = vmatprep.mubr.bf16.mxu0 0
      %1462 = vmatmul.mubr.bf16.gmra.mrb[0].mxu0 %v832
      %v1463 = vpop.f32.mrb[0].mxu0
      %v1464 = vadd.f32 0.0, %v1463
      %v1465 = vpop.f32.mrb[0].mxu0
      %v1466 = vpop.f32.mrb[0].mxu0
      %v1467 = vadd.f32 0.0, %v1466
      %v1468 = vpop.f32.mrb[0].mxu0
      %1469 = vmatprep.mubr.bf16.mxu0 0
      %1470 = vmatmul.mubr.bf16.gmra.mrb[0].mxu0 %v835
      %v1471 = vpop.f32.mrb[0].mxu0
      %v1472 = vadd.f32 0.0, %v1471
      %v1473 = vpop.f32.mrb[0].mxu0
      %v1474 = vpop.f32.mrb[0].mxu0
      %v1475 = vadd.f32 0.0, %v1474
      %v1476 = vpop.f32.mrb[0].mxu0
      %1477 = vmatprep.mubr.bf16.mxu0 0
      %1478 = vmatmul.mubr.bf16.gmra.mrb[0].mxu0 %v838
      %v1479 = vpop.f32.mrb[0].mxu0
      %v1480 = vadd.f32 0.0, %v1479
      %v1481 = vpop.f32.mrb[0].mxu0
      %v1482 = vpop.f32.mrb[0].mxu0
      %v1483 = vadd.f32 0.0, %v1482
      %v1484 = vpop.f32.mrb[0].mxu0
      %1485 = vmatprep.mubr.bf16.mxu0 0
      %1486 = vmatmul.mubr.bf16.gmra.mrb[0].mxu0 %v841
      %v1487 = vpop.f32.mrb[0].mxu0
      %v1488 = vadd.f32 0.0, %v1487
      %v1489 = vpop.f32.mrb[0].mxu0
      %v1490 = vpop.f32.mrb[0].mxu0
      %v1491 = vadd.f32 0.0, %v1490
      %v1492 = vpop.f32.mrb[0].mxu0
      %1493 = vmatprep.mubr.bf16.mxu0 0
      %1494 = vmatmul.mubr.bf16.gmra.mrb[0].mxu0 %v844
      %v1495 = vpop.f32.mrb[0].mxu0
      %v1496 = vadd.f32 0.0, %v1495
      %v1497 = vpop.f32.mrb[0].mxu0
      %v1498 = vpop.f32.mrb[0].mxu0
      %v1499 = vadd.f32 0.0, %v1498
      %v1500 = vpop.f32.mrb[0].mxu0
      %1501 = vmatprep.mubr.bf16.mxu0 0
      %1502 = vmatmul.mubr.bf16.gmra.mrb[0].mxu0 %v847
      %v1503 = vpop.f32.mrb[0].mxu0
      %v1504 = vadd.f32 0.0, %v1503
      %v1505 = vpop.f32.mrb[0].mxu0
      %v1506 = vpop.f32.mrb[0].mxu0
      %v1507 = vadd.f32 0.0, %v1506
      %v1508 = vpop.f32.mrb[0].mxu0
      %1509 = vmatprep.mubr.bf16.mxu0 0
      %1510 = vmatmul.mubr.bf16.gmra.mrb[0].mxu0 %v850
      %v1511 = vpop.f32.mrb[0].mxu0
      %v1512 = vadd.f32 0.0, %v1511
      %v1513 = vpop.f32.mrb[0].mxu0
      %v1514 = vpop.f32.mrb[0].mxu0
      %v1515 = vadd.f32 0.0, %v1514
      %v1516 = vpop.f32.mrb[0].mxu0
      %1517 = vmatprep.mubr.bf16.mxu0 0
      %1518 = vmatmul.mubr.bf16.gmra.mrb[0].mxu0 %v853
      %v1519 = vpop.f32.mrb[0].mxu0
      %v1520 = vadd.f32 0.0, %v1519
      %v1521 = vpop.f32.mrb[0].mxu0
      %v1522 = vpop.f32.mrb[0].mxu0
      %v1523 = vadd.f32 0.0, %v1522
      %v1524 = vpop.f32.mrb[0].mxu0
      %1525 = vmatprep.mubr.bf16.mxu0 0
      %1526 = vmatmul.mubr.bf16.gmra.mrb[0].mxu0 %v856
      %v1527 = vpop.f32.mrb[0].mxu0
      %v1528 = vadd.f32 0.0, %v1527
      %v1529 = vpop.f32.mrb[0].mxu0
      %v1530 = vpop.f32.mrb[0].mxu0
      %v1531 = vadd.f32 0.0, %v1530
      %v1532 = vpop.f32.mrb[0].mxu0
      %1533 = vmatprep.mubr.bf16.mxu0 0
      %1534 = vmatmul.mubr.bf16.gmra.mrb[0].mxu0 %v859
      %v1535 = vpop.f32.mrb[0].mxu0
      %v1536 = vadd.f32 0.0, %v1535
      %v1537 = vpop.f32.mrb[0].mxu0
      %v1538 = vpop.f32.mrb[0].mxu0
      %v1539 = vadd.f32 0.0, %v1538
      %v1540 = vpop.f32.mrb[0].mxu0
      %1541 = vmatprep.mubr.bf16.mxu0 0
      %1542 = vmatmul.mubr.bf16.gmra.mrb[0].mxu0 %v862
      %v1543 = vpop.f32.mrb[0].mxu0
      %v1544 = vadd.f32 0.0, %v1543
      %v1545 = vpop.f32.mrb[0].mxu0
      %v1546 = vpop.f32.mrb[0].mxu0
      %v1547 = vadd.f32 0.0, %v1546
      %v1548 = vpop.f32.mrb[0].mxu0
      %1549 = vmatprep.mubr.bf16.mxu0 0
      %1550 = vmatmul.mubr.bf16.gmra.mrb[0].mxu0 %v865
      %v1551 = vpop.f32.mrb[0].mxu0
      %v1552 = vadd.f32 0.0, %v1551
      %v1553 = vpop.f32.mrb[0].mxu0
      %v1554 = vpop.f32.mrb[0].mxu0
      %v1555 = vadd.f32 0.0, %v1554
      %v1556 = vpop.f32.mrb[0].mxu0
      %1557 = vmatprep.mubr.bf16.mxu0 0
      %1558 = vmatmul.mubr.bf16.gmra.mrb[0].mxu0 %v868
      %v1559 = vpop.f32.mrb[0].mxu0
      %v1560 = vadd.f32 0.0, %v1559
      %v1561 = vpop.f32.mrb[0].mxu0
      %v1562 = vpop.f32.mrb[0].mxu0
      %v1563 = vadd.f32 0.0, %v1562
      %v1564 = vpop.f32.mrb[0].mxu0
      %1565 = vmatprep.mubr.bf16.mxu0 0
      %1566 = vmatmul.mubr.bf16.gmra.mrb[0].mxu0 %v871
      %v1567 = vpop.f32.mrb[0].mxu0
      %v1568 = vadd.f32 0.0, %v1567
      %v1569 = vpop.f32.mrb[0].mxu0
      %v1570 = vpop.f32.mrb[0].mxu0
      %v1571 = vadd.f32 0.0, %v1570
      %v1572 = vpop.f32.mrb[0].mxu0
      %1573 = vmatprep.mubr.bf16.mxu0 0
      %1574 = vmatmul.mubr.bf16.gmra.mrb[0].mxu0 %v1416
      %v1575 = vpop.f32.mrb[0].mxu0
      %v1576 = vadd.f32 0.0, %v1575
      %v1577 = vpop.f32.mrb[0].mxu0
      %v1578 = vpop.f32.mrb[0].mxu0
      %v1579 = vadd.f32 0.0, %v1578
      %v1580 = vpop.f32.mrb[0].mxu0
      %1581 = vdwg.mxu0
      %v1582 = vadd.f32 %v1378, %v1456
      %v1583 = vadd.f32 %v1379, %v1459
      %v1584 = vadd.f32 %v1380, %v1464
      %v1585 = vadd.f32 %v1381, %v1467
      %v1586 = vadd.f32 %v1382, %v1472
      %v1587 = vadd.f32 %v1383, %v1475
      %v1588 = vadd.f32 %v1384, %v1480
      %v1589 = vadd.f32 %v1385, %v1483
      %v1590 = vadd.f32 %v1386, %v1488
      %v1591 = vadd.f32 %v1387, %v1491
      %v1592 = vadd.f32 %v1388, %v1496
      %v1593 = vadd.f32 %v1389, %v1499
      %v1594 = vadd.f32 %v1390, %v1504
      %v1595 = vadd.f32 %v1391, %v1507
      %v1596 = vadd.f32 %v1392, %v1512
      %v1597 = vadd.f32 %v1393, %v1515
      %v1598 = vadd.f32 %v1394, %v1520
      %v1599 = vadd.f32 %v1395, %v1523
      %v1600 = vadd.f32 %v1396, %v1528
      %v1601 = vadd.f32 %v1397, %v1531
      %v1602 = vadd.f32 %v1398, %v1536
      %v1603 = vadd.f32 %v1399, %v1539
      %v1604 = vadd.f32 %v1400, %v1544
      %v1605 = vadd.f32 %v1401, %v1547
      %v1606 = vadd.f32 %v1402, %v1552
      %v1607 = vadd.f32 %v1403, %v1555
      %v1608 = vadd.f32 %v1404, %v1560
      %v1609 = vadd.f32 %v1405, %v1563
      %v1610 = vadd.f32 %v1406, %v1568
      %v1611 = vadd.f32 %v1407, %v1571
      %v1612 = vadd.f32 %v1408, %v1576
      %v1613 = vadd.f32 %v1409, %v1579
      %v1617 = vrot.slane %v408, 1
      %v1618 = vrot.slane %v409, 1
      %v1619 = vsel %vm478, %v1617, %v1618
      %v1620 = vrot.slane %v410, 1
      %v1621 = vsel %vm478, %v1618, %v1620
      %v1624 = vpack.c.bf16 %v1621, %v1619
      %v1626 = vsel %vm611, %v1624, 0
      %v1629 = vsel %vm660, %v354, 0
      %1631 = vmatprep.subr.bf16.mxu0 0
      %1632 = vmatpush1.bf16.msra.mxu0 %v1629
      %1633 = vmatprep.subr.bf16.mxu0 0
      %1634 = vmatpush1.bf16.msra.mxu0 0
      %1635 = vmatprep.subr.bf16.mxu0 0
      %1636 = vmatpush1.bf16.msra.mxu0 0
      %1637 = vmatprep.subr.bf16.mxu0 0
      %1638 = vmatpush1.bf16.msra.mxu0 0
      %1639 = vmatprep.subr.bf16.mxu0 0
      %1640 = vmatpush1.bf16.msra.mxu0 0
      %1641 = vmatprep.subr.bf16.mxu0 0
      %1642 = vmatpush1.bf16.msra.mxu0 0
      %1643 = vmatprep.subr.bf16.mxu0 0
      %1644 = vmatpush1.bf16.msra.mxu0 0
      %1645 = vmatprep.subr.bf16.mxu0 0
      %1646 = vmatpush1.bf16.msra.mxu0 0
      %1647 = vmatprep.subr.bf16.mxu0 0
      %1648 = vmatpush1.bf16.msra.mxu0 0
      %1649 = vmatprep.subr.bf16.mxu0 0
      %1650 = vmatpush1.bf16.msra.mxu0 0
      %1651 = vmatprep.subr.bf16.mxu0 0
      %1652 = vmatpush1.bf16.msra.mxu0 0
      %1653 = vmatprep.subr.bf16.mxu0 0
      %1654 = vmatpush1.bf16.msra.mxu0 0
      %1655 = vmatprep.subr.bf16.mxu0 0
      %1656 = vmatpush1.bf16.msra.mxu0 0
      %1657 = vmatprep.subr.bf16.mxu0 0
      %1658 = vmatpush1.bf16.msra.mxu0 0
      %1659 = vmatprep.subr.bf16.mxu0 0
      %1660 = vmatpush1.bf16.msra.mxu0 0
      %1661 = vmatprep.subr.bf16.mxu0 0
      %1662 = vmatpush1.bf16.msra.mxu0 0
      %1663 = vmatprep.mubr.bf16.mxu0 0
      %1664 = vmatmul.mubr.bf16.gmra.mrb[0].mxu0 %v616
      %v1665 = vpop.f32.mrb[0].mxu0
      %v1666 = vadd.f32 0.0, %v1665
      %v1667 = vpop.f32.mrb[0].mxu0
      %v1668 = vpop.f32.mrb[0].mxu0
      %v1669 = vadd.f32 0.0, %v1668
      %v1670 = vpop.f32.mrb[0].mxu0
      %1671 = vmatprep.mubr.bf16.mxu0 0
      %1672 = vmatmul.mubr.bf16.gmra.mrb[0].mxu0 %v619
      %v1673 = vpop.f32.mrb[0].mxu0
      %v1674 = vadd.f32 0.0, %v1673
      %v1675 = vpop.f32.mrb[0].mxu0
      %v1676 = vpop.f32.mrb[0].mxu0
      %v1677 = vadd.f32 0.0, %v1676
      %v1678 = vpop.f32.mrb[0].mxu0
      %1679 = vmatprep.mubr.bf16.mxu0 0
      %1680 = vmatmul.mubr.bf16.gmra.mrb[0].mxu0 %v622
      %v1681 = vpop.f32.mrb[0].mxu0
      %v1682 = vadd.f32 0.0, %v1681
      %v1683 = vpop.f32.mrb[0].mxu0
      %v1684 = vpop.f32.mrb[0].mxu0
      %v1685 = vadd.f32 0.0, %v1684
      %v1686 = vpop.f32.mrb[0].mxu0
      %1687 = vmatprep.mubr.bf16.mxu0 0
      %1688 = vmatmul.mubr.bf16.gmra.mrb[0].mxu0 %v625
      %v1689 = vpop.f32.mrb[0].mxu0
      %v1690 = vadd.f32 0.0, %v1689
      %v1691 = vpop.f32.mrb[0].mxu0
      %v1692 = vpop.f32.mrb[0].mxu0
      %v1693 = vadd.f32 0.0, %v1692
      %v1694 = vpop.f32.mrb[0].mxu0
      %1695 = vmatprep.mubr.bf16.mxu0 0
      %1696 = vmatmul.mubr.bf16.gmra.mrb[0].mxu0 %v628
      %v1697 = vpop.f32.mrb[0].mxu0
      %v1698 = vadd.f32 0.0, %v1697
      %v1699 = vpop.f32.mrb[0].mxu0
      %v1700 = vpop.f32.mrb[0].mxu0
      %v1701 = vadd.f32 0.0, %v1700
      %v1702 = vpop.f32.mrb[0].mxu0
      %1703 = vmatprep.mubr.bf16.mxu0 0
      %1704 = vmatmul.mubr.bf16.gmra.mrb[0].mxu0 %v631
      %v1705 = vpop.f32.mrb[0].mxu0
      %v1706 = vadd.f32 0.0, %v1705
      %v1707 = vpop.f32.mrb[0].mxu0
      %v1708 = vpop.f32.mrb[0].mxu0
      %v1709 = vadd.f32 0.0, %v1708
      %v1710 = vpop.f32.mrb[0].mxu0
      %1711 = vmatprep.mubr.bf16.mxu0 0
      %1712 = vmatmul.mubr.bf16.gmra.mrb[0].mxu0 %v634
      %v1713 = vpop.f32.mrb[0].mxu0
      %v1714 = vadd.f32 0.0, %v1713
      %v1715 = vpop.f32.mrb[0].mxu0
      %v1716 = vpop.f32.mrb[0].mxu0
      %v1717 = vadd.f32 0.0, %v1716
      %v1718 = vpop.f32.mrb[0].mxu0
      %1719 = vmatprep.mubr.bf16.mxu0 0
      %1720 = vmatmul.mubr.bf16.gmra.mrb[0].mxu0 %v637
      %v1721 = vpop.f32.mrb[0].mxu0
      %v1722 = vadd.f32 0.0, %v1721
      %v1723 = vpop.f32.mrb[0].mxu0
      %v1724 = vpop.f32.mrb[0].mxu0
      %v1725 = vadd.f32 0.0, %v1724
      %v1726 = vpop.f32.mrb[0].mxu0
      %1727 = vmatprep.mubr.bf16.mxu0 0
      %1728 = vmatmul.mubr.bf16.gmra.mrb[0].mxu0 %v640
      %v1729 = vpop.f32.mrb[0].mxu0
      %v1730 = vadd.f32 0.0, %v1729
      %v1731 = vpop.f32.mrb[0].mxu0
      %v1732 = vpop.f32.mrb[0].mxu0
      %v1733 = vadd.f32 0.0, %v1732
      %v1734 = vpop.f32.mrb[0].mxu0
      %1735 = vmatprep.mubr.bf16.mxu0 0
      %1736 = vmatmul.mubr.bf16.gmra.mrb[0].mxu0 %v643
      %v1737 = vpop.f32.mrb[0].mxu0
      %v1738 = vadd.f32 0.0, %v1737
      %v1739 = vpop.f32.mrb[0].mxu0
      %v1740 = vpop.f32.mrb[0].mxu0
      %v1741 = vadd.f32 0.0, %v1740
      %v1742 = vpop.f32.mrb[0].mxu0
      %1743 = vmatprep.mubr.bf16.mxu0 0
      %1744 = vmatmul.mubr.bf16.gmra.mrb[0].mxu0 %v646
      %v1745 = vpop.f32.mrb[0].mxu0
      %v1746 = vadd.f32 0.0, %v1745
      %v1747 = vpop.f32.mrb[0].mxu0
      %v1748 = vpop.f32.mrb[0].mxu0
      %v1749 = vadd.f32 0.0, %v1748
      %v1750 = vpop.f32.mrb[0].mxu0
      %1751 = vmatprep.mubr.bf16.mxu0 0
      %1752 = vmatmul.mubr.bf16.gmra.mrb[0].mxu0 %v649
      %v1753 = vpop.f32.mrb[0].mxu0
      %v1754 = vadd.f32 0.0, %v1753
      %v1755 = vpop.f32.mrb[0].mxu0
      %v1756 = vpop.f32.mrb[0].mxu0
      %v1757 = vadd.f32 0.0, %v1756
      %v1758 = vpop.f32.mrb[0].mxu0
      %1759 = vmatprep.mubr.bf16.mxu0 0
      %1760 = vmatmul.mubr.bf16.gmra.mrb[0].mxu0 %v652
      %v1761 = vpop.f32.mrb[0].mxu0
      %v1762 = vadd.f32 0.0, %v1761
      %v1763 = vpop.f32.mrb[0].mxu0
      %v1764 = vpop.f32.mrb[0].mxu0
      %v1765 = vadd.f32 0.0, %v1764
      %v1766 = vpop.f32.mrb[0].mxu0
      %1767 = vmatprep.mubr.bf16.mxu0 0
      %1768 = vmatmul.mubr.bf16.gmra.mrb[0].mxu0 %v655
      %v1769 = vpop.f32.mrb[0].mxu0
      %v1770 = vadd.f32 0.0, %v1769
      %v1771 = vpop.f32.mrb[0].mxu0
      %v1772 = vpop.f32.mrb[0].mxu0
      %v1773 = vadd.f32 0.0, %v1772
      %v1774 = vpop.f32.mrb[0].mxu0
      %1775 = vmatprep.mubr.bf16.mxu0 0
      %1776 = vmatmul.mubr.bf16.gmra.mrb[0].mxu0 %v658
      %v1777 = vpop.f32.mrb[0].mxu0
      %v1778 = vadd.f32 0.0, %v1777
      %v1779 = vpop.f32.mrb[0].mxu0
      %v1780 = vpop.f32.mrb[0].mxu0
      %v1781 = vadd.f32 0.0, %v1780
      %v1782 = vpop.f32.mrb[0].mxu0
      %1783 = vmatprep.mubr.bf16.mxu0 0
      %1784 = vmatmul.mubr.bf16.gmra.mrb[0].mxu0 %v1626
      %v1785 = vpop.f32.mrb[0].mxu0
      %v1786 = vadd.f32 0.0, %v1785
      %v1787 = vpop.f32.mrb[0].mxu0
      %v1788 = vpop.f32.mrb[0].mxu0
      %v1789 = vadd.f32 0.0, %v1788
      %v1790 = vpop.f32.mrb[0].mxu0
      %1791 = vdwg.mxu0
      %v1792 = vadd.f32 %v1582, %v1666
      %v1793 = vadd.f32 %v1583, %v1669
      %v1794 = vadd.f32 %v1584, %v1674
      %v1795 = vadd.f32 %v1585, %v1677
      %v1796 = vadd.f32 %v1586, %v1682
      %v1797 = vadd.f32 %v1587, %v1685
      %v1798 = vadd.f32 %v1588, %v1690
      %v1799 = vadd.f32 %v1589, %v1693
      %v1800 = vadd.f32 %v1590, %v1698
      %v1801 = vadd.f32 %v1591, %v1701
      %v1802 = vadd.f32 %v1592, %v1706
      %v1803 = vadd.f32 %v1593, %v1709
      %v1804 = vadd.f32 %v1594, %v1714
      %v1805 = vadd.f32 %v1595, %v1717
      %v1806 = vadd.f32 %v1596, %v1722
      %v1807 = vadd.f32 %v1597, %v1725
      %v1808 = vadd.f32 %v1598, %v1730
      %v1809 = vadd.f32 %v1599, %v1733
      %v1810 = vadd.f32 %v1600, %v1738
      %v1811 = vadd.f32 %v1601, %v1741
      %v1812 = vadd.f32 %v1602, %v1746
      %v1813 = vadd.f32 %v1603, %v1749
      %v1814 = vadd.f32 %v1604, %v1754
      %v1815 = vadd.f32 %v1605, %v1757
      %v1816 = vadd.f32 %v1606, %v1762
      %v1817 = vadd.f32 %v1607, %v1765
      %v1818 = vadd.f32 %v1608, %v1770
      %v1819 = vadd.f32 %v1609, %v1773
      %v1820 = vadd.f32 %v1610, %v1778
      %v1821 = vadd.f32 %v1611, %v1781
      %v1822 = vadd.f32 %v1612, %v1786
      %v1823 = vadd.f32 %v1613, %v1789
      %v1824 = vrot.slane %v408, 2
      %v1825 = vrot.slane %v409, 2
      %v1826 = vsel %vm1037, %v1824, %v1825
      %v1827 = vrot.slane %v410, 2
      %v1828 = vsel %vm1037, %v1825, %v1827
      %v1831 = vpack.c.bf16 %v1828, %v1826
      %v1833 = vunpack.c.l.b16 %v354
      %v1834 = vpack.c.b16 %v1833, %v1833
      %v1835 = vrot.slane %v1834, 2
      %v1837 = vsel %vm611, %v1831, 0
      %v1840 = vsel %vm660, %v1835, 0
      %1842 = vmatprep.subr.bf16.mxu0 0
      %1843 = vmatpush1.bf16.msra.mxu0 %v1840
      %1844 = vmatprep.subr.bf16.mxu0 0
      %1845 = vmatpush1.bf16.msra.mxu0 0
      %1846 = vmatprep.subr.bf16.mxu0 0
      %1847 = vmatpush1.bf16.msra.mxu0 0
      %1848 = vmatprep.subr.bf16.mxu0 0
      %1849 = vmatpush1.bf16.msra.mxu0 0
      %1850 = vmatprep.subr.bf16.mxu0 0
      %1851 = vmatpush1.bf16.msra.mxu0 0
      %1852 = vmatprep.subr.bf16.mxu0 0
      %1853 = vmatpush1.bf16.msra.mxu0 0
      %1854 = vmatprep.subr.bf16.mxu0 0
      %1855 = vmatpush1.bf16.msra.mxu0 0
      %1856 = vmatprep.subr.bf16.mxu0 0
      %1857 = vmatpush1.bf16.msra.mxu0 0
      %1858 = vmatprep.subr.bf16.mxu0 0
      %1859 = vmatpush1.bf16.msra.mxu0 0
      %1860 = vmatprep.subr.bf16.mxu0 0
      %1861 = vmatpush1.bf16.msra.mxu0 0
      %1862 = vmatprep.subr.bf16.mxu0 0
      %1863 = vmatpush1.bf16.msra.mxu0 0
      %1864 = vmatprep.subr.bf16.mxu0 0
      %1865 = vmatpush1.bf16.msra.mxu0 0
      %1866 = vmatprep.subr.bf16.mxu0 0
      %1867 = vmatpush1.bf16.msra.mxu0 0
      %1868 = vmatprep.subr.bf16.mxu0 0
      %1869 = vmatpush1.bf16.msra.mxu0 0
      %1870 = vmatprep.subr.bf16.mxu0 0
      %1871 = vmatpush1.bf16.msra.mxu0 0
      %1872 = vmatprep.subr.bf16.mxu0 0
      %1873 = vmatpush1.bf16.msra.mxu0 0
      %1874 = vmatprep.mubr.bf16.mxu0 0
      %1875 = vmatmul.mubr.bf16.gmra.mrb[0].mxu0 %v1170
      %v1876 = vpop.f32.mrb[0].mxu0
      %v1877 = vadd.f32 0.0, %v1876
      %v1878 = vpop.f32.mrb[0].mxu0
      %v1879 = vpop.f32.mrb[0].mxu0
      %v1880 = vadd.f32 0.0, %v1879
      %v1881 = vpop.f32.mrb[0].mxu0
      %1882 = vmatprep.mubr.bf16.mxu0 0
      %1883 = vmatmul.mubr.bf16.gmra.mrb[0].mxu0 %v1173
      %v1884 = vpop.f32.mrb[0].mxu0
      %v1885 = vadd.f32 0.0, %v1884
      %v1886 = vpop.f32.mrb[0].mxu0
      %v1887 = vpop.f32.mrb[0].mxu0
      %v1888 = vadd.f32 0.0, %v1887
      %v1889 = vpop.f32.mrb[0].mxu0
      %1890 = vmatprep.mubr.bf16.mxu0 0
      %1891 = vmatmul.mubr.bf16.gmra.mrb[0].mxu0 %v1176
      %v1892 = vpop.f32.mrb[0].mxu0
      %v1893 = vadd.f32 0.0, %v1892
      %v1894 = vpop.f32.mrb[0].mxu0
      %v1895 = vpop.f32.mrb[0].mxu0
      %v1896 = vadd.f32 0.0, %v1895
      %v1897 = vpop.f32.mrb[0].mxu0
      %1898 = vmatprep.mubr.bf16.mxu0 0
      %1899 = vmatmul.mubr.bf16.gmra.mrb[0].mxu0 %v1179
      %v1900 = vpop.f32.mrb[0].mxu0
      %v1901 = vadd.f32 0.0, %v1900
      %v1902 = vpop.f32.mrb[0].mxu0
      %v1903 = vpop.f32.mrb[0].mxu0
      %v1904 = vadd.f32 0.0, %v1903
      %v1905 = vpop.f32.mrb[0].mxu0
      %1906 = vmatprep.mubr.bf16.mxu0 0
      %1907 = vmatmul.mubr.bf16.gmra.mrb[0].mxu0 %v1182
      %v1908 = vpop.f32.mrb[0].mxu0
      %v1909 = vadd.f32 0.0, %v1908
      %v1910 = vpop.f32.mrb[0].mxu0
      %v1911 = vpop.f32.mrb[0].mxu0
      %v1912 = vadd.f32 0.0, %v1911
      %v1913 = vpop.f32.mrb[0].mxu0
      %1914 = vmatprep.mubr.bf16.mxu0 0
      %1915 = vmatmul.mubr.bf16.gmra.mrb[0].mxu0 %v1185
      %v1916 = vpop.f32.mrb[0].mxu0
      %v1917 = vadd.f32 0.0, %v1916
      %v1918 = vpop.f32.mrb[0].mxu0
      %v1919 = vpop.f32.mrb[0].mxu0
      %v1920 = vadd.f32 0.0, %v1919
      %v1921 = vpop.f32.mrb[0].mxu0
      %1922 = vmatprep.mubr.bf16.mxu0 0
      %1923 = vmatmul.mubr.bf16.gmra.mrb[0].mxu0 %v1188
      %v1924 = vpop.f32.mrb[0].mxu0
      %v1925 = vadd.f32 0.0, %v1924
      %v1926 = vpop.f32.mrb[0].mxu0
      %v1927 = vpop.f32.mrb[0].mxu0
      %v1928 = vadd.f32 0.0, %v1927
      %v1929 = vpop.f32.mrb[0].mxu0
      %1930 = vmatprep.mubr.bf16.mxu0 0
      %1931 = vmatmul.mubr.bf16.gmra.mrb[0].mxu0 %v1191
      %v1932 = vpop.f32.mrb[0].mxu0
      %v1933 = vadd.f32 0.0, %v1932
      %v1934 = vpop.f32.mrb[0].mxu0
      %v1935 = vpop.f32.mrb[0].mxu0
      %v1936 = vadd.f32 0.0, %v1935
      %v1937 = vpop.f32.mrb[0].mxu0
      %1938 = vmatprep.mubr.bf16.mxu0 0
      %1939 = vmatmul.mubr.bf16.gmra.mrb[0].mxu0 %v1194
      %v1940 = vpop.f32.mrb[0].mxu0
      %v1941 = vadd.f32 0.0, %v1940
      %v1942 = vpop.f32.mrb[0].mxu0
      %v1943 = vpop.f32.mrb[0].mxu0
      %v1944 = vadd.f32 0.0, %v1943
      %v1945 = vpop.f32.mrb[0].mxu0
      %1946 = vmatprep.mubr.bf16.mxu0 0
      %1947 = vmatmul.mubr.bf16.gmra.mrb[0].mxu0 %v1197
      %v1948 = vpop.f32.mrb[0].mxu0
      %v1949 = vadd.f32 0.0, %v1948
      %v1950 = vpop.f32.mrb[0].mxu0
      %v1951 = vpop.f32.mrb[0].mxu0
      %v1952 = vadd.f32 0.0, %v1951
      %v1953 = vpop.f32.mrb[0].mxu0
      %1954 = vmatprep.mubr.bf16.mxu0 0
      %1955 = vmatmul.mubr.bf16.gmra.mrb[0].mxu0 %v1200
      %v1956 = vpop.f32.mrb[0].mxu0
      %v1957 = vadd.f32 0.0, %v1956
      %v1958 = vpop.f32.mrb[0].mxu0
      %v1959 = vpop.f32.mrb[0].mxu0
      %v1960 = vadd.f32 0.0, %v1959
      %v1961 = vpop.f32.mrb[0].mxu0
      %1962 = vmatprep.mubr.bf16.mxu0 0
      %1963 = vmatmul.mubr.bf16.gmra.mrb[0].mxu0 %v1203
      %v1964 = vpop.f32.mrb[0].mxu0
      %v1965 = vadd.f32 0.0, %v1964
      %v1966 = vpop.f32.mrb[0].mxu0
      %v1967 = vpop.f32.mrb[0].mxu0
      %v1968 = vadd.f32 0.0, %v1967
      %v1969 = vpop.f32.mrb[0].mxu0
      %1970 = vmatprep.mubr.bf16.mxu0 0
      %1971 = vmatmul.mubr.bf16.gmra.mrb[0].mxu0 %v1206
      %v1972 = vpop.f32.mrb[0].mxu0
      %v1973 = vadd.f32 0.0, %v1972
      %v1974 = vpop.f32.mrb[0].mxu0
      %v1975 = vpop.f32.mrb[0].mxu0
      %v1976 = vadd.f32 0.0, %v1975
      %v1977 = vpop.f32.mrb[0].mxu0
      %1978 = vmatprep.mubr.bf16.mxu0 0
      %1979 = vmatmul.mubr.bf16.gmra.mrb[0].mxu0 %v1209
      %v1980 = vpop.f32.mrb[0].mxu0
      %v1981 = vadd.f32 0.0, %v1980
      %v1982 = vpop.f32.mrb[0].mxu0
      %v1983 = vpop.f32.mrb[0].mxu0
      %v1984 = vadd.f32 0.0, %v1983
      %v1985 = vpop.f32.mrb[0].mxu0
      %1986 = vmatprep.mubr.bf16.mxu0 0
      %1987 = vmatmul.mubr.bf16.gmra.mrb[0].mxu0 %v1212
      %v1988 = vpop.f32.mrb[0].mxu0
      %v1989 = vadd.f32 0.0, %v1988
      %v1990 = vpop.f32.mrb[0].mxu0
      %v1991 = vpop.f32.mrb[0].mxu0
      %v1992 = vadd.f32 0.0, %v1991
      %v1993 = vpop.f32.mrb[0].mxu0
      %1994 = vmatprep.mubr.bf16.mxu0 0
      %1995 = vmatmul.mubr.bf16.gmra.mrb[0].mxu0 %v1837
      %v1996 = vpop.f32.mrb[0].mxu0
      %v1997 = vadd.f32 0.0, %v1996
      %v1998 = vpop.f32.mrb[0].mxu0
      %v1999 = vpop.f32.mrb[0].mxu0
      %v2000 = vadd.f32 0.0, %v1999
      %v2001 = vpop.f32.mrb[0].mxu0
      %2002 = vdwg.mxu0
      %v2003 = vadd.f32 %v1792, %v1877
      %v2004 = vadd.f32 %v1793, %v1880
      %v2005 = vadd.f32 %v1794, %v1885
      %v2006 = vadd.f32 %v1795, %v1888
      %v2007 = vadd.f32 %v1796, %v1893
      %v2008 = vadd.f32 %v1797, %v1896
      %v2009 = vadd.f32 %v1798, %v1901
      %v2010 = vadd.f32 %v1799, %v1904
      %v2011 = vadd.f32 %v1800, %v1909
      %v2012 = vadd.f32 %v1801, %v1912
      %v2013 = vadd.f32 %v1802, %v1917
      %v2014 = vadd.f32 %v1803, %v1920
      %v2015 = vadd.f32 %v1804, %v1925
      %v2016 = vadd.f32 %v1805, %v1928
      %v2017 = vadd.f32 %v1806, %v1933
      %v2018 = vadd.f32 %v1807, %v1936
      %v2019 = vadd.f32 %v1808, %v1941
      %v2020 = vadd.f32 %v1809, %v1944
      %v2021 = vadd.f32 %v1810, %v1949
      %v2022 = vadd.f32 %v1811, %v1952
      %v2023 = vadd.f32 %v1812, %v1957
      %v2024 = vadd.f32 %v1813, %v1960
      %v2025 = vadd.f32 %v1814, %v1965
      %v2026 = vadd.f32 %v1815, %v1968
      %v2027 = vadd.f32 %v1816, %v1973
      %v2028 = vadd.f32 %v1817, %v1976
      %v2029 = vadd.f32 %v1818, %v1981
      %v2030 = vadd.f32 %v1819, %v1984
      %v2031 = vadd.f32 %v1820, %v1989
      %v2032 = vadd.f32 %v1821, %v1992
      %v2033 = vadd.f32 %v1822, %v1997
      %v2034 = vadd.f32 %v1823, %v2000
      %v2035 = vpack.c.bf16 %v412, %v411
      %v2037 = vsel %vm611, %v2035, 0
      %v2040 = vsel %vm660, %v355, 0
      %2042 = vmatprep.subr.bf16.mxu0 0
      %2043 = vmatpush1.bf16.msra.mxu0 %v2040
      %2044 = vmatprep.subr.bf16.mxu0 0
      %2045 = vmatpush1.bf16.msra.mxu0 0
      %2046 = vmatprep.subr.bf16.mxu0 0
      %2047 = vmatpush1.bf16.msra.mxu0 0
      %2048 = vmatprep.subr.bf16.mxu0 0
      %2049 = vmatpush1.bf16.msra.mxu0 0
      %2050 = vmatprep.subr.bf16.mxu0 0
      %2051 = vmatpush1.bf16.msra.mxu0 0
      %2052 = vmatprep.subr.bf16.mxu0 0
      %2053 = vmatpush1.bf16.msra.mxu0 0
      %2054 = vmatprep.subr.bf16.mxu0 0
      %2055 = vmatpush1.bf16.msra.mxu0 0
      %2056 = vmatprep.subr.bf16.mxu0 0
      %2057 = vmatpush1.bf16.msra.mxu0 0
      %2058 = vmatprep.subr.bf16.mxu0 0
      %2059 = vmatpush1.bf16.msra.mxu0 0
      %2060 = vmatprep.subr.bf16.mxu0 0
      %2061 = vmatpush1.bf16.msra.mxu0 0
      %2062 = vmatprep.subr.bf16.mxu0 0
      %2063 = vmatpush1.bf16.msra.mxu0 0
      %2064 = vmatprep.subr.bf16.mxu0 0
      %2065 = vmatpush1.bf16.msra.mxu0 0
      %2066 = vmatprep.subr.bf16.mxu0 0
      %2067 = vmatpush1.bf16.msra.mxu0 0
      %2068 = vmatprep.subr.bf16.mxu0 0
      %2069 = vmatpush1.bf16.msra.mxu0 0
      %2070 = vmatprep.subr.bf16.mxu0 0
      %2071 = vmatpush1.bf16.msra.mxu0 0
      %2072 = vmatprep.subr.bf16.mxu0 0
      %2073 = vmatpush1.bf16.msra.mxu0 0
      %2074 = vmatprep.mubr.bf16.mxu0 0
      %2075 = vmatmul.mubr.bf16.gmra.mrb[0].mxu0 %v832
      %v2076 = vpop.f32.mrb[0].mxu0
      %v2077 = vadd.f32 0.0, %v2076
      %v2078 = vpop.f32.mrb[0].mxu0
      %v2079 = vpop.f32.mrb[0].mxu0
      %v2080 = vadd.f32 0.0, %v2079
      %v2081 = vpop.f32.mrb[0].mxu0
      %2082 = vmatprep.mubr.bf16.mxu0 0
      %2083 = vmatmul.mubr.bf16.gmra.mrb[0].mxu0 %v835
      %v2084 = vpop.f32.mrb[0].mxu0
      %v2085 = vadd.f32 0.0, %v2084
      %v2086 = vpop.f32.mrb[0].mxu0
      %v2087 = vpop.f32.mrb[0].mxu0
      %v2088 = vadd.f32 0.0, %v2087
      %v2089 = vpop.f32.mrb[0].mxu0
      %2090 = vmatprep.mubr.bf16.mxu0 0
      %2091 = vmatmul.mubr.bf16.gmra.mrb[0].mxu0 %v838
      %v2092 = vpop.f32.mrb[0].mxu0
      %v2093 = vadd.f32 0.0, %v2092
      %v2094 = vpop.f32.mrb[0].mxu0
      %v2095 = vpop.f32.mrb[0].mxu0
      %v2096 = vadd.f32 0.0, %v2095
      %v2097 = vpop.f32.mrb[0].mxu0
      %2098 = vmatprep.mubr.bf16.mxu0 0
      %2099 = vmatmul.mubr.bf16.gmra.mrb[0].mxu0 %v841
      %v2100 = vpop.f32.mrb[0].mxu0
      %v2101 = vadd.f32 0.0, %v2100
      %v2102 = vpop.f32.mrb[0].mxu0
      %v2103 = vpop.f32.mrb[0].mxu0
      %v2104 = vadd.f32 0.0, %v2103
      %v2105 = vpop.f32.mrb[0].mxu0
      %2106 = vmatprep.mubr.bf16.mxu0 0
      %2107 = vmatmul.mubr.bf16.gmra.mrb[0].mxu0 %v844
      %v2108 = vpop.f32.mrb[0].mxu0
      %v2109 = vadd.f32 0.0, %v2108
      %v2110 = vpop.f32.mrb[0].mxu0
      %v2111 = vpop.f32.mrb[0].mxu0
      %v2112 = vadd.f32 0.0, %v2111
      %v2113 = vpop.f32.mrb[0].mxu0
      %2114 = vmatprep.mubr.bf16.mxu0 0
      %2115 = vmatmul.mubr.bf16.gmra.mrb[0].mxu0 %v847
      %v2116 = vpop.f32.mrb[0].mxu0
      %v2117 = vadd.f32 0.0, %v2116
      %v2118 = vpop.f32.mrb[0].mxu0
      %v2119 = vpop.f32.mrb[0].mxu0
      %v2120 = vadd.f32 0.0, %v2119
      %v2121 = vpop.f32.mrb[0].mxu0
      %2122 = vmatprep.mubr.bf16.mxu0 0
      %2123 = vmatmul.mubr.bf16.gmra.mrb[0].mxu0 %v850
      %v2124 = vpop.f32.mrb[0].mxu0
      %v2125 = vadd.f32 0.0, %v2124
      %v2126 = vpop.f32.mrb[0].mxu0
      %v2127 = vpop.f32.mrb[0].mxu0
      %v2128 = vadd.f32 0.0, %v2127
      %v2129 = vpop.f32.mrb[0].mxu0
      %2130 = vmatprep.mubr.bf16.mxu0 0
      %2131 = vmatmul.mubr.bf16.gmra.mrb[0].mxu0 %v853
      %v2132 = vpop.f32.mrb[0].mxu0
      %v2133 = vadd.f32 0.0, %v2132
      %v2134 = vpop.f32.mrb[0].mxu0
      %v2135 = vpop.f32.mrb[0].mxu0
      %v2136 = vadd.f32 0.0, %v2135
      %v2137 = vpop.f32.mrb[0].mxu0
      %2138 = vmatprep.mubr.bf16.mxu0 0
      %2139 = vmatmul.mubr.bf16.gmra.mrb[0].mxu0 %v856
      %v2140 = vpop.f32.mrb[0].mxu0
      %v2141 = vadd.f32 0.0, %v2140
      %v2142 = vpop.f32.mrb[0].mxu0
      %v2143 = vpop.f32.mrb[0].mxu0
      %v2144 = vadd.f32 0.0, %v2143
      %v2145 = vpop.f32.mrb[0].mxu0
      %2146 = vmatprep.mubr.bf16.mxu0 0
      %2147 = vmatmul.mubr.bf16.gmra.mrb[0].mxu0 %v859
      %v2148 = vpop.f32.mrb[0].mxu0
      %v2149 = vadd.f32 0.0, %v2148
      %v2150 = vpop.f32.mrb[0].mxu0
      %v2151 = vpop.f32.mrb[0].mxu0
      %v2152 = vadd.f32 0.0, %v2151
      %v2153 = vpop.f32.mrb[0].mxu0
      %2154 = vmatprep.mubr.bf16.mxu0 0
      %2155 = vmatmul.mubr.bf16.gmra.mrb[0].mxu0 %v862
      %v2156 = vpop.f32.mrb[0].mxu0
      %v2157 = vadd.f32 0.0, %v2156
      %v2158 = vpop.f32.mrb[0].mxu0
      %v2159 = vpop.f32.mrb[0].mxu0
      %v2160 = vadd.f32 0.0, %v2159
      %v2161 = vpop.f32.mrb[0].mxu0
      %2162 = vmatprep.mubr.bf16.mxu0 0
      %2163 = vmatmul.mubr.bf16.gmra.mrb[0].mxu0 %v865
      %v2164 = vpop.f32.mrb[0].mxu0
      %v2165 = vadd.f32 0.0, %v2164
      %v2166 = vpop.f32.mrb[0].mxu0
      %v2167 = vpop.f32.mrb[0].mxu0
      %v2168 = vadd.f32 0.0, %v2167
      %v2169 = vpop.f32.mrb[0].mxu0
      %2170 = vmatprep.mubr.bf16.mxu0 0
      %2171 = vmatmul.mubr.bf16.gmra.mrb[0].mxu0 %v868
      %v2172 = vpop.f32.mrb[0].mxu0
      %v2173 = vadd.f32 0.0, %v2172
      %v2174 = vpop.f32.mrb[0].mxu0
      %v2175 = vpop.f32.mrb[0].mxu0
      %v2176 = vadd.f32 0.0, %v2175
      %v2177 = vpop.f32.mrb[0].mxu0
      %2178 = vmatprep.mubr.bf16.mxu0 0
      %2179 = vmatmul.mubr.bf16.gmra.mrb[0].mxu0 %v871
      %v2180 = vpop.f32.mrb[0].mxu0
      %v2181 = vadd.f32 0.0, %v2180
      %v2182 = vpop.f32.mrb[0].mxu0
      %v2183 = vpop.f32.mrb[0].mxu0
      %v2184 = vadd.f32 0.0, %v2183
      %v2185 = vpop.f32.mrb[0].mxu0
      %2186 = vmatprep.mubr.bf16.mxu0 0
      %2187 = vmatmul.mubr.bf16.gmra.mrb[0].mxu0 %v1416
      %v2188 = vpop.f32.mrb[0].mxu0
      %v2189 = vadd.f32 0.0, %v2188
      %v2190 = vpop.f32.mrb[0].mxu0
      %v2191 = vpop.f32.mrb[0].mxu0
      %v2192 = vadd.f32 0.0, %v2191
      %v2193 = vpop.f32.mrb[0].mxu0
      %2194 = vmatprep.mubr.bf16.mxu0 0
      %2195 = vmatmul.mubr.bf16.gmra.mrb[0].mxu0 %v2037
      %v2196 = vpop.f32.mrb[0].mxu0
      %v2197 = vadd.f32 0.0, %v2196
      %v2198 = vpop.f32.mrb[0].mxu0
      %v2199 = vpop.f32.mrb[0].mxu0
      %v2200 = vadd.f32 0.0, %v2199
      %v2201 = vpop.f32.mrb[0].mxu0
      %2202 = vdwg.mxu0
      %v2203 = vadd.f32 %v2003, %v2077
      %v2204 = vadd.f32 %v2004, %v2080
      %v2205 = vadd.f32 %v2005, %v2085
      %v2206 = vadd.f32 %v2006, %v2088
      %v2207 = vadd.f32 %v2007, %v2093
      %v2208 = vadd.f32 %v2008, %v2096
      %v2209 = vadd.f32 %v2009, %v2101
      %v2210 = vadd.f32 %v2010, %v2104
      %v2211 = vadd.f32 %v2011, %v2109
      %v2212 = vadd.f32 %v2012, %v2112
      %v2213 = vadd.f32 %v2013, %v2117
      %v2214 = vadd.f32 %v2014, %v2120
      %v2215 = vadd.f32 %v2015, %v2125
      %v2216 = vadd.f32 %v2016, %v2128
      %v2217 = vadd.f32 %v2017, %v2133
      %v2218 = vadd.f32 %v2018, %v2136
      %v2219 = vadd.f32 %v2019, %v2141
      %v2220 = vadd.f32 %v2020, %v2144
      %v2221 = vadd.f32 %v2021, %v2149
      %v2222 = vadd.f32 %v2022, %v2152
      %v2223 = vadd.f32 %v2023, %v2157
      %v2224 = vadd.f32 %v2024, %v2160
      %v2225 = vadd.f32 %v2025, %v2165
      %v2226 = vadd.f32 %v2026, %v2168
      %v2227 = vadd.f32 %v2027, %v2173
      %v2228 = vadd.f32 %v2028, %v2176
      %v2229 = vadd.f32 %v2029, %v2181
      %v2230 = vadd.f32 %v2030, %v2184
      %v2231 = vadd.f32 %v2031, %v2189
      %v2232 = vadd.f32 %v2032, %v2192
      %v2233 = vadd.f32 %v2033, %v2197
      %v2234 = vadd.f32 %v2034, %v2200
      %v2238 = vrot.slane %v411, 1
      %v2239 = vrot.slane %v412, 1
      %v2240 = vsel %vm478, %v2238, %v2239
      %v2241 = vrot.slane %v413, 1
      %v2242 = vsel %vm478, %v2239, %v2241
      %v2245 = vpack.c.bf16 %v2242, %v2240
      %v2247 = vunpack.c.l.b16 %v355
      %v2248 = vpack.c.b16 %v2247, %v2247
      %v2249 = vrot.slane %v2248, 2
      %v2251 = vsel %vm611, %v2245, 0
      %v2254 = vsel %vm660, %v2249, 0
      %2256 = vmatprep.subr.bf16.mxu0 0
      %2257 = vmatpush1.bf16.msra.mxu0 %v2254
      %2258 = vmatprep.subr.bf16.mxu0 0
      %2259 = vmatpush1.bf16.msra.mxu0 0
      %2260 = vmatprep.subr.bf16.mxu0 0
      %2261 = vmatpush1.bf16.msra.mxu0 0
      %2262 = vmatprep.subr.bf16.mxu0 0
      %2263 = vmatpush1.bf16.msra.mxu0 0
      %2264 = vmatprep.subr.bf16.mxu0 0
      %2265 = vmatpush1.bf16.msra.mxu0 0
      %2266 = vmatprep.subr.bf16.mxu0 0
      %2267 = vmatpush1.bf16.msra.mxu0 0
      %2268 = vmatprep.subr.bf16.mxu0 0
      %2269 = vmatpush1.bf16.msra.mxu0 0
      %2270 = vmatprep.subr.bf16.mxu0 0
      %2271 = vmatpush1.bf16.msra.mxu0 0
      %2272 = vmatprep.subr.bf16.mxu0 0
      %2273 = vmatpush1.bf16.msra.mxu0 0
      %2274 = vmatprep.subr.bf16.mxu0 0
      %2275 = vmatpush1.bf16.msra.mxu0 0
      %2276 = vmatprep.subr.bf16.mxu0 0
      %2277 = vmatpush1.bf16.msra.mxu0 0
      %2278 = vmatprep.subr.bf16.mxu0 0
      %2279 = vmatpush1.bf16.msra.mxu0 0
      %2280 = vmatprep.subr.bf16.mxu0 0
      %2281 = vmatpush1.bf16.msra.mxu0 0
      %2282 = vmatprep.subr.bf16.mxu0 0
      %2283 = vmatpush1.bf16.msra.mxu0 0
      %2284 = vmatprep.subr.bf16.mxu0 0
      %2285 = vmatpush1.bf16.msra.mxu0 0
      %2286 = vmatprep.subr.bf16.mxu0 0
      %2287 = vmatpush1.bf16.msra.mxu0 0
      %2288 = vmatprep.mubr.bf16.mxu0 0
      %2289 = vmatmul.mubr.bf16.gmra.mrb[0].mxu0 %v619
      %v2290 = vpop.f32.mrb[0].mxu0
      %v2291 = vadd.f32 0.0, %v2290
      %v2292 = vpop.f32.mrb[0].mxu0
      %v2293 = vpop.f32.mrb[0].mxu0
      %v2294 = vadd.f32 0.0, %v2293
      %v2295 = vpop.f32.mrb[0].mxu0
      %2296 = vmatprep.mubr.bf16.mxu0 0
      %2297 = vmatmul.mubr.bf16.gmra.mrb[0].mxu0 %v622
      %v2298 = vpop.f32.mrb[0].mxu0
      %v2299 = vadd.f32 0.0, %v2298
      %v2300 = vpop.f32.mrb[0].mxu0
      %v2301 = vpop.f32.mrb[0].mxu0
      %v2302 = vadd.f32 0.0, %v2301
      %v2303 = vpop.f32.mrb[0].mxu0
      %2304 = vmatprep.mubr.bf16.mxu0 0
      %2305 = vmatmul.mubr.bf16.gmra.mrb[0].mxu0 %v625
      %v2306 = vpop.f32.mrb[0].mxu0
      %v2307 = vadd.f32 0.0, %v2306
      %v2308 = vpop.f32.mrb[0].mxu0
      %v2309 = vpop.f32.mrb[0].mxu0
      %v2310 = vadd.f32 0.0, %v2309
      %v2311 = vpop.f32.mrb[0].mxu0
      %2312 = vmatprep.mubr.bf16.mxu0 0
      %2313 = vmatmul.mubr.bf16.gmra.mrb[0].mxu0 %v628
      %v2314 = vpop.f32.mrb[0].mxu0
      %v2315 = vadd.f32 0.0, %v2314
      %v2316 = vpop.f32.mrb[0].mxu0
      %v2317 = vpop.f32.mrb[0].mxu0
      %v2318 = vadd.f32 0.0, %v2317
      %v2319 = vpop.f32.mrb[0].mxu0
      %2320 = vmatprep.mubr.bf16.mxu0 0
      %2321 = vmatmul.mubr.bf16.gmra.mrb[0].mxu0 %v631
      %v2322 = vpop.f32.mrb[0].mxu0
      %v2323 = vadd.f32 0.0, %v2322
      %v2324 = vpop.f32.mrb[0].mxu0
      %v2325 = vpop.f32.mrb[0].mxu0
      %v2326 = vadd.f32 0.0, %v2325
      %v2327 = vpop.f32.mrb[0].mxu0
      %2328 = vmatprep.mubr.bf16.mxu0 0
      %2329 = vmatmul.mubr.bf16.gmra.mrb[0].mxu0 %v634
      %v2330 = vpop.f32.mrb[0].mxu0
      %v2331 = vadd.f32 0.0, %v2330
      %v2332 = vpop.f32.mrb[0].mxu0
      %v2333 = vpop.f32.mrb[0].mxu0
      %v2334 = vadd.f32 0.0, %v2333
      %v2335 = vpop.f32.mrb[0].mxu0
      %2336 = vmatprep.mubr.bf16.mxu0 0
      %2337 = vmatmul.mubr.bf16.gmra.mrb[0].mxu0 %v637
      %v2338 = vpop.f32.mrb[0].mxu0
      %v2339 = vadd.f32 0.0, %v2338
      %v2340 = vpop.f32.mrb[0].mxu0
      %v2341 = vpop.f32.mrb[0].mxu0
      %v2342 = vadd.f32 0.0, %v2341
      %v2343 = vpop.f32.mrb[0].mxu0
      %2344 = vmatprep.mubr.bf16.mxu0 0
      %2345 = vmatmul.mubr.bf16.gmra.mrb[0].mxu0 %v640
      %v2346 = vpop.f32.mrb[0].mxu0
      %v2347 = vadd.f32 0.0, %v2346
      %v2348 = vpop.f32.mrb[0].mxu0
      %v2349 = vpop.f32.mrb[0].mxu0
      %v2350 = vadd.f32 0.0, %v2349
      %v2351 = vpop.f32.mrb[0].mxu0
      %2352 = vmatprep.mubr.bf16.mxu0 0
      %2353 = vmatmul.mubr.bf16.gmra.mrb[0].mxu0 %v643
      %v2354 = vpop.f32.mrb[0].mxu0
      %v2355 = vadd.f32 0.0, %v2354
      %v2356 = vpop.f32.mrb[0].mxu0
      %v2357 = vpop.f32.mrb[0].mxu0
      %v2358 = vadd.f32 0.0, %v2357
      %v2359 = vpop.f32.mrb[0].mxu0
      %2360 = vmatprep.mubr.bf16.mxu0 0
      %2361 = vmatmul.mubr.bf16.gmra.mrb[0].mxu0 %v646
      %v2362 = vpop.f32.mrb[0].mxu0
      %v2363 = vadd.f32 0.0, %v2362
      %v2364 = vpop.f32.mrb[0].mxu0
      %v2365 = vpop.f32.mrb[0].mxu0
      %v2366 = vadd.f32 0.0, %v2365
      %v2367 = vpop.f32.mrb[0].mxu0
      %2368 = vmatprep.mubr.bf16.mxu0 0
      %2369 = vmatmul.mubr.bf16.gmra.mrb[0].mxu0 %v649
      %v2370 = vpop.f32.mrb[0].mxu0
      %v2371 = vadd.f32 0.0, %v2370
      %v2372 = vpop.f32.mrb[0].mxu0
      %v2373 = vpop.f32.mrb[0].mxu0
      %v2374 = vadd.f32 0.0, %v2373
      %v2375 = vpop.f32.mrb[0].mxu0
      %2376 = vmatprep.mubr.bf16.mxu0 0
      %2377 = vmatmul.mubr.bf16.gmra.mrb[0].mxu0 %v652
      %v2378 = vpop.f32.mrb[0].mxu0
      %v2379 = vadd.f32 0.0, %v2378
      %v2380 = vpop.f32.mrb[0].mxu0
      %v2381 = vpop.f32.mrb[0].mxu0
      %v2382 = vadd.f32 0.0, %v2381
      %v2383 = vpop.f32.mrb[0].mxu0
      %2384 = vmatprep.mubr.bf16.mxu0 0
      %2385 = vmatmul.mubr.bf16.gmra.mrb[0].mxu0 %v655
      %v2386 = vpop.f32.mrb[0].mxu0
      %v2387 = vadd.f32 0.0, %v2386
      %v2388 = vpop.f32.mrb[0].mxu0
      %v2389 = vpop.f32.mrb[0].mxu0
      %v2390 = vadd.f32 0.0, %v2389
      %v2391 = vpop.f32.mrb[0].mxu0
      %2392 = vmatprep.mubr.bf16.mxu0 0
      %2393 = vmatmul.mubr.bf16.gmra.mrb[0].mxu0 %v658
      %v2394 = vpop.f32.mrb[0].mxu0
      %v2395 = vadd.f32 0.0, %v2394
      %v2396 = vpop.f32.mrb[0].mxu0
      %v2397 = vpop.f32.mrb[0].mxu0
      %v2398 = vadd.f32 0.0, %v2397
      %v2399 = vpop.f32.mrb[0].mxu0
      %2400 = vmatprep.mubr.bf16.mxu0 0
      %2401 = vmatmul.mubr.bf16.gmra.mrb[0].mxu0 %v1626
      %v2402 = vpop.f32.mrb[0].mxu0
      %v2403 = vadd.f32 0.0, %v2402
      %v2404 = vpop.f32.mrb[0].mxu0
      %v2405 = vpop.f32.mrb[0].mxu0
      %v2406 = vadd.f32 0.0, %v2405
      %v2407 = vpop.f32.mrb[0].mxu0
      %2408 = vmatprep.mubr.bf16.mxu0 0
      %2409 = vmatmul.mubr.bf16.gmra.mrb[0].mxu0 %v2251
      %v2410 = vpop.f32.mrb[0].mxu0
      %v2411 = vadd.f32 0.0, %v2410
      %v2412 = vpop.f32.mrb[0].mxu0
      %v2413 = vpop.f32.mrb[0].mxu0
      %v2414 = vadd.f32 0.0, %v2413
      %v2415 = vpop.f32.mrb[0].mxu0
      %2416 = vdwg.mxu0
      %v2417 = vadd.f32 %v2203, %v2291
      %v2418 = vadd.f32 %v2204, %v2294
      %v2419 = vadd.f32 %v2205, %v2299
      %v2420 = vadd.f32 %v2206, %v2302
      %v2421 = vadd.f32 %v2207, %v2307
      %v2422 = vadd.f32 %v2208, %v2310
      %v2423 = vadd.f32 %v2209, %v2315
      %v2424 = vadd.f32 %v2210, %v2318
      %v2425 = vadd.f32 %v2211, %v2323
      %v2426 = vadd.f32 %v2212, %v2326
      %v2427 = vadd.f32 %v2213, %v2331
      %v2428 = vadd.f32 %v2214, %v2334
      %v2429 = vadd.f32 %v2215, %v2339
      %v2430 = vadd.f32 %v2216, %v2342
      %v2431 = vadd.f32 %v2217, %v2347
      %v2432 = vadd.f32 %v2218, %v2350
      %v2433 = vadd.f32 %v2219, %v2355
      %v2434 = vadd.f32 %v2220, %v2358
      %v2435 = vadd.f32 %v2221, %v2363
      %v2436 = vadd.f32 %v2222, %v2366
      %v2437 = vadd.f32 %v2223, %v2371
      %v2438 = vadd.f32 %v2224, %v2374
      %v2439 = vadd.f32 %v2225, %v2379
      %v2440 = vadd.f32 %v2226, %v2382
      %v2441 = vadd.f32 %v2227, %v2387
      %v2442 = vadd.f32 %v2228, %v2390
      %v2443 = vadd.f32 %v2229, %v2395
      %v2444 = vadd.f32 %v2230, %v2398
      %v2445 = vadd.f32 %v2231, %v2403
      %v2446 = vadd.f32 %v2232, %v2406
      %v2447 = vadd.f32 %v2233, %v2411
      %v2448 = vadd.f32 %v2234, %v2414
      %v2449 = vrot.slane %v411, 2
      %v2450 = vrot.slane %v412, 2
      %v2451 = vsel %vm1037, %v2449, %v2450
      %v2452 = vrot.slane %v413, 2
      %v2453 = vsel %vm1037, %v2450, %v2452
      %v2456 = vpack.c.bf16 %v2453, %v2451
      %v2458 = vsel %vm611, %v2456, 0
      %v2461 = vsel %vm660, %v356, 0
      %2463 = vmatprep.subr.bf16.mxu0 0
      %2464 = vmatpush1.bf16.msra.mxu0 %v2461
      %2465 = vmatprep.subr.bf16.mxu0 0
      %2466 = vmatpush1.bf16.msra.mxu0 0
      %2467 = vmatprep.subr.bf16.mxu0 0
      %2468 = vmatpush1.bf16.msra.mxu0 0
      %2469 = vmatprep.subr.bf16.mxu0 0
      %2470 = vmatpush1.bf16.msra.mxu0 0
      %2471 = vmatprep.subr.bf16.mxu0 0
      %2472 = vmatpush1.bf16.msra.mxu0 0
      %2473 = vmatprep.subr.bf16.mxu0 0
      %2474 = vmatpush1.bf16.msra.mxu0 0
      %2475 = vmatprep.subr.bf16.mxu0 0
      %2476 = vmatpush1.bf16.msra.mxu0 0
      %2477 = vmatprep.subr.bf16.mxu0 0
      %2478 = vmatpush1.bf16.msra.mxu0 0
      %2479 = vmatprep.subr.bf16.mxu0 0
      %2480 = vmatpush1.bf16.msra.mxu0 0
      %2481 = vmatprep.subr.bf16.mxu0 0
      %2482 = vmatpush1.bf16.msra.mxu0 0
      %2483 = vmatprep.subr.bf16.mxu0 0
      %2484 = vmatpush1.bf16.msra.mxu0 0
      %2485 = vmatprep.subr.bf16.mxu0 0
      %2486 = vmatpush1.bf16.msra.mxu0 0
      %2487 = vmatprep.subr.bf16.mxu0 0
      %2488 = vmatpush1.bf16.msra.mxu0 0
      %2489 = vmatprep.subr.bf16.mxu0 0
      %2490 = vmatpush1.bf16.msra.mxu0 0
      %2491 = vmatprep.subr.bf16.mxu0 0
      %2492 = vmatpush1.bf16.msra.mxu0 0
      %2493 = vmatprep.subr.bf16.mxu0 0
      %2494 = vmatpush1.bf16.msra.mxu0 0
      %2495 = vmatprep.mubr.bf16.mxu0 0
      %2496 = vmatmul.mubr.bf16.gmra.mrb[0].mxu0 %v1173
      %v2497 = vpop.f32.mrb[0].mxu0
      %v2498 = vadd.f32 0.0, %v2497
      %v2499 = vpop.f32.mrb[0].mxu0
      %v2500 = vpop.f32.mrb[0].mxu0
      %v2501 = vadd.f32 0.0, %v2500
      %v2502 = vpop.f32.mrb[0].mxu0
      %2503 = vmatprep.mubr.bf16.mxu0 0
      %2504 = vmatmul.mubr.bf16.gmra.mrb[0].mxu0 %v1176
      %v2505 = vpop.f32.mrb[0].mxu0
      %v2506 = vadd.f32 0.0, %v2505
      %v2507 = vpop.f32.mrb[0].mxu0
      %v2508 = vpop.f32.mrb[0].mxu0
      %v2509 = vadd.f32 0.0, %v2508
      %v2510 = vpop.f32.mrb[0].mxu0
      %2511 = vmatprep.mubr.bf16.mxu0 0
      %2512 = vmatmul.mubr.bf16.gmra.mrb[0].mxu0 %v1179
      %v2513 = vpop.f32.mrb[0].mxu0
      %v2514 = vadd.f32 0.0, %v2513
      %v2515 = vpop.f32.mrb[0].mxu0
      %v2516 = vpop.f32.mrb[0].mxu0
      %v2517 = vadd.f32 0.0, %v2516
      %v2518 = vpop.f32.mrb[0].mxu0
      %2519 = vmatprep.mubr.bf16.mxu0 0
      %2520 = vmatmul.mubr.bf16.gmra.mrb[0].mxu0 %v1182
      %v2521 = vpop.f32.mrb[0].mxu0
      %v2522 = vadd.f32 0.0, %v2521
      %v2523 = vpop.f32.mrb[0].mxu0
      %v2524 = vpop.f32.mrb[0].mxu0
      %v2525 = vadd.f32 0.0, %v2524
      %v2526 = vpop.f32.mrb[0].mxu0
      %2527 = vmatprep.mubr.bf16.mxu0 0
      %2528 = vmatmul.mubr.bf16.gmra.mrb[0].mxu0 %v1185
      %v2529 = vpop.f32.mrb[0].mxu0
      %v2530 = vadd.f32 0.0, %v2529
      %v2531 = vpop.f32.mrb[0].mxu0
      %v2532 = vpop.f32.mrb[0].mxu0
      %v2533 = vadd.f32 0.0, %v2532
      %v2534 = vpop.f32.mrb[0].mxu0
      %2535 = vmatprep.mubr.bf16.mxu0 0
      %2536 = vmatmul.mubr.bf16.gmra.mrb[0].mxu0 %v1188
      %v2537 = vpop.f32.mrb[0].mxu0
      %v2538 = vadd.f32 0.0, %v2537
      %v2539 = vpop.f32.mrb[0].mxu0
      %v2540 = vpop.f32.mrb[0].mxu0
      %v2541 = vadd.f32 0.0, %v2540
      %v2542 = vpop.f32.mrb[0].mxu0
      %2543 = vmatprep.mubr.bf16.mxu0 0
      %2544 = vmatmul.mubr.bf16.gmra.mrb[0].mxu0 %v1191
      %v2545 = vpop.f32.mrb[0].mxu0
      %v2546 = vadd.f32 0.0, %v2545
      %v2547 = vpop.f32.mrb[0].mxu0
      %v2548 = vpop.f32.mrb[0].mxu0
      %v2549 = vadd.f32 0.0, %v2548
      %v2550 = vpop.f32.mrb[0].mxu0
      %2551 = vmatprep.mubr.bf16.mxu0 0
      %2552 = vmatmul.mubr.bf16.gmra.mrb[0].mxu0 %v1194
      %v2553 = vpop.f32.mrb[0].mxu0
      %v2554 = vadd.f32 0.0, %v2553
      %v2555 = vpop.f32.mrb[0].mxu0
      %v2556 = vpop.f32.mrb[0].mxu0
      %v2557 = vadd.f32 0.0, %v2556
      %v2558 = vpop.f32.mrb[0].mxu0
      %2559 = vmatprep.mubr.bf16.mxu0 0
      %2560 = vmatmul.mubr.bf16.gmra.mrb[0].mxu0 %v1197
      %v2561 = vpop.f32.mrb[0].mxu0
      %v2562 = vadd.f32 0.0, %v2561
      %v2563 = vpop.f32.mrb[0].mxu0
      %v2564 = vpop.f32.mrb[0].mxu0
      %v2565 = vadd.f32 0.0, %v2564
      %v2566 = vpop.f32.mrb[0].mxu0
      %2567 = vmatprep.mubr.bf16.mxu0 0
      %2568 = vmatmul.mubr.bf16.gmra.mrb[0].mxu0 %v1200
      %v2569 = vpop.f32.mrb[0].mxu0
      %v2570 = vadd.f32 0.0, %v2569
      %v2571 = vpop.f32.mrb[0].mxu0
      %v2572 = vpop.f32.mrb[0].mxu0
      %v2573 = vadd.f32 0.0, %v2572
      %v2574 = vpop.f32.mrb[0].mxu0
      %2575 = vmatprep.mubr.bf16.mxu0 0
      %2576 = vmatmul.mubr.bf16.gmra.mrb[0].mxu0 %v1203
      %v2577 = vpop.f32.mrb[0].mxu0
      %v2578 = vadd.f32 0.0, %v2577
      %v2579 = vpop.f32.mrb[0].mxu0
      %v2580 = vpop.f32.mrb[0].mxu0
      %v2581 = vadd.f32 0.0, %v2580
      %v2582 = vpop.f32.mrb[0].mxu0
      %2583 = vmatprep.mubr.bf16.mxu0 0
      %2584 = vmatmul.mubr.bf16.gmra.mrb[0].mxu0 %v1206
      %v2585 = vpop.f32.mrb[0].mxu0
      %v2586 = vadd.f32 0.0, %v2585
      %v2587 = vpop.f32.mrb[0].mxu0
      %v2588 = vpop.f32.mrb[0].mxu0
      %v2589 = vadd.f32 0.0, %v2588
      %v2590 = vpop.f32.mrb[0].mxu0
      %2591 = vmatprep.mubr.bf16.mxu0 0
      %2592 = vmatmul.mubr.bf16.gmra.mrb[0].mxu0 %v1209
      %v2593 = vpop.f32.mrb[0].mxu0
      %v2594 = vadd.f32 0.0, %v2593
      %v2595 = vpop.f32.mrb[0].mxu0
      %v2596 = vpop.f32.mrb[0].mxu0
      %v2597 = vadd.f32 0.0, %v2596
      %v2598 = vpop.f32.mrb[0].mxu0
      %2599 = vmatprep.mubr.bf16.mxu0 0
      %2600 = vmatmul.mubr.bf16.gmra.mrb[0].mxu0 %v1212
      %v2601 = vpop.f32.mrb[0].mxu0
      %v2602 = vadd.f32 0.0, %v2601
      %v2603 = vpop.f32.mrb[0].mxu0
      %v2604 = vpop.f32.mrb[0].mxu0
      %v2605 = vadd.f32 0.0, %v2604
      %v2606 = vpop.f32.mrb[0].mxu0
      %2607 = vmatprep.mubr.bf16.mxu0 0
      %2608 = vmatmul.mubr.bf16.gmra.mrb[0].mxu0 %v1837
      %v2609 = vpop.f32.mrb[0].mxu0
      %v2610 = vadd.f32 0.0, %v2609
      %v2611 = vpop.f32.mrb[0].mxu0
      %v2612 = vpop.f32.mrb[0].mxu0
      %v2613 = vadd.f32 0.0, %v2612
      %v2614 = vpop.f32.mrb[0].mxu0
      %2615 = vmatprep.mubr.bf16.mxu0 0
      %2616 = vmatmul.mubr.bf16.gmra.mrb[0].mxu0 %v2458
      %v2617 = vpop.f32.mrb[0].mxu0
      %v2618 = vadd.f32 0.0, %v2617
      %v2619 = vpop.f32.mrb[0].mxu0
      %v2620 = vpop.f32.mrb[0].mxu0
      %v2621 = vadd.f32 0.0, %v2620
      %v2622 = vpop.f32.mrb[0].mxu0
      %2623 = vdwg.mxu0
      %v2624 = vadd.f32 %v2417, %v2498
      %v2625 = vadd.f32 %v2418, %v2501
      %v2626 = vadd.f32 %v2419, %v2506
      %v2627 = vadd.f32 %v2420, %v2509
      %v2628 = vadd.f32 %v2421, %v2514
      %v2629 = vadd.f32 %v2422, %v2517
      %v2630 = vadd.f32 %v2423, %v2522
      %v2631 = vadd.f32 %v2424, %v2525
      %v2632 = vadd.f32 %v2425, %v2530
      %v2633 = vadd.f32 %v2426, %v2533
      %v2634 = vadd.f32 %v2427, %v2538
      %v2635 = vadd.f32 %v2428, %v2541
      %v2636 = vadd.f32 %v2429, %v2546
      %v2637 = vadd.f32 %v2430, %v2549
      %v2638 = vadd.f32 %v2431, %v2554
      %v2639 = vadd.f32 %v2432, %v2557
      %v2640 = vadd.f32 %v2433, %v2562
      %v2641 = vadd.f32 %v2434, %v2565
      %v2642 = vadd.f32 %v2435, %v2570
      %v2643 = vadd.f32 %v2436, %v2573
      %v2644 = vadd.f32 %v2437, %v2578
      %v2645 = vadd.f32 %v2438, %v2581
      %v2646 = vadd.f32 %v2439, %v2586
      %v2647 = vadd.f32 %v2440, %v2589
      %v2648 = vadd.f32 %v2441, %v2594
      %v2649 = vadd.f32 %v2442, %v2597
      %v2650 = vadd.f32 %v2443, %v2602
      %v2651 = vadd.f32 %v2444, %v2605
      %v2652 = vadd.f32 %v2445, %v2610
      %v2653 = vadd.f32 %v2446, %v2613
      %v2654 = vadd.f32 %v2447, %v2618
      %v2655 = vadd.f32 %v2448, %v2621
      %vm2656 = vcmask 261120
      %v2657 = vsel %vm2656, %v2624, -inf
      %v2658 = vsel %vm2656, %v2626, -inf
      %v2659 = vmax.f32 %v2657, %v2658
      %v2660 = vsel %vm2656, %v2625, -inf
      %v2661 = vsel %vm2656, %v2627, -inf
      %v2662 = vmax.f32 %v2660, %v2661
      %v2663 = vsel %vm2656, %v2628, -inf
      %v2664 = vsel %vm2656, %v2630, -inf
      %v2665 = vmax.f32 %v2663, %v2664
      %v2666 = vsel %vm2656, %v2629, -inf
      %v2667 = vsel %vm2656, %v2631, -inf
      %v2668 = vmax.f32 %v2666, %v2667
      %v2669 = vsel %vm2656, %v2632, -inf
      %v2670 = vsel %vm2656, %v2634, -inf
      %v2671 = vmax.f32 %v2669, %v2670
      %v2672 = vsel %vm2656, %v2633, -inf
      %v2673 = vsel %vm2656, %v2635, -inf
      %v2674 = vmax.f32 %v2672, %v2673
      %v2675 = vsel %vm2656, %v2636, -inf
      %v2676 = vsel %vm2656, %v2638, -inf
      %v2677 = vmax.f32 %v2675, %v2676
      %v2678 = vsel %vm2656, %v2637, -inf
      %v2679 = vsel %vm2656, %v2639, -inf
      %v2680 = vmax.f32 %v2678, %v2679
      %v2681 = vsel %vm2656, %v2640, -inf
      %v2682 = vsel %vm2656, %v2642, -inf
      %v2683 = vmax.f32 %v2681, %v2682
      %v2684 = vsel %vm2656, %v2641, -inf
      %v2685 = vsel %vm2656, %v2643, -inf
      %v2686 = vmax.f32 %v2684, %v2685
      %v2687 = vsel %vm2656, %v2644, -inf
      %v2688 = vsel %vm2656, %v2646, -inf
      %v2689 = vmax.f32 %v2687, %v2688
      %v2690 = vsel %vm2656, %v2645, -inf
      %v2691 = vsel %vm2656, %v2647, -inf
      %v2692 = vmax.f32 %v2690, %v2691
      %v2693 = vsel %vm2656, %v2648, -inf
      %v2694 = vsel %vm2656, %v2650, -inf
      %v2695 = vmax.f32 %v2693, %v2694
      %v2696 = vsel %vm2656, %v2649, -inf
      %v2697 = vsel %vm2656, %v2651, -inf
      %v2698 = vmax.f32 %v2696, %v2697
      %v2699 = vsel %vm2656, %v2652, -inf
      %v2700 = vsel %vm2656, %v2654, -inf
      %v2701 = vmax.f32 %v2699, %v2700
      %v2702 = vsel %vm2656, %v2653, -inf
      %v2703 = vsel %vm2656, %v2655, -inf
      %v2704 = vmax.f32 %v2702, %v2703
      %v2721 = vcombine.high %v2659, %v2659
      %v2723 = vunpack.c.l.s4 1983009808
      %v2724 = vunpack.c.0.s8 %v2723
      %v2725 = vlaneseq
      %v2726 = vshrl.u32 %v2725, 7
      %v2727 = vsub.s32 %v2724, %v2726
      %v2728 = vrot.slane %v2659, %v2727
      %v2730 = vunpack.c.l.s4 1983009808
      %v2731 = vunpack.c.0.s8 %v2730
      %v2732 = vlaneseq
      %v2733 = vshrl.u32 %v2732, 7
      %v2734 = vsub.s32 %v2731, %v2733
      %v2735 = vrot.slane %v2721, %v2734
      %v2736 = vcombine.high %v2728, %v2728
      %v2737 = vcombine.high %v2735, %v2735
      %v2738 = vcombine.high %v2662, %v2662
      %v2740 = vunpack.c.l.s4 1983009808
      %v2741 = vunpack.c.0.s8 %v2740
      %v2742 = vlaneseq
      %v2743 = vshrl.u32 %v2742, 7
      %v2744 = vsub.s32 %v2741, %v2743
      %v2745 = vrot.slane %v2662, %v2744
      %v2747 = vunpack.c.l.s4 1983009808
      %v2748 = vunpack.c.0.s8 %v2747
      %v2749 = vlaneseq
      %v2750 = vshrl.u32 %v2749, 7
      %v2751 = vsub.s32 %v2748, %v2750
      %v2752 = vrot.slane %v2738, %v2751
      %v2753 = vcombine.high %v2745, %v2745
      %v2754 = vcombine.high %v2752, %v2752
      %v2755 = vcombine.high %v2665, %v2665
      %v2757 = vunpack.c.l.s4 1983009808
      %v2758 = vunpack.c.0.s8 %v2757
      %v2759 = vlaneseq
      %v2760 = vshrl.u32 %v2759, 7
      %v2761 = vsub.s32 %v2758, %v2760
      %v2762 = vrot.slane %v2665, %v2761
      %v2764 = vunpack.c.l.s4 1983009808
      %v2765 = vunpack.c.0.s8 %v2764
      %v2766 = vlaneseq
      %v2767 = vshrl.u32 %v2766, 7
      %v2768 = vsub.s32 %v2765, %v2767
      %v2769 = vrot.slane %v2755, %v2768
      %v2770 = vcombine.high %v2762, %v2762
      %v2771 = vcombine.high %v2769, %v2769
      %v2772 = vcombine.high %v2668, %v2668
      %v2774 = vunpack.c.l.s4 1983009808
      %v2775 = vunpack.c.0.s8 %v2774
      %v2776 = vlaneseq
      %v2777 = vshrl.u32 %v2776, 7
      %v2778 = vsub.s32 %v2775, %v2777
      %v2779 = vrot.slane %v2668, %v2778
      %v2781 = vunpack.c.l.s4 1983009808
      %v2782 = vunpack.c.0.s8 %v2781
      %v2783 = vlaneseq
      %v2784 = vshrl.u32 %v2783, 7
      %v2785 = vsub.s32 %v2782, %v2784
      %v2786 = vrot.slane %v2772, %v2785
      %v2787 = vcombine.high %v2779, %v2779
      %v2788 = vcombine.high %v2786, %v2786
      %v2789 = vcombine.high %v2671, %v2671
      %v2791 = vunpack.c.l.s4 1983009808
      %v2792 = vunpack.c.0.s8 %v2791
      %v2793 = vlaneseq
      %v2794 = vshrl.u32 %v2793, 7
      %v2795 = vsub.s32 %v2792, %v2794
      %v2796 = vrot.slane %v2671, %v2795
      %v2798 = vunpack.c.l.s4 1983009808
      %v2799 = vunpack.c.0.s8 %v2798
      %v2800 = vlaneseq
      %v2801 = vshrl.u32 %v2800, 7
      %v2802 = vsub.s32 %v2799, %v2801
      %v2803 = vrot.slane %v2789, %v2802
      %v2804 = vcombine.high %v2796, %v2796
      %v2805 = vcombine.high %v2803, %v2803
      %v2806 = vcombine.high %v2674, %v2674
      %v2808 = vunpack.c.l.s4 1983009808
      %v2809 = vunpack.c.0.s8 %v2808
      %v2810 = vlaneseq
      %v2811 = vshrl.u32 %v2810, 7
      %v2812 = vsub.s32 %v2809, %v2811
      %v2813 = vrot.slane %v2674, %v2812
      %v2815 = vunpack.c.l.s4 1983009808
      %v2816 = vunpack.c.0.s8 %v2815
      %v2817 = vlaneseq
      %v2818 = vshrl.u32 %v2817, 7
      %v2819 = vsub.s32 %v2816, %v2818
      %v2820 = vrot.slane %v2806, %v2819
      %v2821 = vcombine.high %v2813, %v2813
      %v2822 = vcombine.high %v2820, %v2820
      %v2823 = vcombine.high %v2677, %v2677
      %v2825 = vunpack.c.l.s4 1983009808
      %v2826 = vunpack.c.0.s8 %v2825
      %v2827 = vlaneseq
      %v2828 = vshrl.u32 %v2827, 7
      %v2829 = vsub.s32 %v2826, %v2828
      %v2830 = vrot.slane %v2677, %v2829
      %v2832 = vunpack.c.l.s4 1983009808
      %v2833 = vunpack.c.0.s8 %v2832
      %v2834 = vlaneseq
      %v2835 = vshrl.u32 %v2834, 7
      %v2836 = vsub.s32 %v2833, %v2835
      %v2837 = vrot.slane %v2823, %v2836
      %v2838 = vcombine.high %v2830, %v2830
      %v2839 = vcombine.high %v2837, %v2837
      %v2840 = vcombine.high %v2680, %v2680
      %v2842 = vunpack.c.l.s4 1983009808
      %v2843 = vunpack.c.0.s8 %v2842
      %v2844 = vlaneseq
      %v2845 = vshrl.u32 %v2844, 7
      %v2846 = vsub.s32 %v2843, %v2845
      %v2847 = vrot.slane %v2680, %v2846
      %v2849 = vunpack.c.l.s4 1983009808
      %v2850 = vunpack.c.0.s8 %v2849
      %v2851 = vlaneseq
      %v2852 = vshrl.u32 %v2851, 7
      %v2853 = vsub.s32 %v2850, %v2852
      %v2854 = vrot.slane %v2840, %v2853
      %v2855 = vcombine.high %v2847, %v2847
      %v2856 = vcombine.high %v2854, %v2854
      %v2857 = vcombine.high %v2683, %v2683
      %v2859 = vunpack.c.l.s4 1983009808
      %v2860 = vunpack.c.0.s8 %v2859
      %v2861 = vlaneseq
      %v2862 = vshrl.u32 %v2861, 7
      %v2863 = vsub.s32 %v2860, %v2862
      %v2864 = vrot.slane %v2683, %v2863
      %v2866 = vunpack.c.l.s4 1983009808
      %v2867 = vunpack.c.0.s8 %v2866
      %v2868 = vlaneseq
      %v2869 = vshrl.u32 %v2868, 7
      %v2870 = vsub.s32 %v2867, %v2869
      %v2871 = vrot.slane %v2857, %v2870
      %v2872 = vcombine.high %v2864, %v2864
      %v2873 = vcombine.high %v2871, %v2871
      %v2874 = vcombine.high %v2686, %v2686
      %v2876 = vunpack.c.l.s4 1983009808
      %v2877 = vunpack.c.0.s8 %v2876
      %v2878 = vlaneseq
      %v2879 = vshrl.u32 %v2878, 7
      %v2880 = vsub.s32 %v2877, %v2879
      %v2881 = vrot.slane %v2686, %v2880
      %v2883 = vunpack.c.l.s4 1983009808
      %v2884 = vunpack.c.0.s8 %v2883
      %v2885 = vlaneseq
      %v2886 = vshrl.u32 %v2885, 7
      %v2887 = vsub.s32 %v2884, %v2886
      %v2888 = vrot.slane %v2874, %v2887
      %v2889 = vcombine.high %v2881, %v2881
      %v2890 = vcombine.high %v2888, %v2888
      %v2891 = vcombine.high %v2689, %v2689
      %v2893 = vunpack.c.l.s4 1983009808
      %v2894 = vunpack.c.0.s8 %v2893
      %v2895 = vlaneseq
      %v2896 = vshrl.u32 %v2895, 7
      %v2897 = vsub.s32 %v2894, %v2896
      %v2898 = vrot.slane %v2689, %v2897
      %v2900 = vunpack.c.l.s4 1983009808
      %v2901 = vunpack.c.0.s8 %v2900
      %v2902 = vlaneseq
      %v2903 = vshrl.u32 %v2902, 7
      %v2904 = vsub.s32 %v2901, %v2903
      %v2905 = vrot.slane %v2891, %v2904
      %v2906 = vcombine.high %v2898, %v2898
      %v2907 = vcombine.high %v2905, %v2905
      %v2908 = vcombine.high %v2692, %v2692
      %v2910 = vunpack.c.l.s4 1983009808
      %v2911 = vunpack.c.0.s8 %v2910
      %v2912 = vlaneseq
      %v2913 = vshrl.u32 %v2912, 7
      %v2914 = vsub.s32 %v2911, %v2913
      %v2915 = vrot.slane %v2692, %v2914
      %v2917 = vunpack.c.l.s4 1983009808
      %v2918 = vunpack.c.0.s8 %v2917
      %v2919 = vlaneseq
      %v2920 = vshrl.u32 %v2919, 7
      %v2921 = vsub.s32 %v2918, %v2920
      %v2922 = vrot.slane %v2908, %v2921
      %v2923 = vcombine.high %v2915, %v2915
      %v2924 = vcombine.high %v2922, %v2922
      %v2925 = vcombine.high %v2695, %v2695
      %v2927 = vunpack.c.l.s4 1983009808
      %v2928 = vunpack.c.0.s8 %v2927
      %v2929 = vlaneseq
      %v2930 = vshrl.u32 %v2929, 7
      %v2931 = vsub.s32 %v2928, %v2930
      %v2932 = vrot.slane %v2695, %v2931
      %v2934 = vunpack.c.l.s4 1983009808
      %v2935 = vunpack.c.0.s8 %v2934
      %v2936 = vlaneseq
      %v2937 = vshrl.u32 %v2936, 7
      %v2938 = vsub.s32 %v2935, %v2937
      %v2939 = vrot.slane %v2925, %v2938
      %v2940 = vcombine.high %v2932, %v2932
      %v2941 = vcombine.high %v2939, %v2939
      %v2942 = vcombine.high %v2698, %v2698
      %v2944 = vunpack.c.l.s4 1983009808
      %v2945 = vunpack.c.0.s8 %v2944
      %v2946 = vlaneseq
      %v2947 = vshrl.u32 %v2946, 7
      %v2948 = vsub.s32 %v2945, %v2947
      %v2949 = vrot.slane %v2698, %v2948
      %v2951 = vunpack.c.l.s4 1983009808
      %v2952 = vunpack.c.0.s8 %v2951
      %v2953 = vlaneseq
      %v2954 = vshrl.u32 %v2953, 7
      %v2955 = vsub.s32 %v2952, %v2954
      %v2956 = vrot.slane %v2942, %v2955
      %v2957 = vcombine.high %v2949, %v2949
      %v2958 = vcombine.high %v2956, %v2956
      %v2959 = vcombine.high %v2701, %v2701
      %v2961 = vunpack.c.l.s4 1983009808
      %v2962 = vunpack.c.0.s8 %v2961
      %v2963 = vlaneseq
      %v2964 = vshrl.u32 %v2963, 7
      %v2965 = vsub.s32 %v2962, %v2964
      %v2966 = vrot.slane %v2701, %v2965
      %v2968 = vunpack.c.l.s4 1983009808
      %v2969 = vunpack.c.0.s8 %v2968
      %v2970 = vlaneseq
      %v2971 = vshrl.u32 %v2970, 7
      %v2972 = vsub.s32 %v2969, %v2971
      %v2973 = vrot.slane %v2959, %v2972
      %v2974 = vcombine.high %v2966, %v2966
      %v2975 = vcombine.high %v2973, %v2973
      %v2976 = vcombine.high %v2704, %v2704
      %v2978 = vunpack.c.l.s4 1983009808
      %v2979 = vunpack.c.0.s8 %v2978
      %v2980 = vlaneseq
      %v2981 = vshrl.u32 %v2980, 7
      %v2982 = vsub.s32 %v2979, %v2981
      %v2983 = vrot.slane %v2704, %v2982
      %v2985 = vunpack.c.l.s4 1983009808
      %v2986 = vunpack.c.0.s8 %v2985
      %v2987 = vlaneseq
      %v2988 = vshrl.u32 %v2987, 7
      %v2989 = vsub.s32 %v2986, %v2988
      %v2990 = vrot.slane %v2976, %v2989
      %v2991 = vcombine.high %v2983, %v2983
      %v2992 = vcombine.high %v2990, %v2990
      %vm3057 = vcmask 254976
      %v3058 = vsel %vm3057, %v2728, -inf
      %v3059 = vrot.slane %v3058, 4
      %v3060 = vmax.f32 %v3058, %v3059
      %v3061 = vrot.slane %v3060, 2
      %v3062 = vmax.f32 %v3060, %v3061
      %v3063 = vrot.slane %v3062, 1
      %v3064 = vmax.f32 %v3062, %v3063
      %v3065 = vsel %vm3057, %v2736, -inf
      %v3066 = vrot.slane %v3065, 4
      %v3067 = vmax.f32 %v3065, %v3066
      %v3068 = vrot.slane %v3067, 2
      %v3069 = vmax.f32 %v3067, %v3068
      %v3070 = vrot.slane %v3069, 1
      %v3071 = vmax.f32 %v3069, %v3070
      %v3072 = vsel %vm3057, %v2735, -inf
      %v3073 = vrot.slane %v3072, 4
      %v3074 = vmax.f32 %v3072, %v3073
      %v3075 = vrot.slane %v3074, 2
      %v3076 = vmax.f32 %v3074, %v3075
      %v3077 = vrot.slane %v3076, 1
      %v3078 = vmax.f32 %v3076, %v3077
      %v3079 = vsel %vm3057, %v2737, -inf
      %v3080 = vrot.slane %v3079, 4
      %v3081 = vmax.f32 %v3079, %v3080
      %v3082 = vrot.slane %v3081, 2
      %v3083 = vmax.f32 %v3081, %v3082
      %v3084 = vrot.slane %v3083, 1
      %v3085 = vmax.f32 %v3083, %v3084
      %v3086 = vsel %vm3057, %v2745, -inf
      %v3087 = vrot.slane %v3086, 4
      %v3088 = vmax.f32 %v3086, %v3087
      %v3089 = vrot.slane %v3088, 2
      %v3090 = vmax.f32 %v3088, %v3089
      %v3091 = vrot.slane %v3090, 1
      %v3092 = vmax.f32 %v3090, %v3091
      %v3093 = vsel %vm3057, %v2753, -inf
      %v3094 = vrot.slane %v3093, 4
      %v3095 = vmax.f32 %v3093, %v3094
      %v3096 = vrot.slane %v3095, 2
      %v3097 = vmax.f32 %v3095, %v3096
      %v3098 = vrot.slane %v3097, 1
      %v3099 = vmax.f32 %v3097, %v3098
      %v3100 = vsel %vm3057, %v2752, -inf
      %v3101 = vrot.slane %v3100, 4
      %v3102 = vmax.f32 %v3100, %v3101
      %v3103 = vrot.slane %v3102, 2
      %v3104 = vmax.f32 %v3102, %v3103
      %v3105 = vrot.slane %v3104, 1
      %v3106 = vmax.f32 %v3104, %v3105
      %v3107 = vsel %vm3057, %v2754, -inf
      %v3108 = vrot.slane %v3107, 4
      %v3109 = vmax.f32 %v3107, %v3108
      %v3110 = vrot.slane %v3109, 2
      %v3111 = vmax.f32 %v3109, %v3110
      %v3112 = vrot.slane %v3111, 1
      %v3113 = vmax.f32 %v3111, %v3112
      %v3114 = vsel %vm3057, %v2762, -inf
      %v3115 = vrot.slane %v3114, 4
      %v3116 = vmax.f32 %v3114, %v3115
      %v3117 = vrot.slane %v3116, 2
      %v3118 = vmax.f32 %v3116, %v3117
      %v3119 = vrot.slane %v3118, 1
      %v3120 = vmax.f32 %v3118, %v3119
      %v3121 = vsel %vm3057, %v2770, -inf
      %v3122 = vrot.slane %v3121, 4
      %v3123 = vmax.f32 %v3121, %v3122
      %v3124 = vrot.slane %v3123, 2
      %v3125 = vmax.f32 %v3123, %v3124
      %v3126 = vrot.slane %v3125, 1
      %v3127 = vmax.f32 %v3125, %v3126
      %v3128 = vsel %vm3057, %v2769, -inf
      %v3129 = vrot.slane %v3128, 4
      %v3130 = vmax.f32 %v3128, %v3129
      %v3131 = vrot.slane %v3130, 2
      %v3132 = vmax.f32 %v3130, %v3131
      %v3133 = vrot.slane %v3132, 1
      %v3134 = vmax.f32 %v3132, %v3133
      %v3135 = vsel %vm3057, %v2771, -inf
      %v3136 = vrot.slane %v3135, 4
      %v3137 = vmax.f32 %v3135, %v3136
      %v3138 = vrot.slane %v3137, 2
      %v3139 = vmax.f32 %v3137, %v3138
      %v3140 = vrot.slane %v3139, 1
      %v3141 = vmax.f32 %v3139, %v3140
      %v3142 = vsel %vm3057, %v2779, -inf
      %v3143 = vrot.slane %v3142, 4
      %v3144 = vmax.f32 %v3142, %v3143
      %v3145 = vrot.slane %v3144, 2
      %v3146 = vmax.f32 %v3144, %v3145
      %v3147 = vrot.slane %v3146, 1
      %v3148 = vmax.f32 %v3146, %v3147
      %v3149 = vsel %vm3057, %v2787, -inf
      %v3150 = vrot.slane %v3149, 4
      %v3151 = vmax.f32 %v3149, %v3150
      %v3152 = vrot.slane %v3151, 2
      %v3153 = vmax.f32 %v3151, %v3152
      %v3154 = vrot.slane %v3153, 1
      %v3155 = vmax.f32 %v3153, %v3154
      %v3156 = vsel %vm3057, %v2786, -inf
      %v3157 = vrot.slane %v3156, 4
      %v3158 = vmax.f32 %v3156, %v3157
      %v3159 = vrot.slane %v3158, 2
      %v3160 = vmax.f32 %v3158, %v3159
      %v3161 = vrot.slane %v3160, 1
      %v3162 = vmax.f32 %v3160, %v3161
      %v3163 = vsel %vm3057, %v2788, -inf
      %v3164 = vrot.slane %v3163, 4
      %v3165 = vmax.f32 %v3163, %v3164
      %v3166 = vrot.slane %v3165, 2
      %v3167 = vmax.f32 %v3165, %v3166
      %v3168 = vrot.slane %v3167, 1
      %v3169 = vmax.f32 %v3167, %v3168
      %v3170 = vsel %vm3057, %v2796, -inf
      %v3171 = vrot.slane %v3170, 4
      %v3172 = vmax.f32 %v3170, %v3171
      %v3173 = vrot.slane %v3172, 2
      %v3174 = vmax.f32 %v3172, %v3173
      %v3175 = vrot.slane %v3174, 1
      %v3176 = vmax.f32 %v3174, %v3175
      %v3177 = vsel %vm3057, %v2804, -inf
      %v3178 = vrot.slane %v3177, 4
      %v3179 = vmax.f32 %v3177, %v3178
      %v3180 = vrot.slane %v3179, 2
      %v3181 = vmax.f32 %v3179, %v3180
      %v3182 = vrot.slane %v3181, 1
      %v3183 = vmax.f32 %v3181, %v3182
      %v3184 = vsel %vm3057, %v2803, -inf
      %v3185 = vrot.slane %v3184, 4
      %v3186 = vmax.f32 %v3184, %v3185
      %v3187 = vrot.slane %v3186, 2
      %v3188 = vmax.f32 %v3186, %v3187
      %v3189 = vrot.slane %v3188, 1
      %v3190 = vmax.f32 %v3188, %v3189
      %v3191 = vsel %vm3057, %v2805, -inf
      %v3192 = vrot.slane %v3191, 4
      %v3193 = vmax.f32 %v3191, %v3192
      %v3194 = vrot.slane %v3193, 2
      %v3195 = vmax.f32 %v3193, %v3194
      %v3196 = vrot.slane %v3195, 1
      %v3197 = vmax.f32 %v3195, %v3196
      %v3198 = vsel %vm3057, %v2813, -inf
      %v3199 = vrot.slane %v3198, 4
      %v3200 = vmax.f32 %v3198, %v3199
      %v3201 = vrot.slane %v3200, 2
      %v3202 = vmax.f32 %v3200, %v3201
      %v3203 = vrot.slane %v3202, 1
      %v3204 = vmax.f32 %v3202, %v3203
      %v3205 = vsel %vm3057, %v2821, -inf
      %v3206 = vrot.slane %v3205, 4
      %v3207 = vmax.f32 %v3205, %v3206
      %v3208 = vrot.slane %v3207, 2
      %v3209 = vmax.f32 %v3207, %v3208
      %v3210 = vrot.slane %v3209, 1
      %v3211 = vmax.f32 %v3209, %v3210
      %v3212 = vsel %vm3057, %v2820, -inf
      %v3213 = vrot.slane %v3212, 4
      %v3214 = vmax.f32 %v3212, %v3213
      %v3215 = vrot.slane %v3214, 2
      %v3216 = vmax.f32 %v3214, %v3215
      %v3217 = vrot.slane %v3216, 1
      %v3218 = vmax.f32 %v3216, %v3217
      %v3219 = vsel %vm3057, %v2822, -inf
      %v3220 = vrot.slane %v3219, 4
      %v3221 = vmax.f32 %v3219, %v3220
      %v3222 = vrot.slane %v3221, 2
      %v3223 = vmax.f32 %v3221, %v3222
      %v3224 = vrot.slane %v3223, 1
      %v3225 = vmax.f32 %v3223, %v3224
      %v3226 = vsel %vm3057, %v2830, -inf
      %v3227 = vrot.slane %v3226, 4
      %v3228 = vmax.f32 %v3226, %v3227
      %v3229 = vrot.slane %v3228, 2
      %v3230 = vmax.f32 %v3228, %v3229
      %v3231 = vrot.slane %v3230, 1
      %v3232 = vmax.f32 %v3230, %v3231
      %v3233 = vsel %vm3057, %v2838, -inf
      %v3234 = vrot.slane %v3233, 4
      %v3235 = vmax.f32 %v3233, %v3234
      %v3236 = vrot.slane %v3235, 2
      %v3237 = vmax.f32 %v3235, %v3236
      %v3238 = vrot.slane %v3237, 1
      %v3239 = vmax.f32 %v3237, %v3238
      %v3240 = vsel %vm3057, %v2837, -inf
      %v3241 = vrot.slane %v3240, 4
      %v3242 = vmax.f32 %v3240, %v3241
      %v3243 = vrot.slane %v3242, 2
      %v3244 = vmax.f32 %v3242, %v3243
      %v3245 = vrot.slane %v3244, 1
      %v3246 = vmax.f32 %v3244, %v3245
      %v3247 = vsel %vm3057, %v2839, -inf
      %v3248 = vrot.slane %v3247, 4
      %v3249 = vmax.f32 %v3247, %v3248
      %v3250 = vrot.slane %v3249, 2
      %v3251 = vmax.f32 %v3249, %v3250
      %v3252 = vrot.slane %v3251, 1
      %v3253 = vmax.f32 %v3251, %v3252
      %v3254 = vsel %vm3057, %v2847, -inf
      %v3255 = vrot.slane %v3254, 4
      %v3256 = vmax.f32 %v3254, %v3255
      %v3257 = vrot.slane %v3256, 2
      %v3258 = vmax.f32 %v3256, %v3257
      %v3259 = vrot.slane %v3258, 1
      %v3260 = vmax.f32 %v3258, %v3259
      %v3261 = vsel %vm3057, %v2855, -inf
      %v3262 = vrot.slane %v3261, 4
      %v3263 = vmax.f32 %v3261, %v3262
      %v3264 = vrot.slane %v3263, 2
      %v3265 = vmax.f32 %v3263, %v3264
      %v3266 = vrot.slane %v3265, 1
      %v3267 = vmax.f32 %v3265, %v3266
      %v3268 = vsel %vm3057, %v2854, -inf
      %v3269 = vrot.slane %v3268, 4
      %v3270 = vmax.f32 %v3268, %v3269
      %v3271 = vrot.slane %v3270, 2
      %v3272 = vmax.f32 %v3270, %v3271
      %v3273 = vrot.slane %v3272, 1
      %v3274 = vmax.f32 %v3272, %v3273
      %v3275 = vsel %vm3057, %v2856, -inf
      %v3276 = vrot.slane %v3275, 4
      %v3277 = vmax.f32 %v3275, %v3276
      %v3278 = vrot.slane %v3277, 2
      %v3279 = vmax.f32 %v3277, %v3278
      %v3280 = vrot.slane %v3279, 1
      %v3281 = vmax.f32 %v3279, %v3280
      %v3282 = vsel %vm3057, %v2864, -inf
      %v3283 = vrot.slane %v3282, 4
      %v3284 = vmax.f32 %v3282, %v3283
      %v3285 = vrot.slane %v3284, 2
      %v3286 = vmax.f32 %v3284, %v3285
      %v3287 = vrot.slane %v3286, 1
      %v3288 = vmax.f32 %v3286, %v3287
      %v3289 = vsel %vm3057, %v2872, -inf
      %v3290 = vrot.slane %v3289, 4
      %v3291 = vmax.f32 %v3289, %v3290
      %v3292 = vrot.slane %v3291, 2
      %v3293 = vmax.f32 %v3291, %v3292
      %v3294 = vrot.slane %v3293, 1
      %v3295 = vmax.f32 %v3293, %v3294
      %v3296 = vsel %vm3057, %v2871, -inf
      %v3297 = vrot.slane %v3296, 4
      %v3298 = vmax.f32 %v3296, %v3297
      %v3299 = vrot.slane %v3298, 2
      %v3300 = vmax.f32 %v3298, %v3299
      %v3301 = vrot.slane %v3300, 1
      %v3302 = vmax.f32 %v3300, %v3301
      %v3303 = vsel %vm3057, %v2873, -inf
      %v3304 = vrot.slane %v3303, 4
      %v3305 = vmax.f32 %v3303, %v3304
      %v3306 = vrot.slane %v3305, 2
      %v3307 = vmax.f32 %v3305, %v3306
      %v3308 = vrot.slane %v3307, 1
      %v3309 = vmax.f32 %v3307, %v3308
      %v3310 = vsel %vm3057, %v2881, -inf
      %v3311 = vrot.slane %v3310, 4
      %v3312 = vmax.f32 %v3310, %v3311
      %v3313 = vrot.slane %v3312, 2
      %v3314 = vmax.f32 %v3312, %v3313
      %v3315 = vrot.slane %v3314, 1
      %v3316 = vmax.f32 %v3314, %v3315
      %v3317 = vsel %vm3057, %v2889, -inf
      %v3318 = vrot.slane %v3317, 4
      %v3319 = vmax.f32 %v3317, %v3318
      %v3320 = vrot.slane %v3319, 2
      %v3321 = vmax.f32 %v3319, %v3320
      %v3322 = vrot.slane %v3321, 1
      %v3323 = vmax.f32 %v3321, %v3322
      %v3324 = vsel %vm3057, %v2888, -inf
      %v3325 = vrot.slane %v3324, 4
      %v3326 = vmax.f32 %v3324, %v3325
      %v3327 = vrot.slane %v3326, 2
      %v3328 = vmax.f32 %v3326, %v3327
      %v3329 = vrot.slane %v3328, 1
      %v3330 = vmax.f32 %v3328, %v3329
      %v3331 = vsel %vm3057, %v2890, -inf
      %v3332 = vrot.slane %v3331, 4
      %v3333 = vmax.f32 %v3331, %v3332
      %v3334 = vrot.slane %v3333, 2
      %v3335 = vmax.f32 %v3333, %v3334
      %v3336 = vrot.slane %v3335, 1
      %v3337 = vmax.f32 %v3335, %v3336
      %v3338 = vsel %vm3057, %v2898, -inf
      %v3339 = vrot.slane %v3338, 4
      %v3340 = vmax.f32 %v3338, %v3339
      %v3341 = vrot.slane %v3340, 2
      %v3342 = vmax.f32 %v3340, %v3341
      %v3343 = vrot.slane %v3342, 1
      %v3344 = vmax.f32 %v3342, %v3343
      %v3345 = vsel %vm3057, %v2906, -inf
      %v3346 = vrot.slane %v3345, 4
      %v3347 = vmax.f32 %v3345, %v3346
      %v3348 = vrot.slane %v3347, 2
      %v3349 = vmax.f32 %v3347, %v3348
      %v3350 = vrot.slane %v3349, 1
      %v3351 = vmax.f32 %v3349, %v3350
      %v3352 = vsel %vm3057, %v2905, -inf
      %v3353 = vrot.slane %v3352, 4
      %v3354 = vmax.f32 %v3352, %v3353
      %v3355 = vrot.slane %v3354, 2
      %v3356 = vmax.f32 %v3354, %v3355
      %v3357 = vrot.slane %v3356, 1
      %v3358 = vmax.f32 %v3356, %v3357
      %v3359 = vsel %vm3057, %v2907, -inf
      %v3360 = vrot.slane %v3359, 4
      %v3361 = vmax.f32 %v3359, %v3360
      %v3362 = vrot.slane %v3361, 2
      %v3363 = vmax.f32 %v3361, %v3362
      %v3364 = vrot.slane %v3363, 1
      %v3365 = vmax.f32 %v3363, %v3364
      %v3366 = vsel %vm3057, %v2915, -inf
      %v3367 = vrot.slane %v3366, 4
      %v3368 = vmax.f32 %v3366, %v3367
      %v3369 = vrot.slane %v3368, 2
      %v3370 = vmax.f32 %v3368, %v3369
      %v3371 = vrot.slane %v3370, 1
      %v3372 = vmax.f32 %v3370, %v3371
      %v3373 = vsel %vm3057, %v2923, -inf
      %v3374 = vrot.slane %v3373, 4
      %v3375 = vmax.f32 %v3373, %v3374
      %v3376 = vrot.slane %v3375, 2
      %v3377 = vmax.f32 %v3375, %v3376
      %v3378 = vrot.slane %v3377, 1
      %v3379 = vmax.f32 %v3377, %v3378
      %v3380 = vsel %vm3057, %v2922, -inf
      %v3381 = vrot.slane %v3380, 4
      %v3382 = vmax.f32 %v3380, %v3381
      %v3383 = vrot.slane %v3382, 2
      %v3384 = vmax.f32 %v3382, %v3383
      %v3385 = vrot.slane %v3384, 1
      %v3386 = vmax.f32 %v3384, %v3385
      %v3387 = vsel %vm3057, %v2924, -inf
      %v3388 = vrot.slane %v3387, 4
      %v3389 = vmax.f32 %v3387, %v3388
      %v3390 = vrot.slane %v3389, 2
      %v3391 = vmax.f32 %v3389, %v3390
      %v3392 = vrot.slane %v3391, 1
      %v3393 = vmax.f32 %v3391, %v3392
      %v3394 = vsel %vm3057, %v2932, -inf
      %v3395 = vrot.slane %v3394, 4
      %v3396 = vmax.f32 %v3394, %v3395
      %v3397 = vrot.slane %v3396, 2
      %v3398 = vmax.f32 %v3396, %v3397
      %v3399 = vrot.slane %v3398, 1
      %v3400 = vmax.f32 %v3398, %v3399
      %v3401 = vsel %vm3057, %v2940, -inf
      %v3402 = vrot.slane %v3401, 4
      %v3403 = vmax.f32 %v3401, %v3402
      %v3404 = vrot.slane %v3403, 2
      %v3405 = vmax.f32 %v3403, %v3404
      %v3406 = vrot.slane %v3405, 1
      %v3407 = vmax.f32 %v3405, %v3406
      %v3408 = vsel %vm3057, %v2939, -inf
      %v3409 = vrot.slane %v3408, 4
      %v3410 = vmax.f32 %v3408, %v3409
      %v3411 = vrot.slane %v3410, 2
      %v3412 = vmax.f32 %v3410, %v3411
      %v3413 = vrot.slane %v3412, 1
      %v3414 = vmax.f32 %v3412, %v3413
      %v3415 = vsel %vm3057, %v2941, -inf
      %v3416 = vrot.slane %v3415, 4
      %v3417 = vmax.f32 %v3415, %v3416
      %v3418 = vrot.slane %v3417, 2
      %v3419 = vmax.f32 %v3417, %v3418
      %v3420 = vrot.slane %v3419, 1
      %v3421 = vmax.f32 %v3419, %v3420
      %v3422 = vsel %vm3057, %v2949, -inf
      %v3423 = vrot.slane %v3422, 4
      %v3424 = vmax.f32 %v3422, %v3423
      %v3425 = vrot.slane %v3424, 2
      %v3426 = vmax.f32 %v3424, %v3425
      %v3427 = vrot.slane %v3426, 1
      %v3428 = vmax.f32 %v3426, %v3427
      %v3429 = vsel %vm3057, %v2957, -inf
      %v3430 = vrot.slane %v3429, 4
      %v3431 = vmax.f32 %v3429, %v3430
      %v3432 = vrot.slane %v3431, 2
      %v3433 = vmax.f32 %v3431, %v3432
      %v3434 = vrot.slane %v3433, 1
      %v3435 = vmax.f32 %v3433, %v3434
      %v3436 = vsel %vm3057, %v2956, -inf
      %v3437 = vrot.slane %v3436, 4
      %v3438 = vmax.f32 %v3436, %v3437
      %v3439 = vrot.slane %v3438, 2
      %v3440 = vmax.f32 %v3438, %v3439
      %v3441 = vrot.slane %v3440, 1
      %v3442 = vmax.f32 %v3440, %v3441
      %v3443 = vsel %vm3057, %v2958, -inf
      %v3444 = vrot.slane %v3443, 4
      %v3445 = vmax.f32 %v3443, %v3444
      %v3446 = vrot.slane %v3445, 2
      %v3447 = vmax.f32 %v3445, %v3446
      %v3448 = vrot.slane %v3447, 1
      %v3449 = vmax.f32 %v3447, %v3448
      %v3450 = vsel %vm3057, %v2966, -inf
      %v3451 = vrot.slane %v3450, 4
      %v3452 = vmax.f32 %v3450, %v3451
      %v3453 = vrot.slane %v3452, 2
      %v3454 = vmax.f32 %v3452, %v3453
      %v3455 = vrot.slane %v3454, 1
      %v3456 = vmax.f32 %v3454, %v3455
      %v3457 = vsel %vm3057, %v2974, -inf
      %v3458 = vrot.slane %v3457, 4
      %v3459 = vmax.f32 %v3457, %v3458
      %v3460 = vrot.slane %v3459, 2
      %v3461 = vmax.f32 %v3459, %v3460
      %v3462 = vrot.slane %v3461, 1
      %v3463 = vmax.f32 %v3461, %v3462
      %v3464 = vsel %vm3057, %v2973, -inf
      %v3465 = vrot.slane %v3464, 4
      %v3466 = vmax.f32 %v3464, %v3465
      %v3467 = vrot.slane %v3466, 2
      %v3468 = vmax.f32 %v3466, %v3467
      %v3469 = vrot.slane %v3468, 1
      %v3470 = vmax.f32 %v3468, %v3469
      %v3471 = vsel %vm3057, %v2975, -inf
      %v3472 = vrot.slane %v3471, 4
      %v3473 = vmax.f32 %v3471, %v3472
      %v3474 = vrot.slane %v3473, 2
      %v3475 = vmax.f32 %v3473, %v3474
      %v3476 = vrot.slane %v3475, 1
      %v3477 = vmax.f32 %v3475, %v3476
      %v3478 = vsel %vm3057, %v2983, -inf
      %v3479 = vrot.slane %v3478, 4
      %v3480 = vmax.f32 %v3478, %v3479
      %v3481 = vrot.slane %v3480, 2
      %v3482 = vmax.f32 %v3480, %v3481
      %v3483 = vrot.slane %v3482, 1
      %v3484 = vmax.f32 %v3482, %v3483
      %v3485 = vsel %vm3057, %v2991, -inf
      %v3486 = vrot.slane %v3485, 4
      %v3487 = vmax.f32 %v3485, %v3486
      %v3488 = vrot.slane %v3487, 2
      %v3489 = vmax.f32 %v3487, %v3488
      %v3490 = vrot.slane %v3489, 1
      %v3491 = vmax.f32 %v3489, %v3490
      %v3492 = vsel %vm3057, %v2990, -inf
      %v3493 = vrot.slane %v3492, 4
      %v3494 = vmax.f32 %v3492, %v3493
      %v3495 = vrot.slane %v3494, 2
      %v3496 = vmax.f32 %v3494, %v3495
      %v3497 = vrot.slane %v3496, 1
      %v3498 = vmax.f32 %v3496, %v3497
      %v3499 = vsel %vm3057, %v2992, -inf
      %v3500 = vrot.slane %v3499, 4
      %v3501 = vmax.f32 %v3499, %v3500
      %v3502 = vrot.slane %v3501, 2
      %v3503 = vmax.f32 %v3501, %v3502
      %v3504 = vrot.slane %v3503, 1
      %v3505 = vmax.f32 %v3503, %v3504
      %v3507 = vlaneseq
      %v3508 = vshrl.u32 %v3507, 7
      %v3509 = vsub.s32 0, %v3508
      %v3510 = vrot.slane %v357, %v3509
      %v3512 = vadd.f32 %v3064, %v3510
      %v3513 = vadd.f32 %v3071, %v3510
      %v3514 = vadd.f32 %v3078, %v3510
      %v3515 = vadd.f32 %v3085, %v3510
      %v3516 = vadd.f32 %v3092, %v3510
      %v3517 = vadd.f32 %v3099, %v3510
      %v3518 = vadd.f32 %v3106, %v3510
      %v3519 = vadd.f32 %v3113, %v3510
      %v3520 = vadd.f32 %v3120, %v3510
      %v3521 = vadd.f32 %v3127, %v3510
      %v3522 = vadd.f32 %v3134, %v3510
      %v3523 = vadd.f32 %v3141, %v3510
      %v3524 = vadd.f32 %v3148, %v3510
      %v3525 = vadd.f32 %v3155, %v3510
      %v3526 = vadd.f32 %v3162, %v3510
      %v3527 = vadd.f32 %v3169, %v3510
      %v3528 = vadd.f32 %v3176, %v3510
      %v3529 = vadd.f32 %v3183, %v3510
      %v3530 = vadd.f32 %v3190, %v3510
      %v3531 = vadd.f32 %v3197, %v3510
      %v3532 = vadd.f32 %v3204, %v3510
      %v3533 = vadd.f32 %v3211, %v3510
      %v3534 = vadd.f32 %v3218, %v3510
      %v3535 = vadd.f32 %v3225, %v3510
      %v3536 = vadd.f32 %v3232, %v3510
      %v3537 = vadd.f32 %v3239, %v3510
      %v3538 = vadd.f32 %v3246, %v3510
      %v3539 = vadd.f32 %v3253, %v3510
      %v3540 = vadd.f32 %v3260, %v3510
      %v3541 = vadd.f32 %v3267, %v3510
      %v3542 = vadd.f32 %v3274, %v3510
      %v3543 = vadd.f32 %v3281, %v3510
      %v3544 = vadd.f32 %v3288, %v3510
      %v3545 = vadd.f32 %v3295, %v3510
      %v3546 = vadd.f32 %v3302, %v3510
      %v3547 = vadd.f32 %v3309, %v3510
      %v3548 = vadd.f32 %v3316, %v3510
      %v3549 = vadd.f32 %v3323, %v3510
      %v3550 = vadd.f32 %v3330, %v3510
      %v3551 = vadd.f32 %v3337, %v3510
      %v3552 = vadd.f32 %v3344, %v3510
      %v3553 = vadd.f32 %v3351, %v3510
      %v3554 = vadd.f32 %v3358, %v3510
      %v3555 = vadd.f32 %v3365, %v3510
      %v3556 = vadd.f32 %v3372, %v3510
      %v3557 = vadd.f32 %v3379, %v3510
      %v3558 = vadd.f32 %v3386, %v3510
      %v3559 = vadd.f32 %v3393, %v3510
      %v3560 = vadd.f32 %v3400, %v3510
      %v3561 = vadd.f32 %v3407, %v3510
      %v3562 = vadd.f32 %v3414, %v3510
      %v3563 = vadd.f32 %v3421, %v3510
      %v3564 = vadd.f32 %v3428, %v3510
      %v3565 = vadd.f32 %v3435, %v3510
      %v3566 = vadd.f32 %v3442, %v3510
      %v3567 = vadd.f32 %v3449, %v3510
      %v3568 = vadd.f32 %v3456, %v3510
      %v3569 = vadd.f32 %v3463, %v3510
      %v3570 = vadd.f32 %v3470, %v3510
      %v3571 = vadd.f32 %v3477, %v3510
      %v3572 = vadd.f32 %v3484, %v3510
      %v3573 = vadd.f32 %v3491, %v3510
      %v3574 = vadd.f32 %v3498, %v3510
      %v3575 = vadd.f32 %v3505, %v3510
      %v3576 = vmax.f32 %v3512, 0.0
      %v3577 = vmax.f32 %v3513, 0.0
      %v3578 = vmax.f32 %v3514, 0.0
      %v3579 = vmax.f32 %v3515, 0.0
      %v3580 = vmax.f32 %v3516, 0.0
      %v3581 = vmax.f32 %v3517, 0.0
      %v3582 = vmax.f32 %v3518, 0.0
      %v3583 = vmax.f32 %v3519, 0.0
      %v3584 = vmax.f32 %v3520, 0.0
      %v3585 = vmax.f32 %v3521, 0.0
      %v3586 = vmax.f32 %v3522, 0.0
      %v3587 = vmax.f32 %v3523, 0.0
      %v3588 = vmax.f32 %v3524, 0.0
      %v3589 = vmax.f32 %v3525, 0.0
      %v3590 = vmax.f32 %v3526, 0.0
      %v3591 = vmax.f32 %v3527, 0.0
      %v3592 = vmax.f32 %v3528, 0.0
      %v3593 = vmax.f32 %v3529, 0.0
      %v3594 = vmax.f32 %v3530, 0.0
      %v3595 = vmax.f32 %v3531, 0.0
      %v3596 = vmax.f32 %v3532, 0.0
      %v3597 = vmax.f32 %v3533, 0.0
      %v3598 = vmax.f32 %v3534, 0.0
      %v3599 = vmax.f32 %v3535, 0.0
      %v3600 = vmax.f32 %v3536, 0.0
      %v3601 = vmax.f32 %v3537, 0.0
      %v3602 = vmax.f32 %v3538, 0.0
      %v3603 = vmax.f32 %v3539, 0.0
      %v3604 = vmax.f32 %v3540, 0.0
      %v3605 = vmax.f32 %v3541, 0.0
      %v3606 = vmax.f32 %v3542, 0.0
      %v3607 = vmax.f32 %v3543, 0.0
      %v3608 = vmax.f32 %v3544, 0.0
      %v3609 = vmax.f32 %v3545, 0.0
      %v3610 = vmax.f32 %v3546, 0.0
      %v3611 = vmax.f32 %v3547, 0.0
      %v3612 = vmax.f32 %v3548, 0.0
      %v3613 = vmax.f32 %v3549, 0.0
      %v3614 = vmax.f32 %v3550, 0.0
      %v3615 = vmax.f32 %v3551, 0.0
      %v3616 = vmax.f32 %v3552, 0.0
      %v3617 = vmax.f32 %v3553, 0.0
      %v3618 = vmax.f32 %v3554, 0.0
      %v3619 = vmax.f32 %v3555, 0.0
      %v3620 = vmax.f32 %v3556, 0.0
      %v3621 = vmax.f32 %v3557, 0.0
      %v3622 = vmax.f32 %v3558, 0.0
      %v3623 = vmax.f32 %v3559, 0.0
      %v3624 = vmax.f32 %v3560, 0.0
      %v3625 = vmax.f32 %v3561, 0.0
      %v3626 = vmax.f32 %v3562, 0.0
      %v3627 = vmax.f32 %v3563, 0.0
      %v3628 = vmax.f32 %v3564, 0.0
      %v3629 = vmax.f32 %v3565, 0.0
      %v3630 = vmax.f32 %v3566, 0.0
      %v3631 = vmax.f32 %v3567, 0.0
      %v3632 = vmax.f32 %v3568, 0.0
      %v3633 = vmax.f32 %v3569, 0.0
      %v3634 = vmax.f32 %v3570, 0.0
      %v3635 = vmax.f32 %v3571, 0.0
      %v3636 = vmax.f32 %v3572, 0.0
      %v3637 = vmax.f32 %v3573, 0.0
      %v3638 = vmax.f32 %v3574, 0.0
      %v3639 = vmax.f32 %v3575, 0.0
      %v3704 = vrot.slane %v3577, 7
      %vm3705 = vcmask 1041409
      %v3706 = vsel %vm3705, %v3704, %v3576
      %v3707 = vrot.slane %v3578, 6
      %vm3708 = vcmask 1042434
      %v3709 = vsel %vm3708, %v3707, %v3706
      %v3710 = vrot.slane %v3579, 5
      %vm3711 = vcmask 1043459
      %v3712 = vsel %vm3711, %v3710, %v3709
      %v3713 = vrot.slane %v3580, 4
      %vm3714 = vcmask 1044484
      %v3715 = vsel %vm3714, %v3713, %v3712
      %v3716 = vrot.slane %v3581, 3
      %vm3717 = vcmask 1045509
      %v3718 = vsel %vm3717, %v3716, %v3715
      %v3719 = vrot.slane %v3582, 2
      %vm3720 = vcmask 1046534
      %v3721 = vsel %vm3720, %v3719, %v3718
      %v3722 = vrot.slane %v3583, 1
      %vm3723 = vcmask 1047559
      %v3724 = vsel %vm3723, %v3722, %v3721
      %v3725 = vrot.slane %v3585, 7
      %v3726 = vsel %vm3705, %v3725, %v3584
      %v3727 = vrot.slane %v3586, 6
      %v3728 = vsel %vm3708, %v3727, %v3726
      %v3729 = vrot.slane %v3587, 5
      %v3730 = vsel %vm3711, %v3729, %v3728
      %v3731 = vrot.slane %v3588, 4
      %v3732 = vsel %vm3714, %v3731, %v3730
      %v3733 = vrot.slane %v3589, 3
      %v3734 = vsel %vm3717, %v3733, %v3732
      %v3735 = vrot.slane %v3590, 2
      %v3736 = vsel %vm3720, %v3735, %v3734
      %v3737 = vrot.slane %v3591, 1
      %v3738 = vsel %vm3723, %v3737, %v3736
      %v3739 = vrot.slane %v3593, 7
      %v3740 = vsel %vm3705, %v3739, %v3592
      %v3741 = vrot.slane %v3594, 6
      %v3742 = vsel %vm3708, %v3741, %v3740
      %v3743 = vrot.slane %v3595, 5
      %v3744 = vsel %vm3711, %v3743, %v3742
      %v3745 = vrot.slane %v3596, 4
      %v3746 = vsel %vm3714, %v3745, %v3744
      %v3747 = vrot.slane %v3597, 3
      %v3748 = vsel %vm3717, %v3747, %v3746
      %v3749 = vrot.slane %v3598, 2
      %v3750 = vsel %vm3720, %v3749, %v3748
      %v3751 = vrot.slane %v3599, 1
      %v3752 = vsel %vm3723, %v3751, %v3750
      %v3753 = vrot.slane %v3601, 7
      %v3754 = vsel %vm3705, %v3753, %v3600
      %v3755 = vrot.slane %v3602, 6
      %v3756 = vsel %vm3708, %v3755, %v3754
      %v3757 = vrot.slane %v3603, 5
      %v3758 = vsel %vm3711, %v3757, %v3756
      %v3759 = vrot.slane %v3604, 4
      %v3760 = vsel %vm3714, %v3759, %v3758
      %v3761 = vrot.slane %v3605, 3
      %v3762 = vsel %vm3717, %v3761, %v3760
      %v3763 = vrot.slane %v3606, 2
      %v3764 = vsel %vm3720, %v3763, %v3762
      %v3765 = vrot.slane %v3607, 1
      %v3766 = vsel %vm3723, %v3765, %v3764
      %v3767 = vrot.slane %v3609, 7
      %v3768 = vsel %vm3705, %v3767, %v3608
      %v3769 = vrot.slane %v3610, 6
      %v3770 = vsel %vm3708, %v3769, %v3768
      %v3771 = vrot.slane %v3611, 5
      %v3772 = vsel %vm3711, %v3771, %v3770
      %v3773 = vrot.slane %v3612, 4
      %v3774 = vsel %vm3714, %v3773, %v3772
      %v3775 = vrot.slane %v3613, 3
      %v3776 = vsel %vm3717, %v3775, %v3774
      %v3777 = vrot.slane %v3614, 2
      %v3778 = vsel %vm3720, %v3777, %v3776
      %v3779 = vrot.slane %v3615, 1
      %v3780 = vsel %vm3723, %v3779, %v3778
      %v3781 = vrot.slane %v3617, 7
      %v3782 = vsel %vm3705, %v3781, %v3616
      %v3783 = vrot.slane %v3618, 6
      %v3784 = vsel %vm3708, %v3783, %v3782
      %v3785 = vrot.slane %v3619, 5
      %v3786 = vsel %vm3711, %v3785, %v3784
      %v3787 = vrot.slane %v3620, 4
      %v3788 = vsel %vm3714, %v3787, %v3786
      %v3789 = vrot.slane %v3621, 3
      %v3790 = vsel %vm3717, %v3789, %v3788
      %v3791 = vrot.slane %v3622, 2
      %v3792 = vsel %vm3720, %v3791, %v3790
      %v3793 = vrot.slane %v3623, 1
      %v3794 = vsel %vm3723, %v3793, %v3792
      %v3795 = vrot.slane %v3625, 7
      %v3796 = vsel %vm3705, %v3795, %v3624
      %v3797 = vrot.slane %v3626, 6
      %v3798 = vsel %vm3708, %v3797, %v3796
      %v3799 = vrot.slane %v3627, 5
      %v3800 = vsel %vm3711, %v3799, %v3798
      %v3801 = vrot.slane %v3628, 4
      %v3802 = vsel %vm3714, %v3801, %v3800
      %v3803 = vrot.slane %v3629, 3
      %v3804 = vsel %vm3717, %v3803, %v3802
      %v3805 = vrot.slane %v3630, 2
      %v3806 = vsel %vm3720, %v3805, %v3804
      %v3807 = vrot.slane %v3631, 1
      %v3808 = vsel %vm3723, %v3807, %v3806
      %v3809 = vrot.slane %v3633, 7
      %v3810 = vsel %vm3705, %v3809, %v3632
      %v3811 = vrot.slane %v3634, 6
      %v3812 = vsel %vm3708, %v3811, %v3810
      %v3813 = vrot.slane %v3635, 5
      %v3814 = vsel %vm3711, %v3813, %v3812
      %v3815 = vrot.slane %v3636, 4
      %v3816 = vsel %vm3714, %v3815, %v3814
      %v3817 = vrot.slane %v3637, 3
      %v3818 = vsel %vm3717, %v3817, %v3816
      %v3819 = vrot.slane %v3638, 2
      %v3820 = vsel %vm3720, %v3819, %v3818
      %v3821 = vrot.slane %v3639, 1
      %v3822 = vsel %vm3723, %v3821, %v3820
      %v3831 = vcombine.low %v3724, %v3752
      %v3832 = vcombine.high %v3724, %v3752
      %v3834 = vunpack.c.l.s4 1983009808
      %v3835 = vunpack.c.0.s8 %v3834
      %v3836 = vlaneseq
      %v3837 = vshrl.u32 %v3836, 7
      %v3838 = vsub.s32 %v3835, %v3837
      %v3839 = vrot.slane %v3831, %v3838
      %v3841 = vunpack.c.l.s4 1983009808
      %v3842 = vunpack.c.0.s8 %v3841
      %v3843 = vlaneseq
      %v3844 = vshrl.u32 %v3843, 7
      %v3845 = vsub.s32 %v3842, %v3844
      %v3846 = vrot.slane %v3832, %v3845
      %v3847 = vcombine.low %v3738, %v3766
      %v3848 = vcombine.high %v3738, %v3766
      %v3850 = vunpack.c.l.s4 1983009808
      %v3851 = vunpack.c.0.s8 %v3850
      %v3852 = vlaneseq
      %v3853 = vshrl.u32 %v3852, 7
      %v3854 = vsub.s32 %v3851, %v3853
      %v3855 = vrot.slane %v3847, %v3854
      %v3857 = vunpack.c.l.s4 1983009808
      %v3858 = vunpack.c.0.s8 %v3857
      %v3859 = vlaneseq
      %v3860 = vshrl.u32 %v3859, 7
      %v3861 = vsub.s32 %v3858, %v3860
      %v3862 = vrot.slane %v3848, %v3861
      %v3863 = vcombine.low %v3780, %v3808
      %v3864 = vcombine.high %v3780, %v3808
      %v3866 = vunpack.c.l.s4 1983009808
      %v3867 = vunpack.c.0.s8 %v3866
      %v3868 = vlaneseq
      %v3869 = vshrl.u32 %v3868, 7
      %v3870 = vsub.s32 %v3867, %v3869
      %v3871 = vrot.slane %v3863, %v3870
      %v3873 = vunpack.c.l.s4 1983009808
      %v3874 = vunpack.c.0.s8 %v3873
      %v3875 = vlaneseq
      %v3876 = vshrl.u32 %v3875, 7
      %v3877 = vsub.s32 %v3874, %v3876
      %v3878 = vrot.slane %v3864, %v3877
      %v3879 = vcombine.low %v3794, %v3822
      %v3880 = vcombine.high %v3794, %v3822
      %v3882 = vunpack.c.l.s4 1983009808
      %v3883 = vunpack.c.0.s8 %v3882
      %v3884 = vlaneseq
      %v3885 = vshrl.u32 %v3884, 7
      %v3886 = vsub.s32 %v3883, %v3885
      %v3887 = vrot.slane %v3879, %v3886
      %v3889 = vunpack.c.l.s4 1983009808
      %v3890 = vunpack.c.0.s8 %v3889
      %v3891 = vlaneseq
      %v3892 = vshrl.u32 %v3891, 7
      %v3893 = vsub.s32 %v3890, %v3892
      %v3894 = vrot.slane %v3880, %v3893
      %v3895 = vcombine.low %v3839, %v3855
      %v3896 = vcombine.high %v3839, %v3855
      %v3898 = vunpack.c.l.s4 1934713408
      %v3899 = vunpack.c.0.s8 %v3898
      %v3900 = vlaneseq
      %v3901 = vshrl.u32 %v3900, 7
      %v3902 = vsub.s32 %v3899, %v3901
      %v3903 = vrot.slane %v3895, %v3902
      %v3905 = vunpack.c.l.s4 1934713408
      %v3906 = vunpack.c.0.s8 %v3905
      %v3907 = vlaneseq
      %v3908 = vshrl.u32 %v3907, 7
      %v3909 = vsub.s32 %v3906, %v3908
      %v3910 = vrot.slane %v3896, %v3909
      %v3911 = vcombine.low %v3846, %v3862
      %v3912 = vcombine.high %v3846, %v3862
      %v3914 = vunpack.c.l.s4 1934713408
      %v3915 = vunpack.c.0.s8 %v3914
      %v3916 = vlaneseq
      %v3917 = vshrl.u32 %v3916, 7
      %v3918 = vsub.s32 %v3915, %v3917
      %v3919 = vrot.slane %v3911, %v3918
      %v3921 = vunpack.c.l.s4 1934713408
      %v3922 = vunpack.c.0.s8 %v3921
      %v3923 = vlaneseq
      %v3924 = vshrl.u32 %v3923, 7
      %v3925 = vsub.s32 %v3922, %v3924
      %v3926 = vrot.slane %v3912, %v3925
      %v3927 = vcombine.low %v3871, %v3887
      %v3928 = vcombine.high %v3871, %v3887
      %v3930 = vunpack.c.l.s4 1934713408
      %v3931 = vunpack.c.0.s8 %v3930
      %v3932 = vlaneseq
      %v3933 = vshrl.u32 %v3932, 7
      %v3934 = vsub.s32 %v3931, %v3933
      %v3935 = vrot.slane %v3927, %v3934
      %v3937 = vunpack.c.l.s4 1934713408
      %v3938 = vunpack.c.0.s8 %v3937
      %v3939 = vlaneseq
      %v3940 = vshrl.u32 %v3939, 7
      %v3941 = vsub.s32 %v3938, %v3940
      %v3942 = vrot.slane %v3928, %v3941
      %v3943 = vcombine.low %v3878, %v3894
      %v3944 = vcombine.high %v3878, %v3894
      %v3946 = vunpack.c.l.s4 1934713408
      %v3947 = vunpack.c.0.s8 %v3946
      %v3948 = vlaneseq
      %v3949 = vshrl.u32 %v3948, 7
      %v3950 = vsub.s32 %v3947, %v3949
      %v3951 = vrot.slane %v3943, %v3950
      %v3953 = vunpack.c.l.s4 1934713408
      %v3954 = vunpack.c.0.s8 %v3953
      %v3955 = vlaneseq
      %v3956 = vshrl.u32 %v3955, 7
      %v3957 = vsub.s32 %v3954, %v3956
      %v3958 = vrot.slane %v3944, %v3957
      %v3959 = vcombine.low %v3903, %v3935
      %v3960 = vcombine.high %v3903, %v3935
      %v3961 = vcombine.low %v3910, %v3942
      %v3962 = vcombine.high %v3910, %v3942
      %v3963 = vcombine.low %v3919, %v3951
      %v3964 = vcombine.high %v3919, %v3951
      %v3965 = vcombine.low %v3926, %v3958
      %v3966 = vcombine.high %v3926, %v3958
      %3968 = vrot.lane.b32.xlu0 %v3960, 32
      %v3969 = vpop.permute.xlu0 %3968
      %3972 = vrot.lane.b32.xlu0 %v3961, 64
      %v3973 = vpop.permute.xlu0 %3972
      %3976 = vrot.lane.b32.xlu0 %v3962, 96
      %v3977 = vpop.permute.xlu0 %3976
      %3980 = vrot.lane.b32.xlu0 %v3964, 32
      %v3981 = vpop.permute.xlu0 %3980
      %3984 = vrot.lane.b32.xlu0 %v3965, 64
      %v3985 = vpop.permute.xlu0 %3984
      %3988 = vrot.lane.b32.xlu0 %v3966, 96
      %v3989 = vpop.permute.xlu0 %3988
      %v3991 = vsel %vm2656, %v3959, %v3969
      %vm3992 = vcmask 523264
      %v3993 = vsel %vm3992, %v3991, %v3973
      %vm3994 = vcmask 785408
      %v3995 = vsel %vm3994, %v3993, %v3977
      %v3996 = vsel %vm2656, %v3963, %v3981
      %v3997 = vsel %vm3992, %v3996, %v3985
      %v3998 = vsel %vm3994, %v3997, %v3989
      %3999 = vst [vmem:[%s192] sm:$0xff] %v3995
      %4000 = vst [vmem:[%s192 + $0x8] sm:$0xff] %v3998
      %p4001 = scmp.lt.s32.totalorder %s18, 1
      %s4002 = scalar_select %p4001, %s18, 1
      %p4003 = scmp.lt.s32.totalorder %s19, 0
      %s4004 = scalar_select %p4003, %s19, 0
      %s4005 = smul.addr %s4004, 2
      %s4006 = smul.addr %s4002, 2
      %s4007 = sadd.s32 %s4005, %s4006
      %s4008 = smul.addr %s4007, 8
      %s4009 = scalar_lea.vmem %s3, %s4008
      // Predicated region
      $region37: #{vggnet1_conv_layer_forward.1} parent=31 // pred_check
        %p4010 = pneg %p114
      $region38: #{vggnet1_conv_layer_forward.1} parent=31 // pred_check_branch
        %4012 = sbr.rel (%p4010) target = $region40
      $region39: #{vggnet1_conv_layer_forward.1} parent=31 // pred_region
        _
      $region40: #{vggnet1_conv_layer_forward.1} parent=31 // pred_fallthru
        _
    $region32: #{vggnet1_conv_layer_forward.1} parent=5 // pred_fallthru
      _
    %p4013 = scmp.le.s32.totalorder 2, %s9
    // Predicated region
    $region41: #{vggnet1_conv_layer_forward.1} parent=5 // pred_check
      %p4014 = pneg %p4013
    $region42: #{vggnet1_conv_layer_forward.1} parent=5 // pred_check_branch
      %4016 = sbr.rel (%p4014) target = $region44
    $region43: #{vggnet1_conv_layer_forward.1} parent=5 // pred_region
      %s4017 = ssub.s32 %s9, 2
      // Predicated region
      $region45: #{vggnet1_conv_layer_forward.1} parent=43 // pred_check
        %p4018 = pneg %p120
      $region46: #{vggnet1_conv_layer_forward.1} parent=43 // pred_check_branch
        %4020 = sbr.rel (%p4018) target = $region48
      $region47: #{vggnet1_conv_layer_forward.1} parent=43 // pred_region
        %p4021 = scmp.lt.s32.totalorder %s20, 1
        %s4022 = scalar_select %p4021, %s20, 1
        %p4023 = scmp.lt.s32.totalorder %s21, 0
        %s4024 = scalar_select %p4023, %s21, 0
        %s4025 = smul.addr %s4024, 2
        %s4026 = smul.addr %s4022, 2
        %s4027 = sadd.s32 %s4025, %s4026
        %s4028 = smul.addr %s4027, 8
        %s4029 = scalar_lea.vmem %s3, %s4028
      $region48: #{vggnet1_conv_layer_forward.1} parent=43 // pred_fallthru
        _
    $region44: #{vggnet1_conv_layer_forward.1} parent=5 // pred_fallthru
      _
  $region6: #{vggnet1_conv_layer_forward.1} parent=0 // loop_footer
    %s13 = sadd.s32 1, %s9
  $region7: #{vggnet1_conv_layer_forward.1} parent=0 // loop_footer_branch
    %8 = sbr.rel target = $region3
  $region8: #{vggnet1_conv_layer_forward.1} parent=0 // loop_exit
    _

</llo_original>
